<compile_context>
chip_gen: v7x
topology: tpu7x:2x2x1
jax: 0.10.0
libtpu: 0.0.40
codegen_flags: <defaults>
</compile_context>

<pallas_src>
import numpy as np
import jax
import jax.numpy as jnp
from jax import lax
from jax.experimental import pallas as pl
from jax.experimental.pallas import tpu as pltpu

# ----------------------------- config (small synthetic sizes) --------------------
B = 2            # batch
T = 8            # time frames
FRAME = 64       # audio samples per frame (fft size, no overlap)
AUDIO_LEN = T * FRAME
N_FREQ = FRAME // 2          # Nyquist bin dropped (lane-friendly)
N_MELS = 16
N_MFCC = 8
ENC_RNN = 32
Z_DIMS = 16
CH = 32
LAYERS = 2                   # layers per FcStack (kernel assumes >= 2)
DEC_RNN = 32
N_HARM = 8
N_NOISE = 4
N_OUT = 1 + N_HARM + N_NOISE
TB = T * B
EPS = 1e-5


# ----------------------------- pallas plumbing ------------------------------------
def _fullspec(shape):
    nd = len(shape)
    return pl.BlockSpec(shape, lambda i, nd=nd: (0,) * nd)


def _fused_call(kernel, args, out_shape, scratch_shapes):
    return pl.pallas_call(
        kernel,
        out_shape=out_shape,
        grid=(1,),
        in_specs=[_fullspec(a.shape) for a in args],
        out_specs=_fullspec(out_shape.shape),
        scratch_shapes=scratch_shapes,
    )(*args)


# ----------------------------- in-kernel helpers ----------------------------------
def _ln_lrelu(y, gamma, beta):
    # LayerNorm over the channel (lane) axis, then LeakyReLU(0.01).
    mu = jnp.mean(y, axis=-1, keepdims=True)
    d = y - mu
    var = jnp.mean(d * d, axis=-1, keepdims=True)
    yn = d * lax.rsqrt(var + EPS) * gamma + beta
    return jnp.where(yn >= 0.0, yn, 0.01 * yn)


def _gru_unrolled(gi_all, whh, bhh, rnn_scr, n_steps, bn, h_dim):
    """PyTorch-gate-order GRU. gi_all = x @ Wih + bih precomputed (hoisted);
    the unrolled recurrence only does h @ Whh + gate math per step and writes
    the hidden state rows (time-major) into rnn_scr."""
    h = jnp.zeros((bn, h_dim), jnp.float32)
    for t in range(n_steps):
        gi = gi_all[t * bn:(t + 1) * bn, :]
        gh = jnp.dot(h, whh, preferred_element_type=jnp.float32) + bhh
        rz = jax.nn.sigmoid(gi[:, :2 * h_dim] + gh[:, :2 * h_dim])   # one push for r|z
        r = rz[:, :h_dim]
        zg = rz[:, h_dim:]
        n = jnp.tanh(gi[:, 2 * h_dim:] + r * gh[:, 2 * h_dim:])
        h = (1.0 - zg) * n + zg * h
        rnn_scr[t * bn:(t + 1) * bn, :] = h


# ----------------------------- fused kernels --------------------------------------
def _encoder_kernel(frames_ref, dft_ref, mel_ref, dct_ref, innorm_ref, pnorm_ref,
                    wih_ref, whh_ref, gb_ref, wz_ref, bz_ref,
                    z_ref, rnn_scr):
    # Windowed DFT power spectrum: one matmul against [cos | -sin].
    spec = jnp.dot(frames_ref[...], dft_ref[...], preferred_element_type=jnp.float32)
    re = spec[:, :N_FREQ]
    im = spec[:, N_FREQ:]
    power = re * re + im * im                                           # [TB, N_FREQ]
    # Log-mel + DCT = MFCC.
    lm = jnp.log(jnp.dot(power, mel_ref[...], preferred_element_type=jnp.float32) + 1e-6)
    mfcc = jnp.dot(lm, dct_ref[...], preferred_element_type=jnp.float32)  # [TB, N_MFCC]
    # Instance norm: per-(batch, channel) stats over time via a constant
    # averaging projector P (P[i,j] = 1/T iff rows i,j belong to the same batch).
    p_mat = pnorm_ref[...]
    mu = jnp.dot(p_mat, mfcc, preferred_element_type=jnp.float32)
    d = mfcc - mu
    var = jnp.dot(p_mat, d * d, preferred_element_type=jnp.float32)
    xn = d * lax.rsqrt(var + EPS) * innorm_ref[0:1, :] + innorm_ref[1:2, :]
    # GRU (input projection hoisted out of the recurrence).
    gi_all = jnp.dot(xn, wih_ref[...], preferred_element_type=jnp.float32) + gb_ref[0:1, :]
    _gru_unrolled(gi_all, whh_ref[...], gb_ref[1:2, :], rnn_scr, T, B, ENC_RNN)
    # Dense to z, off the recurrent critical path.
    z_ref[...] = (jnp.dot(rnn_scr[...], wz_ref[...], preferred_element_type=jnp.float32)
                  + bz_ref[...])


def _decoder_kernel(p_ref, l_ref, z_ref,
                    w1f_ref, wrf_ref, vf_ref,
                    w1l_ref, wrl_ref, vl_ref,
                    w1z_ref, wrz_ref, vz_ref,
                    wih_ref, whh_ref, gb_ref,
                    wo1_ref, wro_ref, vo_ref,
                    wout_ref, bout_ref,
                    out_ref, rnn_scr):
    def stack_tail(h, wr_ref, v_ref):
        # Layers 2..LAYERS of an FcStack (Linear -> LayerNorm -> LeakyReLU).
        for li in range(1, LAYERS):
            y = (jnp.dot(h, wr_ref[li - 1], preferred_element_type=jnp.float32)
                 + v_ref[3 * li:3 * li + 1, :])
            h = _ln_lrelu(y, v_ref[3 * li + 1:3 * li + 2, :], v_ref[3 * li + 2:3 * li + 3, :])
        return h

    # --- three input FcStacks (f0, loudness: 1-d -> broadcast outer product) ----
    yf = p_ref[...] * w1f_ref[...] + vf_ref[0:1, :]
    hf = stack_tail(_ln_lrelu(yf, vf_ref[1:2, :], vf_ref[2:3, :]), wrf_ref, vf_ref)

    yl = l_ref[...] * w1l_ref[...] + vl_ref[0:1, :]
    hl = stack_tail(_ln_lrelu(yl, vl_ref[1:2, :], vl_ref[2:3, :]), wrl_ref, vl_ref)

    yz = jnp.dot(z_ref[...], w1z_ref[...], preferred_element_type=jnp.float32) + vz_ref[0:1, :]
    hz = stack_tail(_ln_lrelu(yz, vz_ref[1:2, :], vz_ref[2:3, :]), wrz_ref, vz_ref)

    # --- GRU over concat([hf, hl, hz]); concat avoided via row-block-split Wih ---
    gi_all = (jnp.dot(hf, wih_ref[0:CH, :], preferred_element_type=jnp.float32)
              + jnp.dot(hl, wih_ref[CH:2 * CH, :], preferred_element_type=jnp.float32)
              + jnp.dot(hz, wih_ref[2 * CH:3 * CH, :], preferred_element_type=jnp.float32)
              + gb_ref[0:1, :])
    _gru_unrolled(gi_all, whh_ref[...], gb_ref[1:2, :], rnn_scr, T, B, DEC_RNN)
    rnn = rnn_scr[...]

    # --- out FcStack on concat([hf, hl, hz, rnn]) via row-block-split weight -----
    y = (jnp.dot(hf, wo1_ref[0:CH, :], preferred_element_type=jnp.float32)
         + jnp.dot(hl, wo1_ref[CH:2 * CH, :], preferred_element_type=jnp.float32)
         + jnp.dot(hz, wo1_ref[2 * CH:3 * CH, :], preferred_element_type=jnp.float32)
         + jnp.dot(rnn, wo1_ref[3 * CH:3 * CH + DEC_RNN, :], preferred_element_type=jnp.float32)
         + vo_ref[0:1, :])
    h = stack_tail(_ln_lrelu(y, vo_ref[1:2, :], vo_ref[2:3, :]), wro_ref, vo_ref)

    # --- final projection to the output heads ------------------------------------
    out_ref[...] = (jnp.dot(h, wout_ref[...], preferred_element_type=jnp.float32)
                    + bout_ref[...])


# ----------------------------- parameter init --------------------------------------
def _dense_init(key, din, dout):
    s = 1.0 / np.sqrt(din)
    kw, kb = jax.random.split(key)
    w = jax.random.uniform(kw, (din, dout), jnp.float32, -s, s)
    b = jax.random.uniform(kb, (dout,), jnp.float32, -s, s)
    return w, b


def _stack_init_packed(key, din, ch, layers):
    """FcStack params packed for the fused kernel:
       w1 [din, ch]; wr [(layers-1), ch, ch]; vecs [3*layers, ch] with rows
       (bias_l, gamma_l, beta_l) per layer."""
    ks = jax.random.split(key, layers)
    w1, b1 = _dense_init(ks[0], din, ch)
    vec_rows = [b1, jnp.ones((ch,), jnp.float32), jnp.zeros((ch,), jnp.float32)]
    wr = []
    for i in range(1, layers):
        w, b = _dense_init(ks[i], ch, ch)
        wr.append(w)
        vec_rows += [b, jnp.ones((ch,), jnp.float32), jnp.zeros((ch,), jnp.float32)]
    return dict(w1=w1, wr=jnp.stack(wr, axis=0), vecs=jnp.stack(vec_rows, axis=0))


def _gru_init_packed(key, din, h):
    s = 1.0 / np.sqrt(h)
    k1, k2, k3, k4 = jax.random.split(key, 4)
    return dict(
        wih=jax.random.uniform(k1, (din, 3 * h), jnp.float32, -s, s),
        whh=jax.random.uniform(k2, (h, 3 * h), jnp.float32, -s, s),
        b=jnp.stack([jax.random.uniform(k3, (3 * h,), jnp.float32, -s, s),
                     jax.random.uniform(k4, (3 * h,), jnp.float32, -s, s)], axis=0),
    )


def _pnorm_matrix():
    # Time-major rows: row index = t*B + b  ->  batch id = row % B.
    idx = np.arange(TB)
    same = (idx[:, None] % B) == (idx[None, :] % B)
    return jnp.asarray((same.astype(np.float32)) / float(T))


def frontend_constants():
    n = np.arange(FRAME)
    window = 0.5 - 0.5 * np.cos(2.0 * np.pi * n / FRAME)          # Hann
    k = np.arange(N_FREQ)
    ang = 2.0 * np.pi * np.outer(n, k) / FRAME
    cos_w = (window[:, None] * np.cos(ang)).astype(np.float32)     # [FRAME, N_FREQ]
    sin_w = (window[:, None] * -np.sin(ang)).astype(np.float32)
    dft_w = np.concatenate([cos_w, sin_w], axis=1).astype(np.float32)  # [FRAME, 2*N_FREQ]
    # triangular mel filterbank (20 Hz .. sr/2)
    sr = 16000.0

    def hz2mel(f):
        return 2595.0 * np.log10(1.0 + f / 700.0)

    def mel2hz(m):
        return 700.0 * (10.0 ** (m / 2595.0) - 1.0)

    mel_pts = np.linspace(hz2mel(20.0), hz2mel(sr / 2.0), N_MELS + 2)
    hz_pts = mel2hz(mel_pts)
    freqs = np.linspace(0.0, sr / 2.0, N_FREQ, endpoint=False)
    fb = np.zeros((N_FREQ, N_MELS), np.float32)
    for m in range(N_MELS):
        fl, fc, fr = hz_pts[m], hz_pts[m + 1], hz_pts[m + 2]
        left = (freqs - fl) / max(fc - fl, 1e-5)
        right = (fr - freqs) / max(fr - fc, 1e-5)
        fb[:, m] = np.maximum(0.0, np.minimum(left, right))
    # orthonormal DCT-II
    mm = np.arange(N_MELS)[:, None]
    kk = np.arange(N_MFCC)[None, :]
    dct = np.sqrt(2.0 / N_MELS) * np.cos(np.pi / N_MELS * (mm + 0.5) * kk)
    dct[:, 0] *= 1.0 / np.sqrt(2.0)
    return (jnp.asarray(dft_w), jnp.asarray(fb), jnp.asarray(dct.astype(np.float32)))


def init_params(key):
    keys = jax.random.split(key, 8)
    dft_w, mel_fb, dct_m = frontend_constants()
    egru = _gru_init_packed(keys[0], N_MFCC, ENC_RNN)
    wz, bz = _dense_init(keys[1], ENC_RNN, Z_DIMS)
    enc = dict(
        dft=dft_w, mel=mel_fb, dct=dct_m,
        innorm=jnp.stack([jnp.ones((N_MFCC,), jnp.float32),
                          jnp.zeros((N_MFCC,), jnp.float32)], axis=0),
        pnorm=_pnorm_matrix(),
        wih=egru['wih'], whh=egru['whh'], gru_b=egru['b'],
        wz=wz, bz=bz.reshape(1, Z_DIMS),
    )
    dgru = _gru_init_packed(keys[5], 3 * CH, DEC_RNN)
    wout, bout = _dense_init(keys[7], CH, N_OUT)
    dec = dict(
        f0=_stack_init_packed(keys[2], 1, CH, LAYERS),
        ld=_stack_init_packed(keys[3], 1, CH, LAYERS),
        z=_stack_init_packed(keys[4], Z_DIMS, CH, LAYERS),
        wih=dgru['wih'], whh=dgru['whh'], gru_b=dgru['b'],
        out=_stack_init_packed(keys[6], 3 * CH + DEC_RNN, CH, LAYERS),
        wout=wout, bout=bout.reshape(1, N_OUT),
    )
    return dict(encoder=enc, decoder=dec)


# ----------------------------- forward pass ----------------------------------------
def encoder_forward(ep, s):
    # Non-overlapping frames, reordered once to time-major rows (t*B + b).
    frames = jnp.transpose(s.reshape(B, T, FRAME), (1, 0, 2)).reshape(TB, FRAME)
    args = (frames, ep['dft'], ep['mel'], ep['dct'], ep['innorm'], ep['pnorm'],
            ep['wih'], ep['whh'], ep['gru_b'], ep['wz'], ep['bz'])
    return _fused_call(
        _encoder_kernel, args,
        jax.ShapeDtypeStruct((TB, Z_DIMS), jnp.float32),
        [pltpu.VMEM((TB, ENC_RNN), jnp.float32)])          # z, time-major


def decoder_forward(dp, p, l, z_tm):
    p_tm = jnp.transpose(p, (1, 0, 2)).reshape(TB, 1)
    l_tm = jnp.transpose(l, (1, 0, 2)).reshape(TB, 1)
    args = (p_tm, l_tm, z_tm,
            dp['f0']['w1'], dp['f0']['wr'], dp['f0']['vecs'],
            dp['ld']['w1'], dp['ld']['wr'], dp['ld']['vecs'],
            dp['z']['w1'], dp['z']['wr'], dp['z']['vecs'],
            dp['wih'], dp['whh'], dp['gru_b'],
            dp['out']['w1'], dp['out']['wr'], dp['out']['vecs'],
            dp['wout'], dp['bout'])
    out_tm = _fused_call(
        _decoder_kernel, args,
        jax.ShapeDtypeStruct((TB, N_OUT), jnp.float32),
        [pltpu.VMEM((TB, DEC_RNN), jnp.float32)])
    out = jnp.transpose(out_tm.reshape(T, B, N_OUT), (1, 0, 2))   # back to [B, T, N_OUT]
    return {
        'amps': out[..., :1],
        'harmonic_distribution': out[..., 1:1 + N_HARM],
        'noise_magnitudes': out[..., 1 + N_HARM:],
    }


@jax.jit
def autoencoder_forward(params, p, l, s):
    z = encoder_forward(params['encoder'], s)
    return decoder_forward(params['decoder'], p, l, z)


# ----------------------------- main -------------------------------------------------
if __name__ == "__main__":
    key = jax.random.PRNGKey(0)
    kp, kl, ks, kw = jax.random.split(key, 4)
    p = jax.random.uniform(kp, (B, T, 1), jnp.float32)                  # f0_scaled
    l = jax.random.uniform(kl, (B, T, 1), jnp.float32)                  # ld_scaled
    s = jax.random.uniform(ks, (B, AUDIO_LEN), jnp.float32, -1.0, 1.0)  # audio
    params = init_params(kw)

    out = autoencoder_forward(params, p, l, s)
    jax.block_until_ready(out)

    assert out['amps'].shape == (B, T, 1)
    assert out['harmonic_distribution'].shape == (B, T, N_HARM)
    assert out['noise_magnitudes'].shape == (B, T, N_NOISE)
    assert all(bool(jnp.all(jnp.isfinite(v))) for v in out.values())
    print("KERNEL_OK")
</pallas_src>

<mosaic_0001>
module attributes {stable_mosaic.version = 11 : i64} {
  func.func @_encoder_kernel(%arg0: i32, %arg1: memref<16x64xf32, #tpu.memory_space<vmem>>, %arg2: memref<64x64xf32, #tpu.memory_space<vmem>>, %arg3: memref<32x16xf32, #tpu.memory_space<vmem>>, %arg4: memref<16x8xf32, #tpu.memory_space<vmem>>, %arg5: memref<2x8xf32, #tpu.memory_space<vmem>>, %arg6: memref<16x16xf32, #tpu.memory_space<vmem>>, %arg7: memref<8x96xf32, #tpu.memory_space<vmem>>, %arg8: memref<32x96xf32, #tpu.memory_space<vmem>>, %arg9: memref<2x96xf32, #tpu.memory_space<vmem>>, %arg10: memref<32x16xf32, #tpu.memory_space<vmem>>, %arg11: memref<1x16xf32, #tpu.memory_space<vmem>>, %arg12: memref<16x16xf32, #tpu.memory_space<vmem>>, %arg13: memref<16x32xf32, #tpu.memory_space<vmem>>) attributes {dimension_semantics = [#tpu.dimension_semantics<arbitrary>], iteration_bounds = array<i64: 1>, scalar_prefetch = 0 : i64, scratch_operands = 1 : i64, tpu.core_type = #tpu.core_type<tc>, window_params = [{pipeline_mode = #tpu.pipeline_mode<synchronous>, transform_indices = @transform_0, window_bounds = array<i64: 16, 64>}, {pipeline_mode = #tpu.pipeline_mode<synchronous>, transform_indices = @transform_1, window_bounds = array<i64: 64, 64>}, {pipeline_mode = #tpu.pipeline_mode<synchronous>, transform_indices = @transform_2, window_bounds = array<i64: 32, 16>}, {pipeline_mode = #tpu.pipeline_mode<synchronous>, transform_indices = @transform_3, window_bounds = array<i64: 16, 8>}, {pipeline_mode = #tpu.pipeline_mode<synchronous>, transform_indices = @transform_4, window_bounds = array<i64: 2, 8>}, {pipeline_mode = #tpu.pipeline_mode<synchronous>, transform_indices = @transform_5, window_bounds = array<i64: 16, 16>}, {pipeline_mode = #tpu.pipeline_mode<synchronous>, transform_indices = @transform_6, window_bounds = array<i64: 8, 96>}, {pipeline_mode = #tpu.pipeline_mode<synchronous>, transform_indices = @transform_7, window_bounds = array<i64: 32, 96>}, {pipeline_mode = #tpu.pipeline_mode<synchronous>, transform_indices = @transform_8, window_bounds = array<i64: 2, 96>}, {pipeline_mode = #tpu.pipeline_mode<synchronous>, transform_indices = @transform_9, window_bounds = array<i64: 32, 16>}, {pipeline_mode = #tpu.pipeline_mode<synchronous>, transform_indices = @transform_10, window_bounds = array<i64: 1, 16>}, {pipeline_mode = #tpu.pipeline_mode<synchronous>, transform_indices = @transform_11, window_bounds = array<i64: 16, 16>}]} {
    %c0 = arith.constant 0 : index
    %c0_0 = arith.constant 0 : index
    %0 = vector.load %arg1[%c0, %c0_0] : memref<16x64xf32, #tpu.memory_space<vmem>>, vector<16x64xf32>
    %c0_1 = arith.constant 0 : index
    %c0_2 = arith.constant 0 : index
    %1 = vector.load %arg2[%c0_1, %c0_2] : memref<64x64xf32, #tpu.memory_space<vmem>>, vector<64x64xf32>
    %cst = arith.constant dense<0.000000e+00> : vector<16x64xf32>
    %2 = tpu.matmul %0, %1, %cst {dimension_numbers = #tpu.dot_dimension_numbers<[1], [0], [0], [1], [0, 0, 1, 1], [], []>} : vector<16x64xf32>, vector<64x64xf32>, vector<16x64xf32> -> vector<16x64xf32>
    %3 = vector.extract_strided_slice %2 {offsets = [0, 0], sizes = [16, 32], strides = [1, 1]} : vector<16x64xf32> to vector<16x32xf32>
    %4 = vector.extract_strided_slice %2 {offsets = [0, 32], sizes = [16, 32], strides = [1, 1]} : vector<16x64xf32> to vector<16x32xf32>
    %5 = arith.mulf %3, %3 : vector<16x32xf32>
    %6 = arith.mulf %4, %4 : vector<16x32xf32>
    %7 = arith.addf %5, %6 : vector<16x32xf32>
    %c0_3 = arith.constant 0 : index
    %c0_4 = arith.constant 0 : index
    %8 = vector.load %arg3[%c0_3, %c0_4] : memref<32x16xf32, #tpu.memory_space<vmem>>, vector<32x16xf32>
    %cst_5 = arith.constant dense<0.000000e+00> : vector<16x16xf32>
    %9 = tpu.matmul %7, %8, %cst_5 {dimension_numbers = #tpu.dot_dimension_numbers<[1], [0], [0], [1], [0, 0, 1, 1], [], []>} : vector<16x32xf32>, vector<32x16xf32>, vector<16x16xf32> -> vector<16x16xf32>
    %cst_6 = arith.constant 9.99999997E-7 : f32
    %10 = vector.broadcast %cst_6 : f32 to vector<16x16xf32>
    %11 = arith.addf %9, %10 : vector<16x16xf32>
    %12 = math.log %11 : vector<16x16xf32>
    %c0_7 = arith.constant 0 : index
    %c0_8 = arith.constant 0 : index
    %13 = vector.load %arg4[%c0_7, %c0_8] : memref<16x8xf32, #tpu.memory_space<vmem>>, vector<16x8xf32>
    %cst_9 = arith.constant dense<0.000000e+00> : vector<16x8xf32>
    %14 = tpu.matmul %12, %13, %cst_9 {dimension_numbers = #tpu.dot_dimension_numbers<[1], [0], [0], [1], [0, 0, 1, 1], [], []>} : vector<16x16xf32>, vector<16x8xf32>, vector<16x8xf32> -> vector<16x8xf32>
    %c0_10 = arith.constant 0 : index
    %c0_11 = arith.constant 0 : index
    %15 = vector.load %arg6[%c0_10, %c0_11] : memref<16x16xf32, #tpu.memory_space<vmem>>, vector<16x16xf32>
    %cst_12 = arith.constant dense<0.000000e+00> : vector<16x8xf32>
    %16 = tpu.matmul %15, %14, %cst_12 {dimension_numbers = #tpu.dot_dimension_numbers<[1], [0], [0], [1], [0, 0, 1, 1], [], []>} : vector<16x16xf32>, vector<16x8xf32>, vector<16x8xf32> -> vector<16x8xf32>
    %17 = arith.subf %14, %16 : vector<16x8xf32>
    %18 = arith.mulf %17, %17 : vector<16x8xf32>
    %cst_13 = arith.constant dense<0.000000e+00> : vector<16x8xf32>
    %19 = tpu.matmul %15, %18, %cst_13 {dimension_numbers = #tpu.dot_dimension_numbers<[1], [0], [0], [1], [0, 0, 1, 1], [], []>} : vector<16x16xf32>, vector<16x8xf32>, vector<16x8xf32> -> vector<16x8xf32>
    %cst_14 = arith.constant 9.99999974E-6 : f32
    %20 = vector.broadcast %cst_14 : f32 to vector<16x8xf32>
    %21 = arith.addf %19, %20 : vector<16x8xf32>
    %22 = math.rsqrt %21 : vector<16x8xf32>
    %23 = arith.mulf %17, %22 : vector<16x8xf32>
    %c0_15 = arith.constant 0 : index
    %c0_16 = arith.constant 0 : index
    %24 = vector.load %arg5[%c0_15, %c0_16] : memref<2x8xf32, #tpu.memory_space<vmem>>, vector<1x8xf32>
    %25 = vector.broadcast %24 : vector<1x8xf32> to vector<16x8xf32>
    %26 = arith.mulf %23, %25 : vector<16x8xf32>
    %c1 = arith.constant 1 : index
    %c0_17 = arith.constant 0 : index
    %27 = vector.load %arg5[%c1, %c0_17] : memref<2x8xf32, #tpu.memory_space<vmem>>, vector<1x8xf32>
    %28 = vector.broadcast %27 : vector<1x8xf32> to vector<16x8xf32>
    %29 = arith.addf %26, %28 : vector<16x8xf32>
    %c0_18 = arith.constant 0 : index
    %c0_19 = arith.constant 0 : index
    %30 = vector.load %arg7[%c0_18, %c0_19] : memref<8x96xf32, #tpu.memory_space<vmem>>, vector<8x96xf32>
    %cst_20 = arith.constant dense<0.000000e+00> : vector<16x96xf32>
    %31 = tpu.matmul %29, %30, %cst_20 {dimension_numbers = #tpu.dot_dimension_numbers<[1], [0], [0], [1], [0, 0, 1, 1], [], []>} : vector<16x8xf32>, vector<8x96xf32>, vector<16x96xf32> -> vector<16x96xf32>
    %c0_21 = arith.constant 0 : index
    %c0_22 = arith.constant 0 : index
    %32 = vector.load %arg9[%c0_21, %c0_22] : memref<2x96xf32, #tpu.memory_space<vmem>>, vector<1x96xf32>
    %33 = vector.broadcast %32 : vector<1x96xf32> to vector<16x96xf32>
    %34 = arith.addf %31, %33 : vector<16x96xf32>
    %c0_23 = arith.constant 0 : index
    %c0_24 = arith.constant 0 : index
    %35 = vector.load %arg8[%c0_23, %c0_24] : memref<32x96xf32, #tpu.memory_space<vmem>>, vector<32x96xf32>
    %c1_25 = arith.constant 1 : index
    %c0_26 = arith.constant 0 : index
    %36 = vector.load %arg9[%c1_25, %c0_26] : memref<2x96xf32, #tpu.memory_space<vmem>>, vector<1x96xf32>
    %cst_27 = arith.constant 0.000000e+00 : f32
    %37 = vector.broadcast %cst_27 : f32 to vector<2x32xf32>
    %38 = vector.extract_strided_slice %34 {offsets = [0, 0], sizes = [2, 96], strides = [1, 1]} : vector<16x96xf32> to vector<2x96xf32>
    %cst_28 = arith.constant dense<0.000000e+00> : vector<2x96xf32>
    %39 = tpu.matmul %37, %35, %cst_28 {dimension_numbers = #tpu.dot_dimension_numbers<[1], [0], [0], [1], [0, 0, 1, 1], [], []>} : vector<2x32xf32>, vector<32x96xf32>, vector<2x96xf32> -> vector<2x96xf32>
    %40 = vector.broadcast %36 : vector<1x96xf32> to vector<2x96xf32>
    %41 = arith.addf %39, %40 : vector<2x96xf32>
    %42 = vector.extract_strided_slice %38 {offsets = [0, 0], sizes = [2, 64], strides = [1, 1]} : vector<2x96xf32> to vector<2x64xf32>
    %43 = vector.extract_strided_slice %41 {offsets = [0, 0], sizes = [2, 64], strides = [1, 1]} : vector<2x96xf32> to vector<2x64xf32>
    %44 = arith.addf %42, %43 : vector<2x64xf32>
    %45 = arith.negf %44 : vector<2x64xf32>
    %46 = math.exp %45 : vector<2x64xf32>
    %cst_29 = arith.constant 1.000000e+00 : f32
    %47 = vector.broadcast %cst_29 : f32 to vector<2x64xf32>
    %48 = arith.addf %47, %46 : vector<2x64xf32>
    %49 = arith.divf %47, %48 : vector<2x64xf32>
    %50 = vector.extract_strided_slice %49 {offsets = [0, 0], sizes = [2, 32], strides = [1, 1]} : vector<2x64xf32> to vector<2x32xf32>
    %51 = vector.extract_strided_slice %49 {offsets = [0, 32], sizes = [2, 32], strides = [1, 1]} : vector<2x64xf32> to vector<2x32xf32>
    %52 = vector.extract_strided_slice %38 {offsets = [0, 64], sizes = [2, 32], strides = [1, 1]} : vector<2x96xf32> to vector<2x32xf32>
    %53 = vector.extract_strided_slice %41 {offsets = [0, 64], sizes = [2, 32], strides = [1, 1]} : vector<2x96xf32> to vector<2x32xf32>
    %54 = arith.mulf %50, %53 : vector<2x32xf32>
    %55 = arith.addf %52, %54 : vector<2x32xf32>
    %56 = math.tanh %55 : vector<2x32xf32>
    %cst_30 = arith.constant 1.000000e+00 : f32
    %57 = vector.broadcast %cst_30 : f32 to vector<2x32xf32>
    %58 = arith.subf %57, %51 : vector<2x32xf32>
    %59 = arith.mulf %58, %56 : vector<2x32xf32>
    %60 = arith.mulf %51, %37 : vector<2x32xf32>
    %61 = arith.addf %59, %60 : vector<2x32xf32>
    %c0_31 = arith.constant 0 : index
    %c0_32 = arith.constant 0 : index
    %62 = vector.load %arg13[%c0_31, %c0_32] : memref<16x32xf32, #tpu.memory_space<vmem>>, vector<2x32xf32>
    tpu.vector_store %arg13[%c0_31, %c0_32], %61 {strides = array<i32>} : memref<16x32xf32, #tpu.memory_space<vmem>>, vector<2x32xf32>,
    %63 = vector.extract_strided_slice %34 {offsets = [2, 0], sizes = [2, 96], strides = [1, 1]} : vector<16x96xf32> to vector<2x96xf32>
    %cst_33 = arith.constant dense<0.000000e+00> : vector<2x96xf32>
    %64 = tpu.matmul %61, %35, %cst_33 {dimension_numbers = #tpu.dot_dimension_numbers<[1], [0], [0], [1], [0, 0, 1, 1], [], []>} : vector<2x32xf32>, vector<32x96xf32>, vector<2x96xf32> -> vector<2x96xf32>
    %65 = vector.broadcast %36 : vector<1x96xf32> to vector<2x96xf32>
    %66 = arith.addf %64, %65 : vector<2x96xf32>
    %67 = vector.extract_strided_slice %63 {offsets = [0, 0], sizes = [2, 64], strides = [1, 1]} : vector<2x96xf32> to vector<2x64xf32>
    %68 = vector.extract_strided_slice %66 {offsets = [0, 0], sizes = [2, 64], strides = [1, 1]} : vector<2x96xf32> to vector<2x64xf32>
    %69 = arith.addf %67, %68 : vector<2x64xf32>
    %70 = arith.negf %69 : vector<2x64xf32>
    %71 = math.exp %70 : vector<2x64xf32>
    %cst_34 = arith.constant 1.000000e+00 : f32
    %72 = vector.broadcast %cst_34 : f32 to vector<2x64xf32>
    %73 = arith.addf %72, %71 : vector<2x64xf32>
    %74 = arith.divf %72, %73 : vector<2x64xf32>
    %75 = vector.extract_strided_slice %74 {offsets = [0, 0], sizes = [2, 32], strides = [1, 1]} : vector<2x64xf32> to vector<2x32xf32>
    %76 = vector.extract_strided_slice %74 {offsets = [0, 32], sizes = [2, 32], strides = [1, 1]} : vector<2x64xf32> to vector<2x32xf32>
    %77 = vector.extract_strided_slice %63 {offsets = [0, 64], sizes = [2, 32], strides = [1, 1]} : vector<2x96xf32> to vector<2x32xf32>
    %78 = vector.extract_strided_slice %66 {offsets = [0, 64], sizes = [2, 32], strides = [1, 1]} : vector<2x96xf32> to vector<2x32xf32>
    %79 = arith.mulf %75, %78 : vector<2x32xf32>
    %80 = arith.addf %77, %79 : vector<2x32xf32>
    %81 = math.tanh %80 : vector<2x32xf32>
    %cst_35 = arith.constant 1.000000e+00 : f32
    %82 = vector.broadcast %cst_35 : f32 to vector<2x32xf32>
    %83 = arith.subf %82, %76 : vector<2x32xf32>
    %84 = arith.mulf %83, %81 : vector<2x32xf32>
    %85 = arith.mulf %76, %61 : vector<2x32xf32>
    %86 = arith.addf %84, %85 : vector<2x32xf32>
    %c2 = arith.constant 2 : index
    %c0_36 = arith.constant 0 : index
    %87 = vector.load %arg13[%c2, %c0_36] : memref<16x32xf32, #tpu.memory_space<vmem>>, vector<2x32xf32>
    tpu.vector_store %arg13[%c2, %c0_36], %86 {strides = array<i32>} : memref<16x32xf32, #tpu.memory_space<vmem>>, vector<2x32xf32>,
    %88 = vector.extract_strided_slice %34 {offsets = [4, 0], sizes = [2, 96], strides = [1, 1]} : vector<16x96xf32> to vector<2x96xf32>
    %cst_37 = arith.constant dense<0.000000e+00> : vector<2x96xf32>
    %89 = tpu.matmul %86, %35, %cst_37 {dimension_numbers = #tpu.dot_dimension_numbers<[1], [0], [0], [1], [0, 0, 1, 1], [], []>} : vector<2x32xf32>, vector<32x96xf32>, vector<2x96xf32> -> vector<2x96xf32>
    %90 = vector.broadcast %36 : vector<1x96xf32> to vector<2x96xf32>
    %91 = arith.addf %89, %90 : vector<2x96xf32>
    %92 = vector.extract_strided_slice %88 {offsets = [0, 0], sizes = [2, 64], strides = [1, 1]} : vector<2x96xf32> to vector<2x64xf32>
    %93 = vector.extract_strided_slice %91 {offsets = [0, 0], sizes = [2, 64], strides = [1, 1]} : vector<2x96xf32> to vector<2x64xf32>
    %94 = arith.addf %92, %93 : vector<2x64xf32>
    %95 = arith.negf %94 : vector<2x64xf32>
    %96 = math.exp %95 : vector<2x64xf32>
    %cst_38 = arith.constant 1.000000e+00 : f32
    %97 = vector.broadcast %cst_38 : f32 to vector<2x64xf32>
    %98 = arith.addf %97, %96 : vector<2x64xf32>
    %99 = arith.divf %97, %98 : vector<2x64xf32>
    %100 = vector.extract_strided_slice %99 {offsets = [0, 0], sizes = [2, 32], strides = [1, 1]} : vector<2x64xf32> to vector<2x32xf32>
    %101 = vector.extract_strided_slice %99 {offsets = [0, 32], sizes = [2, 32], strides = [1, 1]} : vector<2x64xf32> to vector<2x32xf32>
    %102 = vector.extract_strided_slice %88 {offsets = [0, 64], sizes = [2, 32], strides = [1, 1]} : vector<2x96xf32> to vector<2x32xf32>
    %103 = vector.extract_strided_slice %91 {offsets = [0, 64], sizes = [2, 32], strides = [1, 1]} : vector<2x96xf32> to vector<2x32xf32>
    %104 = arith.mulf %100, %103 : vector<2x32xf32>
    %105 = arith.addf %102, %104 : vector<2x32xf32>
    %106 = math.tanh %105 : vector<2x32xf32>
    %cst_39 = arith.constant 1.000000e+00 : f32
    %107 = vector.broadcast %cst_39 : f32 to vector<2x32xf32>
    %108 = arith.subf %107, %101 : vector<2x32xf32>
    %109 = arith.mulf %108, %106 : vector<2x32xf32>
    %110 = arith.mulf %101, %86 : vector<2x32xf32>
    %111 = arith.addf %109, %110 : vector<2x32xf32>
    %c4 = arith.constant 4 : index
    %c0_40 = arith.constant 0 : index
    %112 = vector.load %arg13[%c4, %c0_40] : memref<16x32xf32, #tpu.memory_space<vmem>>, vector<2x32xf32>
    tpu.vector_store %arg13[%c4, %c0_40], %111 {strides = array<i32>} : memref<16x32xf32, #tpu.memory_space<vmem>>, vector<2x32xf32>,
    %113 = vector.extract_strided_slice %34 {offsets = [6, 0], sizes = [2, 96], strides = [1, 1]} : vector<16x96xf32> to vector<2x96xf32>
    %cst_41 = arith.constant dense<0.000000e+00> : vector<2x96xf32>
    %114 = tpu.matmul %111, %35, %cst_41 {dimension_numbers = #tpu.dot_dimension_numbers<[1], [0], [0], [1], [0, 0, 1, 1], [], []>} : vector<2x32xf32>, vector<32x96xf32>, vector<2x96xf32> -> vector<2x96xf32>
    %115 = vector.broadcast %36 : vector<1x96xf32> to vector<2x96xf32>
    %116 = arith.addf %114, %115 : vector<2x96xf32>
    %117 = vector.extract_strided_slice %113 {offsets = [0, 0], sizes = [2, 64], strides = [1, 1]} : vector<2x96xf32> to vector<2x64xf32>
    %118 = vector.extract_strided_slice %116 {offsets = [0, 0], sizes = [2, 64], strides = [1, 1]} : vector<2x96xf32> to vector<2x64xf32>
    %119 = arith.addf %117, %118 : vector<2x64xf32>
    %120 = arith.negf %119 : vector<2x64xf32>
    %121 = math.exp %120 : vector<2x64xf32>
    %cst_42 = arith.constant 1.000000e+00 : f32
    %122 = vector.broadcast %cst_42 : f32 to vector<2x64xf32>
    %123 = arith.addf %122, %121 : vector<2x64xf32>
    %124 = arith.divf %122, %123 : vector<2x64xf32>
    %125 = vector.extract_strided_slice %124 {offsets = [0, 0], sizes = [2, 32], strides = [1, 1]} : vector<2x64xf32> to vector<2x32xf32>
    %126 = vector.extract_strided_slice %124 {offsets = [0, 32], sizes = [2, 32], strides = [1, 1]} : vector<2x64xf32> to vector<2x32xf32>
    %127 = vector.extract_strided_slice %113 {offsets = [0, 64], sizes = [2, 32], strides = [1, 1]} : vector<2x96xf32> to vector<2x32xf32>
    %128 = vector.extract_strided_slice %116 {offsets = [0, 64], sizes = [2, 32], strides = [1, 1]} : vector<2x96xf32> to vector<2x32xf32>
    %129 = arith.mulf %125, %128 : vector<2x32xf32>
    %130 = arith.addf %127, %129 : vector<2x32xf32>
    %131 = math.tanh %130 : vector<2x32xf32>
    %cst_43 = arith.constant 1.000000e+00 : f32
    %132 = vector.broadcast %cst_43 : f32 to vector<2x32xf32>
    %133 = arith.subf %132, %126 : vector<2x32xf32>
    %134 = arith.mulf %133, %131 : vector<2x32xf32>
    %135 = arith.mulf %126, %111 : vector<2x32xf32>
    %136 = arith.addf %134, %135 : vector<2x32xf32>
    %c6 = arith.constant 6 : index
    %c0_44 = arith.constant 0 : index
    %137 = vector.load %arg13[%c6, %c0_44] : memref<16x32xf32, #tpu.memory_space<vmem>>, vector<2x32xf32>
    tpu.vector_store %arg13[%c6, %c0_44], %136 {strides = array<i32>} : memref<16x32xf32, #tpu.memory_space<vmem>>, vector<2x32xf32>,
    %138 = vector.extract_strided_slice %34 {offsets = [8, 0], sizes = [2, 96], strides = [1, 1]} : vector<16x96xf32> to vector<2x96xf32>
    %cst_45 = arith.constant dense<0.000000e+00> : vector<2x96xf32>
    %139 = tpu.matmul %136, %35, %cst_45 {dimension_numbers = #tpu.dot_dimension_numbers<[1], [0], [0], [1], [0, 0, 1, 1], [], []>} : vector<2x32xf32>, vector<32x96xf32>, vector<2x96xf32> -> vector<2x96xf32>
    %140 = vector.broadcast %36 : vector<1x96xf32> to vector<2x96xf32>
    %141 = arith.addf %139, %140 : vector<2x96xf32>
    %142 = vector.extract_strided_slice %138 {offsets = [0, 0], sizes = [2, 64], strides = [1, 1]} : vector<2x96xf32> to vector<2x64xf32>
    %143 = vector.extract_strided_slice %141 {offsets = [0, 0], sizes = [2, 64], strides = [1, 1]} : vector<2x96xf32> to vector<2x64xf32>
    %144 = arith.addf %142, %143 : vector<2x64xf32>
    %145 = arith.negf %144 : vector<2x64xf32>
    %146 = math.exp %145 : vector<2x64xf32>
    %cst_46 = arith.constant 1.000000e+00 : f32
    %147 = vector.broadcast %cst_46 : f32 to vector<2x64xf32>
    %148 = arith.addf %147, %146 : vector<2x64xf32>
    %149 = arith.divf %147, %148 : vector<2x64xf32>
    %150 = vector.extract_strided_slice %149 {offsets = [0, 0], sizes = [2, 32], strides = [1, 1]} : vector<2x64xf32> to vector<2x32xf32>
    %151 = vector.extract_strided_slice %149 {offsets = [0, 32], sizes = [2, 32], strides = [1, 1]} : vector<2x64xf32> to vector<2x32xf32>
    %152 = vector.extract_strided_slice %138 {offsets = [0, 64], sizes = [2, 32], strides = [1, 1]} : vector<2x96xf32> to vector<2x32xf32>
    %153 = vector.extract_strided_slice %141 {offsets = [0, 64], sizes = [2, 32], strides = [1, 1]} : vector<2x96xf32> to vector<2x32xf32>
    %154 = arith.mulf %150, %153 : vector<2x32xf32>
    %155 = arith.addf %152, %154 : vector<2x32xf32>
    %156 = math.tanh %155 : vector<2x32xf32>
    %cst_47 = arith.constant 1.000000e+00 : f32
    %157 = vector.broadcast %cst_47 : f32 to vector<2x32xf32>
    %158 = arith.subf %157, %151 : vector<2x32xf32>
    %159 = arith.mulf %158, %156 : vector<2x32xf32>
    %160 = arith.mulf %151, %136 : vector<2x32xf32>
    %161 = arith.addf %159, %160 : vector<2x32xf32>
    %c8 = arith.constant 8 : index
    %c0_48 = arith.constant 0 : index
    %162 = vector.load %arg13[%c8, %c0_48] : memref<16x32xf32, #tpu.memory_space<vmem>>, vector<2x32xf32>
    tpu.vector_store %arg13[%c8, %c0_48], %161 {strides = array<i32>} : memref<16x32xf32, #tpu.memory_space<vmem>>, vector<2x32xf32>,
    %163 = vector.extract_strided_slice %34 {offsets = [10, 0], sizes = [2, 96], strides = [1, 1]} : vector<16x96xf32> to vector<2x96xf32>
    %cst_49 = arith.constant dense<0.000000e+00> : vector<2x96xf32>
    %164 = tpu.matmul %161, %35, %cst_49 {dimension_numbers = #tpu.dot_dimension_numbers<[1], [0], [0], [1], [0, 0, 1, 1], [], []>} : vector<2x32xf32>, vector<32x96xf32>, vector<2x96xf32> -> vector<2x96xf32>
    %165 = vector.broadcast %36 : vector<1x96xf32> to vector<2x96xf32>
    %166 = arith.addf %164, %165 : vector<2x96xf32>
    %167 = vector.extract_strided_slice %163 {offsets = [0, 0], sizes = [2, 64], strides = [1, 1]} : vector<2x96xf32> to vector<2x64xf32>
    %168 = vector.extract_strided_slice %166 {offsets = [0, 0], sizes = [2, 64], strides = [1, 1]} : vector<2x96xf32> to vector<2x64xf32>
    %169 = arith.addf %167, %168 : vector<2x64xf32>
    %170 = arith.negf %169 : vector<2x64xf32>
    %171 = math.exp %170 : vector<2x64xf32>
    %cst_50 = arith.constant 1.000000e+00 : f32
    %172 = vector.broadcast %cst_50 : f32 to vector<2x64xf32>
    %173 = arith.addf %172, %171 : vector<2x64xf32>
    %174 = arith.divf %172, %173 : vector<2x64xf32>
    %175 = vector.extract_strided_slice %174 {offsets = [0, 0], sizes = [2, 32], strides = [1, 1]} : vector<2x64xf32> to vector<2x32xf32>
    %176 = vector.extract_strided_slice %174 {offsets = [0, 32], sizes = [2, 32], strides = [1, 1]} : vector<2x64xf32> to vector<2x32xf32>
    %177 = vector.extract_strided_slice %163 {offsets = [0, 64], sizes = [2, 32], strides = [1, 1]} : vector<2x96xf32> to vector<2x32xf32>
    %178 = vector.extract_strided_slice %166 {offsets = [0, 64], sizes = [2, 32], strides = [1, 1]} : vector<2x96xf32> to vector<2x32xf32>
    %179 = arith.mulf %175, %178 : vector<2x32xf32>
    %180 = arith.addf %177, %179 : vector<2x32xf32>
    %181 = math.tanh %180 : vector<2x32xf32>
    %cst_51 = arith.constant 1.000000e+00 : f32
    %182 = vector.broadcast %cst_51 : f32 to vector<2x32xf32>
    %183 = arith.subf %182, %176 : vector<2x32xf32>
    %184 = arith.mulf %183, %181 : vector<2x32xf32>
    %185 = arith.mulf %176, %161 : vector<2x32xf32>
    %186 = arith.addf %184, %185 : vector<2x32xf32>
    %c10 = arith.constant 10 : index
    %c0_52 = arith.constant 0 : index
    %187 = vector.load %arg13[%c10, %c0_52] : memref<16x32xf32, #tpu.memory_space<vmem>>, vector<2x32xf32>
    tpu.vector_store %arg13[%c10, %c0_52], %186 {strides = array<i32>} : memref<16x32xf32, #tpu.memory_space<vmem>>, vector<2x32xf32>,
    %188 = vector.extract_strided_slice %34 {offsets = [12, 0], sizes = [2, 96], strides = [1, 1]} : vector<16x96xf32> to vector<2x96xf32>
    %cst_53 = arith.constant dense<0.000000e+00> : vector<2x96xf32>
    %189 = tpu.matmul %186, %35, %cst_53 {dimension_numbers = #tpu.dot_dimension_numbers<[1], [0], [0], [1], [0, 0, 1, 1], [], []>} : vector<2x32xf32>, vector<32x96xf32>, vector<2x96xf32> -> vector<2x96xf32>
    %190 = vector.broadcast %36 : vector<1x96xf32> to vector<2x96xf32>
    %191 = arith.addf %189, %190 : vector<2x96xf32>
    %192 = vector.extract_strided_slice %188 {offsets = [0, 0], sizes = [2, 64], strides = [1, 1]} : vector<2x96xf32> to vector<2x64xf32>
    %193 = vector.extract_strided_slice %191 {offsets = [0, 0], sizes = [2, 64], strides = [1, 1]} : vector<2x96xf32> to vector<2x64xf32>
    %194 = arith.addf %192, %193 : vector<2x64xf32>
    %195 = arith.negf %194 : vector<2x64xf32>
    %196 = math.exp %195 : vector<2x64xf32>
    %cst_54 = arith.constant 1.000000e+00 : f32
    %197 = vector.broadcast %cst_54 : f32 to vector<2x64xf32>
    %198 = arith.addf %197, %196 : vector<2x64xf32>
    %199 = arith.divf %197, %198 : vector<2x64xf32>
    %200 = vector.extract_strided_slice %199 {offsets = [0, 0], sizes = [2, 32], strides = [1, 1]} : vector<2x64xf32> to vector<2x32xf32>
    %201 = vector.extract_strided_slice %199 {offsets = [0, 32], sizes = [2, 32], strides = [1, 1]} : vector<2x64xf32> to vector<2x32xf32>
    %202 = vector.extract_strided_slice %188 {offsets = [0, 64], sizes = [2, 32], strides = [1, 1]} : vector<2x96xf32> to vector<2x32xf32>
    %203 = vector.extract_strided_slice %191 {offsets = [0, 64], sizes = [2, 32], strides = [1, 1]} : vector<2x96xf32> to vector<2x32xf32>
    %204 = arith.mulf %200, %203 : vector<2x32xf32>
    %205 = arith.addf %202, %204 : vector<2x32xf32>
    %206 = math.tanh %205 : vector<2x32xf32>
    %cst_55 = arith.constant 1.000000e+00 : f32
    %207 = vector.broadcast %cst_55 : f32 to vector<2x32xf32>
    %208 = arith.subf %207, %201 : vector<2x32xf32>
    %209 = arith.mulf %208, %206 : vector<2x32xf32>
    %210 = arith.mulf %201, %186 : vector<2x32xf32>
    %211 = arith.addf %209, %210 : vector<2x32xf32>
    %c12 = arith.constant 12 : index
    %c0_56 = arith.constant 0 : index
    %212 = vector.load %arg13[%c12, %c0_56] : memref<16x32xf32, #tpu.memory_space<vmem>>, vector<2x32xf32>
    tpu.vector_store %arg13[%c12, %c0_56], %211 {strides = array<i32>} : memref<16x32xf32, #tpu.memory_space<vmem>>, vector<2x32xf32>,
    %213 = vector.extract_strided_slice %34 {offsets = [14, 0], sizes = [2, 96], strides = [1, 1]} : vector<16x96xf32> to vector<2x96xf32>
    %cst_57 = arith.constant dense<0.000000e+00> : vector<2x96xf32>
    %214 = tpu.matmul %211, %35, %cst_57 {dimension_numbers = #tpu.dot_dimension_numbers<[1], [0], [0], [1], [0, 0, 1, 1], [], []>} : vector<2x32xf32>, vector<32x96xf32>, vector<2x96xf32> -> vector<2x96xf32>
    %215 = vector.broadcast %36 : vector<1x96xf32> to vector<2x96xf32>
    %216 = arith.addf %214, %215 : vector<2x96xf32>
    %217 = vector.extract_strided_slice %213 {offsets = [0, 0], sizes = [2, 64], strides = [1, 1]} : vector<2x96xf32> to vector<2x64xf32>
    %218 = vector.extract_strided_slice %216 {offsets = [0, 0], sizes = [2, 64], strides = [1, 1]} : vector<2x96xf32> to vector<2x64xf32>
    %219 = arith.addf %217, %218 : vector<2x64xf32>
    %220 = arith.negf %219 : vector<2x64xf32>
    %221 = math.exp %220 : vector<2x64xf32>
    %cst_58 = arith.constant 1.000000e+00 : f32
    %222 = vector.broadcast %cst_58 : f32 to vector<2x64xf32>
    %223 = arith.addf %222, %221 : vector<2x64xf32>
    %224 = arith.divf %222, %223 : vector<2x64xf32>
    %225 = vector.extract_strided_slice %224 {offsets = [0, 0], sizes = [2, 32], strides = [1, 1]} : vector<2x64xf32> to vector<2x32xf32>
    %226 = vector.extract_strided_slice %224 {offsets = [0, 32], sizes = [2, 32], strides = [1, 1]} : vector<2x64xf32> to vector<2x32xf32>
    %227 = vector.extract_strided_slice %213 {offsets = [0, 64], sizes = [2, 32], strides = [1, 1]} : vector<2x96xf32> to vector<2x32xf32>
    %228 = vector.extract_strided_slice %216 {offsets = [0, 64], sizes = [2, 32], strides = [1, 1]} : vector<2x96xf32> to vector<2x32xf32>
    %229 = arith.mulf %225, %228 : vector<2x32xf32>
    %230 = arith.addf %227, %229 : vector<2x32xf32>
    %231 = math.tanh %230 : vector<2x32xf32>
    %cst_59 = arith.constant 1.000000e+00 : f32
    %232 = vector.broadcast %cst_59 : f32 to vector<2x32xf32>
    %233 = arith.subf %232, %226 : vector<2x32xf32>
    %234 = arith.mulf %233, %231 : vector<2x32xf32>
    %235 = arith.mulf %226, %211 : vector<2x32xf32>
    %236 = arith.addf %234, %235 : vector<2x32xf32>
    %c14 = arith.constant 14 : index
    %c0_60 = arith.constant 0 : index
    %237 = vector.load %arg13[%c14, %c0_60] : memref<16x32xf32, #tpu.memory_space<vmem>>, vector<2x32xf32>
    tpu.vector_store %arg13[%c14, %c0_60], %236 {strides = array<i32>} : memref<16x32xf32, #tpu.memory_space<vmem>>, vector<2x32xf32>,
    %c0_61 = arith.constant 0 : index
    %c0_62 = arith.constant 0 : index
    %238 = vector.load %arg13[%c0_61, %c0_62] : memref<16x32xf32, #tpu.memory_space<vmem>>, vector<16x32xf32>
    %c0_63 = arith.constant 0 : index
    %c0_64 = arith.constant 0 : index
    %239 = vector.load %arg10[%c0_63, %c0_64] : memref<32x16xf32, #tpu.memory_space<vmem>>, vector<32x16xf32>
    %cst_65 = arith.constant dense<0.000000e+00> : vector<16x16xf32>
    %240 = tpu.matmul %238, %239, %cst_65 {dimension_numbers = #tpu.dot_dimension_numbers<[1], [0], [0], [1], [0, 0, 1, 1], [], []>} : vector<16x32xf32>, vector<32x16xf32>, vector<16x16xf32> -> vector<16x16xf32>
    %c0_66 = arith.constant 0 : index
    %c0_67 = arith.constant 0 : index
    %241 = vector.load %arg11[%c0_66, %c0_67] : memref<1x16xf32, #tpu.memory_space<vmem>>, vector<1x16xf32>
    %242 = vector.broadcast %241 : vector<1x16xf32> to vector<16x16xf32>
    %243 = arith.addf %240, %242 : vector<16x16xf32>
    %c0_68 = arith.constant 0 : index
    %c0_69 = arith.constant 0 : index
    %244 = vector.load %arg12[%c0_68, %c0_69] : memref<16x16xf32, #tpu.memory_space<vmem>>, vector<16x16xf32>
    tpu.vector_store %arg12[%c0_68, %c0_69], %243 {strides = array<i32>} : memref<16x16xf32, #tpu.memory_space<vmem>>, vector<16x16xf32>,
    return
  }
  func.func @transform_0(%arg0: i32) -> (i32, i32) {
    %c0_i32 = arith.constant 0 : i32
    %c0_i32_0 = arith.constant 0 : i32
    %c0_i32_1 = arith.constant 0 : i32
    return %c0_i32, %c0_i32_0 : i32, i32
  }
  func.func @transform_1(%arg0: i32) -> (i32, i32) {
    %c0_i32 = arith.constant 0 : i32
    %c0_i32_0 = arith.constant 0 : i32
    %c0_i32_1 = arith.constant 0 : i32
    return %c0_i32, %c0_i32_0 : i32, i32
  }
  func.func @transform_2(%arg0: i32) -> (i32, i32) {
    %c0_i32 = arith.constant 0 : i32
    %c0_i32_0 = arith.constant 0 : i32
    %c0_i32_1 = arith.constant 0 : i32
    return %c0_i32, %c0_i32_0 : i32, i32
  }
  func.func @transform_3(%arg0: i32) -> (i32, i32) {
    %c0_i32 = arith.constant 0 : i32
    %c0_i32_0 = arith.constant 0 : i32
    %c0_i32_1 = arith.constant 0 : i32
    return %c0_i32, %c0_i32_0 : i32, i32
  }
  func.func @transform_4(%arg0: i32) -> (i32, i32) {
    %c0_i32 = arith.constant 0 : i32
    %c0_i32_0 = arith.constant 0 : i32
    %c0_i32_1 = arith.constant 0 : i32
    return %c0_i32, %c0_i32_0 : i32, i32
  }
  func.func @transform_5(%arg0: i32) -> (i32, i32) {
    %c0_i32 = arith.constant 0 : i32
    %c0_i32_0 = arith.constant 0 : i32
    %c0_i32_1 = arith.constant 0 : i32
    return %c0_i32, %c0_i32_0 : i32, i32
  }
  func.func @transform_6(%arg0: i32) -> (i32, i32) {
    %c0_i32 = arith.constant 0 : i32
    %c0_i32_0 = arith.constant 0 : i32
    %c0_i32_1 = arith.constant 0 : i32
    return %c0_i32, %c0_i32_0 : i32, i32
  }
  func.func @transform_7(%arg0: i32) -> (i32, i32) {
    %c0_i32 = arith.constant 0 : i32
    %c0_i32_0 = arith.constant 0 : i32
    %c0_i32_1 = arith.constant 0 : i32
    return %c0_i32, %c0_i32_0 : i32, i32
  }
  func.func @transform_8(%arg0: i32) -> (i32, i32) {
    %c0_i32 = arith.constant 0 : i32
    %c0_i32_0 = arith.constant 0 : i32
    %c0_i32_1 = arith.constant 0 : i32
    return %c0_i32, %c0_i32_0 : i32, i32
  }
  func.func @transform_9(%arg0: i32) -> (i32, i32) {
    %c0_i32 = arith.constant 0 : i32
    %c0_i32_0 = arith.constant 0 : i32
    %c0_i32_1 = arith.constant 0 : i32
    return %c0_i32, %c0_i32_0 : i32, i32
  }
  func.func @transform_10(%arg0: i32) -> (i32, i32) {
    %c0_i32 = arith.constant 0 : i32
    %c0_i32_0 = arith.constant 0 : i32
    %c0_i32_1 = arith.constant 0 : i32
    return %c0_i32, %c0_i32_0 : i32, i32
  }
  func.func @transform_11(%arg0: i32) -> (i32, i32) {
    %c0_i32 = arith.constant 0 : i32
    %c0_i32_0 = arith.constant 0 : i32
    %c0_i32_1 = arith.constant 0 : i32
    return %c0_i32, %c0_i32_0 : i32, i32
  }
}

module attributes {stable_mosaic.version = 11 : i64} {
  func.func @_decoder_kernel(%arg0: i32, %arg1: memref<16x1xf32, #tpu.memory_space<vmem>>, %arg2: memref<16x1xf32, #tpu.memory_space<vmem>>, %arg3: memref<16x16xf32, #tpu.memory_space<vmem>>, %arg4: memref<1x32xf32, #tpu.memory_space<vmem>>, %arg5: memref<1x32x32xf32, #tpu.memory_space<vmem>>, %arg6: memref<6x32xf32, #tpu.memory_space<vmem>>, %arg7: memref<1x32xf32, #tpu.memory_space<vmem>>, %arg8: memref<1x32x32xf32, #tpu.memory_space<vmem>>, %arg9: memref<6x32xf32, #tpu.memory_space<vmem>>, %arg10: memref<16x32xf32, #tpu.memory_space<vmem>>, %arg11: memref<1x32x32xf32, #tpu.memory_space<vmem>>, %arg12: memref<6x32xf32, #tpu.memory_space<vmem>>, %arg13: memref<96x96xf32, #tpu.memory_space<vmem>>, %arg14: memref<32x96xf32, #tpu.memory_space<vmem>>, %arg15: memref<2x96xf32, #tpu.memory_space<vmem>>, %arg16: memref<128x32xf32, #tpu.memory_space<vmem>>, %arg17: memref<1x32x32xf32, #tpu.memory_space<vmem>>, %arg18: memref<6x32xf32, #tpu.memory_space<vmem>>, %arg19: memref<32x13xf32, #tpu.memory_space<vmem>>, %arg20: memref<1x13xf32, #tpu.memory_space<vmem>>, %arg21: memref<16x13xf32, #tpu.memory_space<vmem>>, %arg22: memref<16x32xf32, #tpu.memory_space<vmem>>) attributes {dimension_semantics = [#tpu.dimension_semantics<arbitrary>], iteration_bounds = array<i64: 1>, scalar_prefetch = 0 : i64, scratch_operands = 1 : i64, tpu.core_type = #tpu.core_type<tc>, window_params = [{pipeline_mode = #tpu.pipeline_mode<synchronous>, transform_indices = @transform_0, window_bounds = array<i64: 16, 1>}, {pipeline_mode = #tpu.pipeline_mode<synchronous>, transform_indices = @transform_1, window_bounds = array<i64: 16, 1>}, {pipeline_mode = #tpu.pipeline_mode<synchronous>, transform_indices = @transform_2, window_bounds = array<i64: 16, 16>}, {pipeline_mode = #tpu.pipeline_mode<synchronous>, transform_indices = @transform_3, window_bounds = array<i64: 1, 32>}, {pipeline_mode = #tpu.pipeline_mode<synchronous>, transform_indices = @transform_4, window_bounds = array<i64: 1, 32, 32>}, {pipeline_mode = #tpu.pipeline_mode<synchronous>, transform_indices = @transform_5, window_bounds = array<i64: 6, 32>}, {pipeline_mode = #tpu.pipeline_mode<synchronous>, transform_indices = @transform_6, window_bounds = array<i64: 1, 32>}, {pipeline_mode = #tpu.pipeline_mode<synchronous>, transform_indices = @transform_7, window_bounds = array<i64: 1, 32, 32>}, {pipeline_mode = #tpu.pipeline_mode<synchronous>, transform_indices = @transform_8, window_bounds = array<i64: 6, 32>}, {pipeline_mode = #tpu.pipeline_mode<synchronous>, transform_indices = @transform_9, window_bounds = array<i64: 16, 32>}, {pipeline_mode = #tpu.pipeline_mode<synchronous>, transform_indices = @transform_10, window_bounds = array<i64: 1, 32, 32>}, {pipeline_mode = #tpu.pipeline_mode<synchronous>, transform_indices = @transform_11, window_bounds = array<i64: 6, 32>}, {pipeline_mode = #tpu.pipeline_mode<synchronous>, transform_indices = @transform_12, window_bounds = array<i64: 96, 96>}, {pipeline_mode = #tpu.pipeline_mode<synchronous>, transform_indices = @transform_13, window_bounds = array<i64: 32, 96>}, {pipeline_mode = #tpu.pipeline_mode<synchronous>, transform_indices = @transform_14, window_bounds = array<i64: 2, 96>}, {pipeline_mode = #tpu.pipeline_mode<synchronous>, transform_indices = @transform_15, window_bounds = array<i64: 128, 32>}, {pipeline_mode = #tpu.pipeline_mode<synchronous>, transform_indices = @transform_16, window_bounds = array<i64: 1, 32, 32>}, {pipeline_mode = #tpu.pipeline_mode<synchronous>, transform_indices = @transform_17, window_bounds = array<i64: 6, 32>}, {pipeline_mode = #tpu.pipeline_mode<synchronous>, transform_indices = @transform_18, window_bounds = array<i64: 32, 13>}, {pipeline_mode = #tpu.pipeline_mode<synchronous>, transform_indices = @transform_19, window_bounds = array<i64: 1, 13>}, {pipeline_mode = #tpu.pipeline_mode<synchronous>, transform_indices = @transform_20, window_bounds = array<i64: 16, 13>}]} {
    %c0 = arith.constant 0 : index
    %c0_0 = arith.constant 0 : index
    %0 = vector.load %arg1[%c0, %c0_0] : memref<16x1xf32, #tpu.memory_space<vmem>>, vector<16x1xf32>
    %c0_1 = arith.constant 0 : index
    %c0_2 = arith.constant 0 : index
    %1 = vector.load %arg4[%c0_1, %c0_2] : memref<1x32xf32, #tpu.memory_space<vmem>>, vector<1x32xf32>
    %2 = vector.broadcast %0 : vector<16x1xf32> to vector<16x32xf32>
    %3 = vector.broadcast %1 : vector<1x32xf32> to vector<16x32xf32>
    %4 = arith.mulf %2, %3 : vector<16x32xf32>
    %c0_3 = arith.constant 0 : index
    %c0_4 = arith.constant 0 : index
    %5 = vector.load %arg6[%c0_3, %c0_4] : memref<6x32xf32, #tpu.memory_space<vmem>>, vector<1x32xf32>
    %6 = vector.broadcast %5 : vector<1x32xf32> to vector<16x32xf32>
    %7 = arith.addf %4, %6 : vector<16x32xf32>
    %c1 = arith.constant 1 : index
    %c0_5 = arith.constant 0 : index
    %8 = vector.load %arg6[%c1, %c0_5] : memref<6x32xf32, #tpu.memory_space<vmem>>, vector<1x32xf32>
    %c2 = arith.constant 2 : index
    %c0_6 = arith.constant 0 : index
    %9 = vector.load %arg6[%c2, %c0_6] : memref<6x32xf32, #tpu.memory_space<vmem>>, vector<1x32xf32>
    %cst = arith.constant dense<0.000000e+00> : vector<16xf32>
    %10 = vector.multi_reduction <add>, %7, %cst [1] : vector<16x32xf32> to vector<16xf32>
    %11 = vector.shape_cast %10 : vector<16xf32> to vector<16x1xf32>
    %cst_7 = arith.constant 3.200000e+01 : f32
    %12 = vector.broadcast %cst_7 : f32 to vector<16x1xf32>
    %13 = arith.divf %11, %12 : vector<16x1xf32>
    %14 = vector.broadcast %13 : vector<16x1xf32> to vector<16x32xf32>
    %15 = arith.subf %7, %14 : vector<16x32xf32>
    %16 = arith.mulf %15, %15 : vector<16x32xf32>
    %cst_8 = arith.constant dense<0.000000e+00> : vector<16xf32>
    %17 = vector.multi_reduction <add>, %16, %cst_8 [1] : vector<16x32xf32> to vector<16xf32>
    %18 = vector.shape_cast %17 : vector<16xf32> to vector<16x1xf32>
    %cst_9 = arith.constant 3.200000e+01 : f32
    %19 = vector.broadcast %cst_9 : f32 to vector<16x1xf32>
    %20 = arith.divf %18, %19 : vector<16x1xf32>
    %cst_10 = arith.constant 9.99999974E-6 : f32
    %21 = vector.broadcast %cst_10 : f32 to vector<16x1xf32>
    %22 = arith.addf %20, %21 : vector<16x1xf32>
    %23 = math.rsqrt %22 : vector<16x1xf32>
    %24 = vector.broadcast %23 : vector<16x1xf32> to vector<16x32xf32>
    %25 = arith.mulf %15, %24 : vector<16x32xf32>
    %26 = vector.broadcast %8 : vector<1x32xf32> to vector<16x32xf32>
    %27 = arith.mulf %25, %26 : vector<16x32xf32>
    %28 = vector.broadcast %9 : vector<1x32xf32> to vector<16x32xf32>
    %29 = arith.addf %27, %28 : vector<16x32xf32>
    %cst_11 = arith.constant 0.000000e+00 : f32
    %30 = vector.broadcast %cst_11 : f32 to vector<16x32xf32>
    %31 = arith.cmpf oge, %29, %30 : vector<16x32xf32>
    %cst_12 = arith.constant 0.00999999977 : f32
    %32 = vector.broadcast %cst_12 : f32 to vector<16x32xf32>
    %33 = arith.mulf %32, %29 : vector<16x32xf32>
    %34 = arith.select %31, %29, %33 : vector<16x32xi1>, vector<16x32xf32>
    %c0_13 = arith.constant 0 : index
    %c0_14 = arith.constant 0 : index
    %c0_15 = arith.constant 0 : index
    %35 = vector.load %arg5[%c0_13, %c0_14, %c0_15] : memref<1x32x32xf32, #tpu.memory_space<vmem>>, vector<1x32x32xf32>
    %36 = vector.shape_cast %35 : vector<1x32x32xf32> to vector<32x32xf32>
    %cst_16 = arith.constant dense<0.000000e+00> : vector<16x32xf32>
    %37 = tpu.matmul %34, %36, %cst_16 {dimension_numbers = #tpu.dot_dimension_numbers<[1], [0], [0], [1], [0, 0, 1, 1], [], []>} : vector<16x32xf32>, vector<32x32xf32>, vector<16x32xf32> -> vector<16x32xf32>
    %c3 = arith.constant 3 : index
    %c0_17 = arith.constant 0 : index
    %38 = vector.load %arg6[%c3, %c0_17] : memref<6x32xf32, #tpu.memory_space<vmem>>, vector<1x32xf32>
    %39 = vector.broadcast %38 : vector<1x32xf32> to vector<16x32xf32>
    %40 = arith.addf %37, %39 : vector<16x32xf32>
    %c4 = arith.constant 4 : index
    %c0_18 = arith.constant 0 : index
    %41 = vector.load %arg6[%c4, %c0_18] : memref<6x32xf32, #tpu.memory_space<vmem>>, vector<1x32xf32>
    %c5 = arith.constant 5 : index
    %c0_19 = arith.constant 0 : index
    %42 = vector.load %arg6[%c5, %c0_19] : memref<6x32xf32, #tpu.memory_space<vmem>>, vector<1x32xf32>
    %cst_20 = arith.constant dense<0.000000e+00> : vector<16xf32>
    %43 = vector.multi_reduction <add>, %40, %cst_20 [1] : vector<16x32xf32> to vector<16xf32>
    %44 = vector.shape_cast %43 : vector<16xf32> to vector<16x1xf32>
    %cst_21 = arith.constant 3.200000e+01 : f32
    %45 = vector.broadcast %cst_21 : f32 to vector<16x1xf32>
    %46 = arith.divf %44, %45 : vector<16x1xf32>
    %47 = vector.broadcast %46 : vector<16x1xf32> to vector<16x32xf32>
    %48 = arith.subf %40, %47 : vector<16x32xf32>
    %49 = arith.mulf %48, %48 : vector<16x32xf32>
    %cst_22 = arith.constant dense<0.000000e+00> : vector<16xf32>
    %50 = vector.multi_reduction <add>, %49, %cst_22 [1] : vector<16x32xf32> to vector<16xf32>
    %51 = vector.shape_cast %50 : vector<16xf32> to vector<16x1xf32>
    %cst_23 = arith.constant 3.200000e+01 : f32
    %52 = vector.broadcast %cst_23 : f32 to vector<16x1xf32>
    %53 = arith.divf %51, %52 : vector<16x1xf32>
    %cst_24 = arith.constant 9.99999974E-6 : f32
    %54 = vector.broadcast %cst_24 : f32 to vector<16x1xf32>
    %55 = arith.addf %53, %54 : vector<16x1xf32>
    %56 = math.rsqrt %55 : vector<16x1xf32>
    %57 = vector.broadcast %56 : vector<16x1xf32> to vector<16x32xf32>
    %58 = arith.mulf %48, %57 : vector<16x32xf32>
    %59 = vector.broadcast %41 : vector<1x32xf32> to vector<16x32xf32>
    %60 = arith.mulf %58, %59 : vector<16x32xf32>
    %61 = vector.broadcast %42 : vector<1x32xf32> to vector<16x32xf32>
    %62 = arith.addf %60, %61 : vector<16x32xf32>
    %cst_25 = arith.constant 0.000000e+00 : f32
    %63 = vector.broadcast %cst_25 : f32 to vector<16x32xf32>
    %64 = arith.cmpf oge, %62, %63 : vector<16x32xf32>
    %cst_26 = arith.constant 0.00999999977 : f32
    %65 = vector.broadcast %cst_26 : f32 to vector<16x32xf32>
    %66 = arith.mulf %65, %62 : vector<16x32xf32>
    %67 = arith.select %64, %62, %66 : vector<16x32xi1>, vector<16x32xf32>
    %c0_27 = arith.constant 0 : index
    %c0_28 = arith.constant 0 : index
    %68 = vector.load %arg2[%c0_27, %c0_28] : memref<16x1xf32, #tpu.memory_space<vmem>>, vector<16x1xf32>
    %c0_29 = arith.constant 0 : index
    %c0_30 = arith.constant 0 : index
    %69 = vector.load %arg7[%c0_29, %c0_30] : memref<1x32xf32, #tpu.memory_space<vmem>>, vector<1x32xf32>
    %70 = vector.broadcast %68 : vector<16x1xf32> to vector<16x32xf32>
    %71 = vector.broadcast %69 : vector<1x32xf32> to vector<16x32xf32>
    %72 = arith.mulf %70, %71 : vector<16x32xf32>
    %c0_31 = arith.constant 0 : index
    %c0_32 = arith.constant 0 : index
    %73 = vector.load %arg9[%c0_31, %c0_32] : memref<6x32xf32, #tpu.memory_space<vmem>>, vector<1x32xf32>
    %74 = vector.broadcast %73 : vector<1x32xf32> to vector<16x32xf32>
    %75 = arith.addf %72, %74 : vector<16x32xf32>
    %c1_33 = arith.constant 1 : index
    %c0_34 = arith.constant 0 : index
    %76 = vector.load %arg9[%c1_33, %c0_34] : memref<6x32xf32, #tpu.memory_space<vmem>>, vector<1x32xf32>
    %c2_35 = arith.constant 2 : index
    %c0_36 = arith.constant 0 : index
    %77 = vector.load %arg9[%c2_35, %c0_36] : memref<6x32xf32, #tpu.memory_space<vmem>>, vector<1x32xf32>
    %cst_37 = arith.constant dense<0.000000e+00> : vector<16xf32>
    %78 = vector.multi_reduction <add>, %75, %cst_37 [1] : vector<16x32xf32> to vector<16xf32>
    %79 = vector.shape_cast %78 : vector<16xf32> to vector<16x1xf32>
    %cst_38 = arith.constant 3.200000e+01 : f32
    %80 = vector.broadcast %cst_38 : f32 to vector<16x1xf32>
    %81 = arith.divf %79, %80 : vector<16x1xf32>
    %82 = vector.broadcast %81 : vector<16x1xf32> to vector<16x32xf32>
    %83 = arith.subf %75, %82 : vector<16x32xf32>
    %84 = arith.mulf %83, %83 : vector<16x32xf32>
    %cst_39 = arith.constant dense<0.000000e+00> : vector<16xf32>
    %85 = vector.multi_reduction <add>, %84, %cst_39 [1] : vector<16x32xf32> to vector<16xf32>
    %86 = vector.shape_cast %85 : vector<16xf32> to vector<16x1xf32>
    %cst_40 = arith.constant 3.200000e+01 : f32
    %87 = vector.broadcast %cst_40 : f32 to vector<16x1xf32>
    %88 = arith.divf %86, %87 : vector<16x1xf32>
    %cst_41 = arith.constant 9.99999974E-6 : f32
    %89 = vector.broadcast %cst_41 : f32 to vector<16x1xf32>
    %90 = arith.addf %88, %89 : vector<16x1xf32>
    %91 = math.rsqrt %90 : vector<16x1xf32>
    %92 = vector.broadcast %91 : vector<16x1xf32> to vector<16x32xf32>
    %93 = arith.mulf %83, %92 : vector<16x32xf32>
    %94 = vector.broadcast %76 : vector<1x32xf32> to vector<16x32xf32>
    %95 = arith.mulf %93, %94 : vector<16x32xf32>
    %96 = vector.broadcast %77 : vector<1x32xf32> to vector<16x32xf32>
    %97 = arith.addf %95, %96 : vector<16x32xf32>
    %cst_42 = arith.constant 0.000000e+00 : f32
    %98 = vector.broadcast %cst_42 : f32 to vector<16x32xf32>
    %99 = arith.cmpf oge, %97, %98 : vector<16x32xf32>
    %cst_43 = arith.constant 0.00999999977 : f32
    %100 = vector.broadcast %cst_43 : f32 to vector<16x32xf32>
    %101 = arith.mulf %100, %97 : vector<16x32xf32>
    %102 = arith.select %99, %97, %101 : vector<16x32xi1>, vector<16x32xf32>
    %c0_44 = arith.constant 0 : index
    %c0_45 = arith.constant 0 : index
    %c0_46 = arith.constant 0 : index
    %103 = vector.load %arg8[%c0_44, %c0_45, %c0_46] : memref<1x32x32xf32, #tpu.memory_space<vmem>>, vector<1x32x32xf32>
    %104 = vector.shape_cast %103 : vector<1x32x32xf32> to vector<32x32xf32>
    %cst_47 = arith.constant dense<0.000000e+00> : vector<16x32xf32>
    %105 = tpu.matmul %102, %104, %cst_47 {dimension_numbers = #tpu.dot_dimension_numbers<[1], [0], [0], [1], [0, 0, 1, 1], [], []>} : vector<16x32xf32>, vector<32x32xf32>, vector<16x32xf32> -> vector<16x32xf32>
    %c3_48 = arith.constant 3 : index
    %c0_49 = arith.constant 0 : index
    %106 = vector.load %arg9[%c3_48, %c0_49] : memref<6x32xf32, #tpu.memory_space<vmem>>, vector<1x32xf32>
    %107 = vector.broadcast %106 : vector<1x32xf32> to vector<16x32xf32>
    %108 = arith.addf %105, %107 : vector<16x32xf32>
    %c4_50 = arith.constant 4 : index
    %c0_51 = arith.constant 0 : index
    %109 = vector.load %arg9[%c4_50, %c0_51] : memref<6x32xf32, #tpu.memory_space<vmem>>, vector<1x32xf32>
    %c5_52 = arith.constant 5 : index
    %c0_53 = arith.constant 0 : index
    %110 = vector.load %arg9[%c5_52, %c0_53] : memref<6x32xf32, #tpu.memory_space<vmem>>, vector<1x32xf32>
    %cst_54 = arith.constant dense<0.000000e+00> : vector<16xf32>
    %111 = vector.multi_reduction <add>, %108, %cst_54 [1] : vector<16x32xf32> to vector<16xf32>
    %112 = vector.shape_cast %111 : vector<16xf32> to vector<16x1xf32>
    %cst_55 = arith.constant 3.200000e+01 : f32
    %113 = vector.broadcast %cst_55 : f32 to vector<16x1xf32>
    %114 = arith.divf %112, %113 : vector<16x1xf32>
    %115 = vector.broadcast %114 : vector<16x1xf32> to vector<16x32xf32>
    %116 = arith.subf %108, %115 : vector<16x32xf32>
    %117 = arith.mulf %116, %116 : vector<16x32xf32>
    %cst_56 = arith.constant dense<0.000000e+00> : vector<16xf32>
    %118 = vector.multi_reduction <add>, %117, %cst_56 [1] : vector<16x32xf32> to vector<16xf32>
    %119 = vector.shape_cast %118 : vector<16xf32> to vector<16x1xf32>
    %cst_57 = arith.constant 3.200000e+01 : f32
    %120 = vector.broadcast %cst_57 : f32 to vector<16x1xf32>
    %121 = arith.divf %119, %120 : vector<16x1xf32>
    %cst_58 = arith.constant 9.99999974E-6 : f32
    %122 = vector.broadcast %cst_58 : f32 to vector<16x1xf32>
    %123 = arith.addf %121, %122 : vector<16x1xf32>
    %124 = math.rsqrt %123 : vector<16x1xf32>
    %125 = vector.broadcast %124 : vector<16x1xf32> to vector<16x32xf32>
    %126 = arith.mulf %116, %125 : vector<16x32xf32>
    %127 = vector.broadcast %109 : vector<1x32xf32> to vector<16x32xf32>
    %128 = arith.mulf %126, %127 : vector<16x32xf32>
    %129 = vector.broadcast %110 : vector<1x32xf32> to vector<16x32xf32>
    %130 = arith.addf %128, %129 : vector<16x32xf32>
    %cst_59 = arith.constant 0.000000e+00 : f32
    %131 = vector.broadcast %cst_59 : f32 to vector<16x32xf32>
    %132 = arith.cmpf oge, %130, %131 : vector<16x32xf32>
    %cst_60 = arith.constant 0.00999999977 : f32
    %133 = vector.broadcast %cst_60 : f32 to vector<16x32xf32>
    %134 = arith.mulf %133, %130 : vector<16x32xf32>
    %135 = arith.select %132, %130, %134 : vector<16x32xi1>, vector<16x32xf32>
    %c0_61 = arith.constant 0 : index
    %c0_62 = arith.constant 0 : index
    %136 = vector.load %arg3[%c0_61, %c0_62] : memref<16x16xf32, #tpu.memory_space<vmem>>, vector<16x16xf32>
    %c0_63 = arith.constant 0 : index
    %c0_64 = arith.constant 0 : index
    %137 = vector.load %arg10[%c0_63, %c0_64] : memref<16x32xf32, #tpu.memory_space<vmem>>, vector<16x32xf32>
    %cst_65 = arith.constant dense<0.000000e+00> : vector<16x32xf32>
    %138 = tpu.matmul %136, %137, %cst_65 {dimension_numbers = #tpu.dot_dimension_numbers<[1], [0], [0], [1], [0, 0, 1, 1], [], []>} : vector<16x16xf32>, vector<16x32xf32>, vector<16x32xf32> -> vector<16x32xf32>
    %c0_66 = arith.constant 0 : index
    %c0_67 = arith.constant 0 : index
    %139 = vector.load %arg12[%c0_66, %c0_67] : memref<6x32xf32, #tpu.memory_space<vmem>>, vector<1x32xf32>
    %140 = vector.broadcast %139 : vector<1x32xf32> to vector<16x32xf32>
    %141 = arith.addf %138, %140 : vector<16x32xf32>
    %c1_68 = arith.constant 1 : index
    %c0_69 = arith.constant 0 : index
    %142 = vector.load %arg12[%c1_68, %c0_69] : memref<6x32xf32, #tpu.memory_space<vmem>>, vector<1x32xf32>
    %c2_70 = arith.constant 2 : index
    %c0_71 = arith.constant 0 : index
    %143 = vector.load %arg12[%c2_70, %c0_71] : memref<6x32xf32, #tpu.memory_space<vmem>>, vector<1x32xf32>
    %cst_72 = arith.constant dense<0.000000e+00> : vector<16xf32>
    %144 = vector.multi_reduction <add>, %141, %cst_72 [1] : vector<16x32xf32> to vector<16xf32>
    %145 = vector.shape_cast %144 : vector<16xf32> to vector<16x1xf32>
    %cst_73 = arith.constant 3.200000e+01 : f32
    %146 = vector.broadcast %cst_73 : f32 to vector<16x1xf32>
    %147 = arith.divf %145, %146 : vector<16x1xf32>
    %148 = vector.broadcast %147 : vector<16x1xf32> to vector<16x32xf32>
    %149 = arith.subf %141, %148 : vector<16x32xf32>
    %150 = arith.mulf %149, %149 : vector<16x32xf32>
    %cst_74 = arith.constant dense<0.000000e+00> : vector<16xf32>
    %151 = vector.multi_reduction <add>, %150, %cst_74 [1] : vector<16x32xf32> to vector<16xf32>
    %152 = vector.shape_cast %151 : vector<16xf32> to vector<16x1xf32>
    %cst_75 = arith.constant 3.200000e+01 : f32
    %153 = vector.broadcast %cst_75 : f32 to vector<16x1xf32>
    %154 = arith.divf %152, %153 : vector<16x1xf32>
    %cst_76 = arith.constant 9.99999974E-6 : f32
    %155 = vector.broadcast %cst_76 : f32 to vector<16x1xf32>
    %156 = arith.addf %154, %155 : vector<16x1xf32>
    %157 = math.rsqrt %156 : vector<16x1xf32>
    %158 = vector.broadcast %157 : vector<16x1xf32> to vector<16x32xf32>
    %159 = arith.mulf %149, %158 : vector<16x32xf32>
    %160 = vector.broadcast %142 : vector<1x32xf32> to vector<16x32xf32>
    %161 = arith.mulf %159, %160 : vector<16x32xf32>
    %162 = vector.broadcast %143 : vector<1x32xf32> to vector<16x32xf32>
    %163 = arith.addf %161, %162 : vector<16x32xf32>
    %cst_77 = arith.constant 0.000000e+00 : f32
    %164 = vector.broadcast %cst_77 : f32 to vector<16x32xf32>
    %165 = arith.cmpf oge, %163, %164 : vector<16x32xf32>
    %cst_78 = arith.constant 0.00999999977 : f32
    %166 = vector.broadcast %cst_78 : f32 to vector<16x32xf32>
    %167 = arith.mulf %166, %163 : vector<16x32xf32>
    %168 = arith.select %165, %163, %167 : vector<16x32xi1>, vector<16x32xf32>
    %c0_79 = arith.constant 0 : index
    %c0_80 = arith.constant 0 : index
    %c0_81 = arith.constant 0 : index
    %169 = vector.load %arg11[%c0_79, %c0_80, %c0_81] : memref<1x32x32xf32, #tpu.memory_space<vmem>>, vector<1x32x32xf32>
    %170 = vector.shape_cast %169 : vector<1x32x32xf32> to vector<32x32xf32>
    %cst_82 = arith.constant dense<0.000000e+00> : vector<16x32xf32>
    %171 = tpu.matmul %168, %170, %cst_82 {dimension_numbers = #tpu.dot_dimension_numbers<[1], [0], [0], [1], [0, 0, 1, 1], [], []>} : vector<16x32xf32>, vector<32x32xf32>, vector<16x32xf32> -> vector<16x32xf32>
    %c3_83 = arith.constant 3 : index
    %c0_84 = arith.constant 0 : index
    %172 = vector.load %arg12[%c3_83, %c0_84] : memref<6x32xf32, #tpu.memory_space<vmem>>, vector<1x32xf32>
    %173 = vector.broadcast %172 : vector<1x32xf32> to vector<16x32xf32>
    %174 = arith.addf %171, %173 : vector<16x32xf32>
    %c4_85 = arith.constant 4 : index
    %c0_86 = arith.constant 0 : index
    %175 = vector.load %arg12[%c4_85, %c0_86] : memref<6x32xf32, #tpu.memory_space<vmem>>, vector<1x32xf32>
    %c5_87 = arith.constant 5 : index
    %c0_88 = arith.constant 0 : index
    %176 = vector.load %arg12[%c5_87, %c0_88] : memref<6x32xf32, #tpu.memory_space<vmem>>, vector<1x32xf32>
    %cst_89 = arith.constant dense<0.000000e+00> : vector<16xf32>
    %177 = vector.multi_reduction <add>, %174, %cst_89 [1] : vector<16x32xf32> to vector<16xf32>
    %178 = vector.shape_cast %177 : vector<16xf32> to vector<16x1xf32>
    %cst_90 = arith.constant 3.200000e+01 : f32
    %179 = vector.broadcast %cst_90 : f32 to vector<16x1xf32>
    %180 = arith.divf %178, %179 : vector<16x1xf32>
    %181 = vector.broadcast %180 : vector<16x1xf32> to vector<16x32xf32>
    %182 = arith.subf %174, %181 : vector<16x32xf32>
    %183 = arith.mulf %182, %182 : vector<16x32xf32>
    %cst_91 = arith.constant dense<0.000000e+00> : vector<16xf32>
    %184 = vector.multi_reduction <add>, %183, %cst_91 [1] : vector<16x32xf32> to vector<16xf32>
    %185 = vector.shape_cast %184 : vector<16xf32> to vector<16x1xf32>
    %cst_92 = arith.constant 3.200000e+01 : f32
    %186 = vector.broadcast %cst_92 : f32 to vector<16x1xf32>
    %187 = arith.divf %185, %186 : vector<16x1xf32>
    %cst_93 = arith.constant 9.99999974E-6 : f32
    %188 = vector.broadcast %cst_93 : f32 to vector<16x1xf32>
    %189 = arith.addf %187, %188 : vector<16x1xf32>
    %190 = math.rsqrt %189 : vector<16x1xf32>
    %191 = vector.broadcast %190 : vector<16x1xf32> to vector<16x32xf32>
    %192 = arith.mulf %182, %191 : vector<16x32xf32>
    %193 = vector.broadcast %175 : vector<1x32xf32> to vector<16x32xf32>
    %194 = arith.mulf %192, %193 : vector<16x32xf32>
    %195 = vector.broadcast %176 : vector<1x32xf32> to vector<16x32xf32>
    %196 = arith.addf %194, %195 : vector<16x32xf32>
    %cst_94 = arith.constant 0.000000e+00 : f32
    %197 = vector.broadcast %cst_94 : f32 to vector<16x32xf32>
    %198 = arith.cmpf oge, %196, %197 : vector<16x32xf32>
    %cst_95 = arith.constant 0.00999999977 : f32
    %199 = vector.broadcast %cst_95 : f32 to vector<16x32xf32>
    %200 = arith.mulf %199, %196 : vector<16x32xf32>
    %201 = arith.select %198, %196, %200 : vector<16x32xi1>, vector<16x32xf32>
    %c0_96 = arith.constant 0 : index
    %c0_97 = arith.constant 0 : index
    %202 = vector.load %arg13[%c0_96, %c0_97] : memref<96x96xf32, #tpu.memory_space<vmem>>, vector<32x96xf32>
    %cst_98 = arith.constant dense<0.000000e+00> : vector<16x96xf32>
    %203 = tpu.matmul %67, %202, %cst_98 {dimension_numbers = #tpu.dot_dimension_numbers<[1], [0], [0], [1], [0, 0, 1, 1], [], []>} : vector<16x32xf32>, vector<32x96xf32>, vector<16x96xf32> -> vector<16x96xf32>
    %c32 = arith.constant 32 : index
    %c0_99 = arith.constant 0 : index
    %204 = vector.load %arg13[%c32, %c0_99] : memref<96x96xf32, #tpu.memory_space<vmem>>, vector<32x96xf32>
    %cst_100 = arith.constant dense<0.000000e+00> : vector<16x96xf32>
    %205 = tpu.matmul %135, %204, %cst_100 {dimension_numbers = #tpu.dot_dimension_numbers<[1], [0], [0], [1], [0, 0, 1, 1], [], []>} : vector<16x32xf32>, vector<32x96xf32>, vector<16x96xf32> -> vector<16x96xf32>
    %206 = arith.addf %203, %205 : vector<16x96xf32>
    %c64 = arith.constant 64 : index
    %c0_101 = arith.constant 0 : index
    %207 = vector.load %arg13[%c64, %c0_101] : memref<96x96xf32, #tpu.memory_space<vmem>>, vector<32x96xf32>
    %cst_102 = arith.constant dense<0.000000e+00> : vector<16x96xf32>
    %208 = tpu.matmul %201, %207, %cst_102 {dimension_numbers = #tpu.dot_dimension_numbers<[1], [0], [0], [1], [0, 0, 1, 1], [], []>} : vector<16x32xf32>, vector<32x96xf32>, vector<16x96xf32> -> vector<16x96xf32>
    %209 = arith.addf %206, %208 : vector<16x96xf32>
    %c0_103 = arith.constant 0 : index
    %c0_104 = arith.constant 0 : index
    %210 = vector.load %arg15[%c0_103, %c0_104] : memref<2x96xf32, #tpu.memory_space<vmem>>, vector<1x96xf32>
    %211 = vector.broadcast %210 : vector<1x96xf32> to vector<16x96xf32>
    %212 = arith.addf %209, %211 : vector<16x96xf32>
    %c0_105 = arith.constant 0 : index
    %c0_106 = arith.constant 0 : index
    %213 = vector.load %arg14[%c0_105, %c0_106] : memref<32x96xf32, #tpu.memory_space<vmem>>, vector<32x96xf32>
    %c1_107 = arith.constant 1 : index
    %c0_108 = arith.constant 0 : index
    %214 = vector.load %arg15[%c1_107, %c0_108] : memref<2x96xf32, #tpu.memory_space<vmem>>, vector<1x96xf32>
    %cst_109 = arith.constant 0.000000e+00 : f32
    %215 = vector.broadcast %cst_109 : f32 to vector<2x32xf32>
    %216 = vector.extract_strided_slice %212 {offsets = [0, 0], sizes = [2, 96], strides = [1, 1]} : vector<16x96xf32> to vector<2x96xf32>
    %cst_110 = arith.constant dense<0.000000e+00> : vector<2x96xf32>
    %217 = tpu.matmul %215, %213, %cst_110 {dimension_numbers = #tpu.dot_dimension_numbers<[1], [0], [0], [1], [0, 0, 1, 1], [], []>} : vector<2x32xf32>, vector<32x96xf32>, vector<2x96xf32> -> vector<2x96xf32>
    %218 = vector.broadcast %214 : vector<1x96xf32> to vector<2x96xf32>
    %219 = arith.addf %217, %218 : vector<2x96xf32>
    %220 = vector.extract_strided_slice %216 {offsets = [0, 0], sizes = [2, 64], strides = [1, 1]} : vector<2x96xf32> to vector<2x64xf32>
    %221 = vector.extract_strided_slice %219 {offsets = [0, 0], sizes = [2, 64], strides = [1, 1]} : vector<2x96xf32> to vector<2x64xf32>
    %222 = arith.addf %220, %221 : vector<2x64xf32>
    %223 = arith.negf %222 : vector<2x64xf32>
    %224 = math.exp %223 : vector<2x64xf32>
    %cst_111 = arith.constant 1.000000e+00 : f32
    %225 = vector.broadcast %cst_111 : f32 to vector<2x64xf32>
    %226 = arith.addf %225, %224 : vector<2x64xf32>
    %227 = arith.divf %225, %226 : vector<2x64xf32>
    %228 = vector.extract_strided_slice %227 {offsets = [0, 0], sizes = [2, 32], strides = [1, 1]} : vector<2x64xf32> to vector<2x32xf32>
    %229 = vector.extract_strided_slice %227 {offsets = [0, 32], sizes = [2, 32], strides = [1, 1]} : vector<2x64xf32> to vector<2x32xf32>
    %230 = vector.extract_strided_slice %216 {offsets = [0, 64], sizes = [2, 32], strides = [1, 1]} : vector<2x96xf32> to vector<2x32xf32>
    %231 = vector.extract_strided_slice %219 {offsets = [0, 64], sizes = [2, 32], strides = [1, 1]} : vector<2x96xf32> to vector<2x32xf32>
    %232 = arith.mulf %228, %231 : vector<2x32xf32>
    %233 = arith.addf %230, %232 : vector<2x32xf32>
    %234 = math.tanh %233 : vector<2x32xf32>
    %cst_112 = arith.constant 1.000000e+00 : f32
    %235 = vector.broadcast %cst_112 : f32 to vector<2x32xf32>
    %236 = arith.subf %235, %229 : vector<2x32xf32>
    %237 = arith.mulf %236, %234 : vector<2x32xf32>
    %238 = arith.mulf %229, %215 : vector<2x32xf32>
    %239 = arith.addf %237, %238 : vector<2x32xf32>
    %c0_113 = arith.constant 0 : index
    %c0_114 = arith.constant 0 : index
    %240 = vector.load %arg22[%c0_113, %c0_114] : memref<16x32xf32, #tpu.memory_space<vmem>>, vector<2x32xf32>
    tpu.vector_store %arg22[%c0_113, %c0_114], %239 {strides = array<i32>} : memref<16x32xf32, #tpu.memory_space<vmem>>, vector<2x32xf32>,
    %241 = vector.extract_strided_slice %212 {offsets = [2, 0], sizes = [2, 96], strides = [1, 1]} : vector<16x96xf32> to vector<2x96xf32>
    %cst_115 = arith.constant dense<0.000000e+00> : vector<2x96xf32>
    %242 = tpu.matmul %239, %213, %cst_115 {dimension_numbers = #tpu.dot_dimension_numbers<[1], [0], [0], [1], [0, 0, 1, 1], [], []>} : vector<2x32xf32>, vector<32x96xf32>, vector<2x96xf32> -> vector<2x96xf32>
    %243 = vector.broadcast %214 : vector<1x96xf32> to vector<2x96xf32>
    %244 = arith.addf %242, %243 : vector<2x96xf32>
    %245 = vector.extract_strided_slice %241 {offsets = [0, 0], sizes = [2, 64], strides = [1, 1]} : vector<2x96xf32> to vector<2x64xf32>
    %246 = vector.extract_strided_slice %244 {offsets = [0, 0], sizes = [2, 64], strides = [1, 1]} : vector<2x96xf32> to vector<2x64xf32>
    %247 = arith.addf %245, %246 : vector<2x64xf32>
    %248 = arith.negf %247 : vector<2x64xf32>
    %249 = math.exp %248 : vector<2x64xf32>
    %cst_116 = arith.constant 1.000000e+00 : f32
    %250 = vector.broadcast %cst_116 : f32 to vector<2x64xf32>
    %251 = arith.addf %250, %249 : vector<2x64xf32>
    %252 = arith.divf %250, %251 : vector<2x64xf32>
    %253 = vector.extract_strided_slice %252 {offsets = [0, 0], sizes = [2, 32], strides = [1, 1]} : vector<2x64xf32> to vector<2x32xf32>
    %254 = vector.extract_strided_slice %252 {offsets = [0, 32], sizes = [2, 32], strides = [1, 1]} : vector<2x64xf32> to vector<2x32xf32>
    %255 = vector.extract_strided_slice %241 {offsets = [0, 64], sizes = [2, 32], strides = [1, 1]} : vector<2x96xf32> to vector<2x32xf32>
    %256 = vector.extract_strided_slice %244 {offsets = [0, 64], sizes = [2, 32], strides = [1, 1]} : vector<2x96xf32> to vector<2x32xf32>
    %257 = arith.mulf %253, %256 : vector<2x32xf32>
    %258 = arith.addf %255, %257 : vector<2x32xf32>
    %259 = math.tanh %258 : vector<2x32xf32>
    %cst_117 = arith.constant 1.000000e+00 : f32
    %260 = vector.broadcast %cst_117 : f32 to vector<2x32xf32>
    %261 = arith.subf %260, %254 : vector<2x32xf32>
    %262 = arith.mulf %261, %259 : vector<2x32xf32>
    %263 = arith.mulf %254, %239 : vector<2x32xf32>
    %264 = arith.addf %262, %263 : vector<2x32xf32>
    %c2_118 = arith.constant 2 : index
    %c0_119 = arith.constant 0 : index
    %265 = vector.load %arg22[%c2_118, %c0_119] : memref<16x32xf32, #tpu.memory_space<vmem>>, vector<2x32xf32>
    tpu.vector_store %arg22[%c2_118, %c0_119], %264 {strides = array<i32>} : memref<16x32xf32, #tpu.memory_space<vmem>>, vector<2x32xf32>,
    %266 = vector.extract_strided_slice %212 {offsets = [4, 0], sizes = [2, 96], strides = [1, 1]} : vector<16x96xf32> to vector<2x96xf32>
    %cst_120 = arith.constant dense<0.000000e+00> : vector<2x96xf32>
    %267 = tpu.matmul %264, %213, %cst_120 {dimension_numbers = #tpu.dot_dimension_numbers<[1], [0], [0], [1], [0, 0, 1, 1], [], []>} : vector<2x32xf32>, vector<32x96xf32>, vector<2x96xf32> -> vector<2x96xf32>
    %268 = vector.broadcast %214 : vector<1x96xf32> to vector<2x96xf32>
    %269 = arith.addf %267, %268 : vector<2x96xf32>
    %270 = vector.extract_strided_slice %266 {offsets = [0, 0], sizes = [2, 64], strides = [1, 1]} : vector<2x96xf32> to vector<2x64xf32>
    %271 = vector.extract_strided_slice %269 {offsets = [0, 0], sizes = [2, 64], strides = [1, 1]} : vector<2x96xf32> to vector<2x64xf32>
    %272 = arith.addf %270, %271 : vector<2x64xf32>
    %273 = arith.negf %272 : vector<2x64xf32>
    %274 = math.exp %273 : vector<2x64xf32>
    %cst_121 = arith.constant 1.000000e+00 : f32
    %275 = vector.broadcast %cst_121 : f32 to vector<2x64xf32>
    %276 = arith.addf %275, %274 : vector<2x64xf32>
    %277 = arith.divf %275, %276 : vector<2x64xf32>
    %278 = vector.extract_strided_slice %277 {offsets = [0, 0], sizes = [2, 32], strides = [1, 1]} : vector<2x64xf32> to vector<2x32xf32>
    %279 = vector.extract_strided_slice %277 {offsets = [0, 32], sizes = [2, 32], strides = [1, 1]} : vector<2x64xf32> to vector<2x32xf32>
    %280 = vector.extract_strided_slice %266 {offsets = [0, 64], sizes = [2, 32], strides = [1, 1]} : vector<2x96xf32> to vector<2x32xf32>
    %281 = vector.extract_strided_slice %269 {offsets = [0, 64], sizes = [2, 32], strides = [1, 1]} : vector<2x96xf32> to vector<2x32xf32>
    %282 = arith.mulf %278, %281 : vector<2x32xf32>
    %283 = arith.addf %280, %282 : vector<2x32xf32>
    %284 = math.tanh %283 : vector<2x32xf32>
    %cst_122 = arith.constant 1.000000e+00 : f32
    %285 = vector.broadcast %cst_122 : f32 to vector<2x32xf32>
    %286 = arith.subf %285, %279 : vector<2x32xf32>
    %287 = arith.mulf %286, %284 : vector<2x32xf32>
    %288 = arith.mulf %279, %264 : vector<2x32xf32>
    %289 = arith.addf %287, %288 : vector<2x32xf32>
    %c4_123 = arith.constant 4 : index
    %c0_124 = arith.constant 0 : index
    %290 = vector.load %arg22[%c4_123, %c0_124] : memref<16x32xf32, #tpu.memory_space<vmem>>, vector<2x32xf32>
    tpu.vector_store %arg22[%c4_123, %c0_124], %289 {strides = array<i32>} : memref<16x32xf32, #tpu.memory_space<vmem>>, vector<2x32xf32>,
    %291 = vector.extract_strided_slice %212 {offsets = [6, 0], sizes = [2, 96], strides = [1, 1]} : vector<16x96xf32> to vector<2x96xf32>
    %cst_125 = arith.constant dense<0.000000e+00> : vector<2x96xf32>
    %292 = tpu.matmul %289, %213, %cst_125 {dimension_numbers = #tpu.dot_dimension_numbers<[1], [0], [0], [1], [0, 0, 1, 1], [], []>} : vector<2x32xf32>, vector<32x96xf32>, vector<2x96xf32> -> vector<2x96xf32>
    %293 = vector.broadcast %214 : vector<1x96xf32> to vector<2x96xf32>
    %294 = arith.addf %292, %293 : vector<2x96xf32>
    %295 = vector.extract_strided_slice %291 {offsets = [0, 0], sizes = [2, 64], strides = [1, 1]} : vector<2x96xf32> to vector<2x64xf32>
    %296 = vector.extract_strided_slice %294 {offsets = [0, 0], sizes = [2, 64], strides = [1, 1]} : vector<2x96xf32> to vector<2x64xf32>
    %297 = arith.addf %295, %296 : vector<2x64xf32>
    %298 = arith.negf %297 : vector<2x64xf32>
    %299 = math.exp %298 : vector<2x64xf32>
    %cst_126 = arith.constant 1.000000e+00 : f32
    %300 = vector.broadcast %cst_126 : f32 to vector<2x64xf32>
    %301 = arith.addf %300, %299 : vector<2x64xf32>
    %302 = arith.divf %300, %301 : vector<2x64xf32>
    %303 = vector.extract_strided_slice %302 {offsets = [0, 0], sizes = [2, 32], strides = [1, 1]} : vector<2x64xf32> to vector<2x32xf32>
    %304 = vector.extract_strided_slice %302 {offsets = [0, 32], sizes = [2, 32], strides = [1, 1]} : vector<2x64xf32> to vector<2x32xf32>
    %305 = vector.extract_strided_slice %291 {offsets = [0, 64], sizes = [2, 32], strides = [1, 1]} : vector<2x96xf32> to vector<2x32xf32>
    %306 = vector.extract_strided_slice %294 {offsets = [0, 64], sizes = [2, 32], strides = [1, 1]} : vector<2x96xf32> to vector<2x32xf32>
    %307 = arith.mulf %303, %306 : vector<2x32xf32>
    %308 = arith.addf %305, %307 : vector<2x32xf32>
    %309 = math.tanh %308 : vector<2x32xf32>
    %cst_127 = arith.constant 1.000000e+00 : f32
    %310 = vector.broadcast %cst_127 : f32 to vector<2x32xf32>
    %311 = arith.subf %310, %304 : vector<2x32xf32>
    %312 = arith.mulf %311, %309 : vector<2x32xf32>
    %313 = arith.mulf %304, %289 : vector<2x32xf32>
    %314 = arith.addf %312, %313 : vector<2x32xf32>
    %c6 = arith.constant 6 : index
    %c0_128 = arith.constant 0 : index
    %315 = vector.load %arg22[%c6, %c0_128] : memref<16x32xf32, #tpu.memory_space<vmem>>, vector<2x32xf32>
    tpu.vector_store %arg22[%c6, %c0_128], %314 {strides = array<i32>} : memref<16x32xf32, #tpu.memory_space<vmem>>, vector<2x32xf32>,
    %316 = vector.extract_strided_slice %212 {offsets = [8, 0], sizes = [2, 96], strides = [1, 1]} : vector<16x96xf32> to vector<2x96xf32>
    %cst_129 = arith.constant dense<0.000000e+00> : vector<2x96xf32>
    %317 = tpu.matmul %314, %213, %cst_129 {dimension_numbers = #tpu.dot_dimension_numbers<[1], [0], [0], [1], [0, 0, 1, 1], [], []>} : vector<2x32xf32>, vector<32x96xf32>, vector<2x96xf32> -> vector<2x96xf32>
    %318 = vector.broadcast %214 : vector<1x96xf32> to vector<2x96xf32>
    %319 = arith.addf %317, %318 : vector<2x96xf32>
    %320 = vector.extract_strided_slice %316 {offsets = [0, 0], sizes = [2, 64], strides = [1, 1]} : vector<2x96xf32> to vector<2x64xf32>
    %321 = vector.extract_strided_slice %319 {offsets = [0, 0], sizes = [2, 64], strides = [1, 1]} : vector<2x96xf32> to vector<2x64xf32>
    %322 = arith.addf %320, %321 : vector<2x64xf32>
    %323 = arith.negf %322 : vector<2x64xf32>
    %324 = math.exp %323 : vector<2x64xf32>
    %cst_130 = arith.constant 1.000000e+00 : f32
    %325 = vector.broadcast %cst_130 : f32 to vector<2x64xf32>
    %326 = arith.addf %325, %324 : vector<2x64xf32>
    %327 = arith.divf %325, %326 : vector<2x64xf32>
    %328 = vector.extract_strided_slice %327 {offsets = [0, 0], sizes = [2, 32], strides = [1, 1]} : vector<2x64xf32> to vector<2x32xf32>
    %329 = vector.extract_strided_slice %327 {offsets = [0, 32], sizes = [2, 32], strides = [1, 1]} : vector<2x64xf32> to vector<2x32xf32>
    %330 = vector.extract_strided_slice %316 {offsets = [0, 64], sizes = [2, 32], strides = [1, 1]} : vector<2x96xf32> to vector<2x32xf32>
    %331 = vector.extract_strided_slice %319 {offsets = [0, 64], sizes = [2, 32], strides = [1, 1]} : vector<2x96xf32> to vector<2x32xf32>
    %332 = arith.mulf %328, %331 : vector<2x32xf32>
    %333 = arith.addf %330, %332 : vector<2x32xf32>
    %334 = math.tanh %333 : vector<2x32xf32>
    %cst_131 = arith.constant 1.000000e+00 : f32
    %335 = vector.broadcast %cst_131 : f32 to vector<2x32xf32>
    %336 = arith.subf %335, %329 : vector<2x32xf32>
    %337 = arith.mulf %336, %334 : vector<2x32xf32>
    %338 = arith.mulf %329, %314 : vector<2x32xf32>
    %339 = arith.addf %337, %338 : vector<2x32xf32>
    %c8 = arith.constant 8 : index
    %c0_132 = arith.constant 0 : index
    %340 = vector.load %arg22[%c8, %c0_132] : memref<16x32xf32, #tpu.memory_space<vmem>>, vector<2x32xf32>
    tpu.vector_store %arg22[%c8, %c0_132], %339 {strides = array<i32>} : memref<16x32xf32, #tpu.memory_space<vmem>>, vector<2x32xf32>,
    %341 = vector.extract_strided_slice %212 {offsets = [10, 0], sizes = [2, 96], strides = [1, 1]} : vector<16x96xf32> to vector<2x96xf32>
    %cst_133 = arith.constant dense<0.000000e+00> : vector<2x96xf32>
    %342 = tpu.matmul %339, %213, %cst_133 {dimension_numbers = #tpu.dot_dimension_numbers<[1], [0], [0], [1], [0, 0, 1, 1], [], []>} : vector<2x32xf32>, vector<32x96xf32>, vector<2x96xf32> -> vector<2x96xf32>
    %343 = vector.broadcast %214 : vector<1x96xf32> to vector<2x96xf32>
    %344 = arith.addf %342, %343 : vector<2x96xf32>
    %345 = vector.extract_strided_slice %341 {offsets = [0, 0], sizes = [2, 64], strides = [1, 1]} : vector<2x96xf32> to vector<2x64xf32>
    %346 = vector.extract_strided_slice %344 {offsets = [0, 0], sizes = [2, 64], strides = [1, 1]} : vector<2x96xf32> to vector<2x64xf32>
    %347 = arith.addf %345, %346 : vector<2x64xf32>
    %348 = arith.negf %347 : vector<2x64xf32>
    %349 = math.exp %348 : vector<2x64xf32>
    %cst_134 = arith.constant 1.000000e+00 : f32
    %350 = vector.broadcast %cst_134 : f32 to vector<2x64xf32>
    %351 = arith.addf %350, %349 : vector<2x64xf32>
    %352 = arith.divf %350, %351 : vector<2x64xf32>
    %353 = vector.extract_strided_slice %352 {offsets = [0, 0], sizes = [2, 32], strides = [1, 1]} : vector<2x64xf32> to vector<2x32xf32>
    %354 = vector.extract_strided_slice %352 {offsets = [0, 32], sizes = [2, 32], strides = [1, 1]} : vector<2x64xf32> to vector<2x32xf32>
    %355 = vector.extract_strided_slice %341 {offsets = [0, 64], sizes = [2, 32], strides = [1, 1]} : vector<2x96xf32> to vector<2x32xf32>
    %356 = vector.extract_strided_slice %344 {offsets = [0, 64], sizes = [2, 32], strides = [1, 1]} : vector<2x96xf32> to vector<2x32xf32>
    %357 = arith.mulf %353, %356 : vector<2x32xf32>
    %358 = arith.addf %355, %357 : vector<2x32xf32>
    %359 = math.tanh %358 : vector<2x32xf32>
    %cst_135 = arith.constant 1.000000e+00 : f32
    %360 = vector.broadcast %cst_135 : f32 to vector<2x32xf32>
    %361 = arith.subf %360, %354 : vector<2x32xf32>
    %362 = arith.mulf %361, %359 : vector<2x32xf32>
    %363 = arith.mulf %354, %339 : vector<2x32xf32>
    %364 = arith.addf %362, %363 : vector<2x32xf32>
    %c10 = arith.constant 10 : index
    %c0_136 = arith.constant 0 : index
    %365 = vector.load %arg22[%c10, %c0_136] : memref<16x32xf32, #tpu.memory_space<vmem>>, vector<2x32xf32>
    tpu.vector_store %arg22[%c10, %c0_136], %364 {strides = array<i32>} : memref<16x32xf32, #tpu.memory_space<vmem>>, vector<2x32xf32>,
    %366 = vector.extract_strided_slice %212 {offsets = [12, 0], sizes = [2, 96], strides = [1, 1]} : vector<16x96xf32> to vector<2x96xf32>
    %cst_137 = arith.constant dense<0.000000e+00> : vector<2x96xf32>
    %367 = tpu.matmul %364, %213, %cst_137 {dimension_numbers = #tpu.dot_dimension_numbers<[1], [0], [0], [1], [0, 0, 1, 1], [], []>} : vector<2x32xf32>, vector<32x96xf32>, vector<2x96xf32> -> vector<2x96xf32>
    %368 = vector.broadcast %214 : vector<1x96xf32> to vector<2x96xf32>
    %369 = arith.addf %367, %368 : vector<2x96xf32>
    %370 = vector.extract_strided_slice %366 {offsets = [0, 0], sizes = [2, 64], strides = [1, 1]} : vector<2x96xf32> to vector<2x64xf32>
    %371 = vector.extract_strided_slice %369 {offsets = [0, 0], sizes = [2, 64], strides = [1, 1]} : vector<2x96xf32> to vector<2x64xf32>
    %372 = arith.addf %370, %371 : vector<2x64xf32>
    %373 = arith.negf %372 : vector<2x64xf32>
    %374 = math.exp %373 : vector<2x64xf32>
    %cst_138 = arith.constant 1.000000e+00 : f32
    %375 = vector.broadcast %cst_138 : f32 to vector<2x64xf32>
    %376 = arith.addf %375, %374 : vector<2x64xf32>
    %377 = arith.divf %375, %376 : vector<2x64xf32>
    %378 = vector.extract_strided_slice %377 {offsets = [0, 0], sizes = [2, 32], strides = [1, 1]} : vector<2x64xf32> to vector<2x32xf32>
    %379 = vector.extract_strided_slice %377 {offsets = [0, 32], sizes = [2, 32], strides = [1, 1]} : vector<2x64xf32> to vector<2x32xf32>
    %380 = vector.extract_strided_slice %366 {offsets = [0, 64], sizes = [2, 32], strides = [1, 1]} : vector<2x96xf32> to vector<2x32xf32>
    %381 = vector.extract_strided_slice %369 {offsets = [0, 64], sizes = [2, 32], strides = [1, 1]} : vector<2x96xf32> to vector<2x32xf32>
    %382 = arith.mulf %378, %381 : vector<2x32xf32>
    %383 = arith.addf %380, %382 : vector<2x32xf32>
    %384 = math.tanh %383 : vector<2x32xf32>
    %cst_139 = arith.constant 1.000000e+00 : f32
    %385 = vector.broadcast %cst_139 : f32 to vector<2x32xf32>
    %386 = arith.subf %385, %379 : vector<2x32xf32>
    %387 = arith.mulf %386, %384 : vector<2x32xf32>
    %388 = arith.mulf %379, %364 : vector<2x32xf32>
    %389 = arith.addf %387, %388 : vector<2x32xf32>
    %c12 = arith.constant 12 : index
    %c0_140 = arith.constant 0 : index
    %390 = vector.load %arg22[%c12, %c0_140] : memref<16x32xf32, #tpu.memory_space<vmem>>, vector<2x32xf32>
    tpu.vector_store %arg22[%c12, %c0_140], %389 {strides = array<i32>} : memref<16x32xf32, #tpu.memory_space<vmem>>, vector<2x32xf32>,
    %391 = vector.extract_strided_slice %212 {offsets = [14, 0], sizes = [2, 96], strides = [1, 1]} : vector<16x96xf32> to vector<2x96xf32>
    %cst_141 = arith.constant dense<0.000000e+00> : vector<2x96xf32>
    %392 = tpu.matmul %389, %213, %cst_141 {dimension_numbers = #tpu.dot_dimension_numbers<[1], [0], [0], [1], [0, 0, 1, 1], [], []>} : vector<2x32xf32>, vector<32x96xf32>, vector<2x96xf32> -> vector<2x96xf32>
    %393 = vector.broadcast %214 : vector<1x96xf32> to vector<2x96xf32>
    %394 = arith.addf %392, %393 : vector<2x96xf32>
    %395 = vector.extract_strided_slice %391 {offsets = [0, 0], sizes = [2, 64], strides = [1, 1]} : vector<2x96xf32> to vector<2x64xf32>
    %396 = vector.extract_strided_slice %394 {offsets = [0, 0], sizes = [2, 64], strides = [1, 1]} : vector<2x96xf32> to vector<2x64xf32>
    %397 = arith.addf %395, %396 : vector<2x64xf32>
    %398 = arith.negf %397 : vector<2x64xf32>
    %399 = math.exp %398 : vector<2x64xf32>
    %cst_142 = arith.constant 1.000000e+00 : f32
    %400 = vector.broadcast %cst_142 : f32 to vector<2x64xf32>
    %401 = arith.addf %400, %399 : vector<2x64xf32>
    %402 = arith.divf %400, %401 : vector<2x64xf32>
    %403 = vector.extract_strided_slice %402 {offsets = [0, 0], sizes = [2, 32], strides = [1, 1]} : vector<2x64xf32> to vector<2x32xf32>
    %404 = vector.extract_strided_slice %402 {offsets = [0, 32], sizes = [2, 32], strides = [1, 1]} : vector<2x64xf32> to vector<2x32xf32>
    %405 = vector.extract_strided_slice %391 {offsets = [0, 64], sizes = [2, 32], strides = [1, 1]} : vector<2x96xf32> to vector<2x32xf32>
    %406 = vector.extract_strided_slice %394 {offsets = [0, 64], sizes = [2, 32], strides = [1, 1]} : vector<2x96xf32> to vector<2x32xf32>
    %407 = arith.mulf %403, %406 : vector<2x32xf32>
    %408 = arith.addf %405, %407 : vector<2x32xf32>
    %409 = math.tanh %408 : vector<2x32xf32>
    %cst_143 = arith.constant 1.000000e+00 : f32
    %410 = vector.broadcast %cst_143 : f32 to vector<2x32xf32>
    %411 = arith.subf %410, %404 : vector<2x32xf32>
    %412 = arith.mulf %411, %409 : vector<2x32xf32>
    %413 = arith.mulf %404, %389 : vector<2x32xf32>
    %414 = arith.addf %412, %413 : vector<2x32xf32>
    %c14 = arith.constant 14 : index
    %c0_144 = arith.constant 0 : index
    %415 = vector.load %arg22[%c14, %c0_144] : memref<16x32xf32, #tpu.memory_space<vmem>>, vector<2x32xf32>
    tpu.vector_store %arg22[%c14, %c0_144], %414 {strides = array<i32>} : memref<16x32xf32, #tpu.memory_space<vmem>>, vector<2x32xf32>,
    %c0_145 = arith.constant 0 : index
    %c0_146 = arith.constant 0 : index
    %416 = vector.load %arg22[%c0_145, %c0_146] : memref<16x32xf32, #tpu.memory_space<vmem>>, vector<16x32xf32>
    %c0_147 = arith.constant 0 : index
    %c0_148 = arith.constant 0 : index
    %417 = vector.load %arg16[%c0_147, %c0_148] : memref<128x32xf32, #tpu.memory_space<vmem>>, vector<32x32xf32>
    %cst_149 = arith.constant dense<0.000000e+00> : vector<16x32xf32>
    %418 = tpu.matmul %67, %417, %cst_149 {dimension_numbers = #tpu.dot_dimension_numbers<[1], [0], [0], [1], [0, 0, 1, 1], [], []>} : vector<16x32xf32>, vector<32x32xf32>, vector<16x32xf32> -> vector<16x32xf32>
    %c32_150 = arith.constant 32 : index
    %c0_151 = arith.constant 0 : index
    %419 = vector.load %arg16[%c32_150, %c0_151] : memref<128x32xf32, #tpu.memory_space<vmem>>, vector<32x32xf32>
    %cst_152 = arith.constant dense<0.000000e+00> : vector<16x32xf32>
    %420 = tpu.matmul %135, %419, %cst_152 {dimension_numbers = #tpu.dot_dimension_numbers<[1], [0], [0], [1], [0, 0, 1, 1], [], []>} : vector<16x32xf32>, vector<32x32xf32>, vector<16x32xf32> -> vector<16x32xf32>
    %421 = arith.addf %418, %420 : vector<16x32xf32>
    %c64_153 = arith.constant 64 : index
    %c0_154 = arith.constant 0 : index
    %422 = vector.load %arg16[%c64_153, %c0_154] : memref<128x32xf32, #tpu.memory_space<vmem>>, vector<32x32xf32>
    %cst_155 = arith.constant dense<0.000000e+00> : vector<16x32xf32>
    %423 = tpu.matmul %201, %422, %cst_155 {dimension_numbers = #tpu.dot_dimension_numbers<[1], [0], [0], [1], [0, 0, 1, 1], [], []>} : vector<16x32xf32>, vector<32x32xf32>, vector<16x32xf32> -> vector<16x32xf32>
    %424 = arith.addf %421, %423 : vector<16x32xf32>
    %c96 = arith.constant 96 : index
    %c0_156 = arith.constant 0 : index
    %425 = vector.load %arg16[%c96, %c0_156] : memref<128x32xf32, #tpu.memory_space<vmem>>, vector<32x32xf32>
    %cst_157 = arith.constant dense<0.000000e+00> : vector<16x32xf32>
    %426 = tpu.matmul %416, %425, %cst_157 {dimension_numbers = #tpu.dot_dimension_numbers<[1], [0], [0], [1], [0, 0, 1, 1], [], []>} : vector<16x32xf32>, vector<32x32xf32>, vector<16x32xf32> -> vector<16x32xf32>
    %427 = arith.addf %424, %426 : vector<16x32xf32>
    %c0_158 = arith.constant 0 : index
    %c0_159 = arith.constant 0 : index
    %428 = vector.load %arg18[%c0_158, %c0_159] : memref<6x32xf32, #tpu.memory_space<vmem>>, vector<1x32xf32>
    %429 = vector.broadcast %428 : vector<1x32xf32> to vector<16x32xf32>
    %430 = arith.addf %427, %429 : vector<16x32xf32>
    %c1_160 = arith.constant 1 : index
    %c0_161 = arith.constant 0 : index
    %431 = vector.load %arg18[%c1_160, %c0_161] : memref<6x32xf32, #tpu.memory_space<vmem>>, vector<1x32xf32>
    %c2_162 = arith.constant 2 : index
    %c0_163 = arith.constant 0 : index
    %432 = vector.load %arg18[%c2_162, %c0_163] : memref<6x32xf32, #tpu.memory_space<vmem>>, vector<1x32xf32>
    %cst_164 = arith.constant dense<0.000000e+00> : vector<16xf32>
    %433 = vector.multi_reduction <add>, %430, %cst_164 [1] : vector<16x32xf32> to vector<16xf32>
    %434 = vector.shape_cast %433 : vector<16xf32> to vector<16x1xf32>
    %cst_165 = arith.constant 3.200000e+01 : f32
    %435 = vector.broadcast %cst_165 : f32 to vector<16x1xf32>
    %436 = arith.divf %434, %435 : vector<16x1xf32>
    %437 = vector.broadcast %436 : vector<16x1xf32> to vector<16x32xf32>
    %438 = arith.subf %430, %437 : vector<16x32xf32>
    %439 = arith.mulf %438, %438 : vector<16x32xf32>
    %cst_166 = arith.constant dense<0.000000e+00> : vector<16xf32>
    %440 = vector.multi_reduction <add>, %439, %cst_166 [1] : vector<16x32xf32> to vector<16xf32>
    %441 = vector.shape_cast %440 : vector<16xf32> to vector<16x1xf32>
    %cst_167 = arith.constant 3.200000e+01 : f32
    %442 = vector.broadcast %cst_167 : f32 to vector<16x1xf32>
    %443 = arith.divf %441, %442 : vector<16x1xf32>
    %cst_168 = arith.constant 9.99999974E-6 : f32
    %444 = vector.broadcast %cst_168 : f32 to vector<16x1xf32>
    %445 = arith.addf %443, %444 : vector<16x1xf32>
    %446 = math.rsqrt %445 : vector<16x1xf32>
    %447 = vector.broadcast %446 : vector<16x1xf32> to vector<16x32xf32>
    %448 = arith.mulf %438, %447 : vector<16x32xf32>
    %449 = vector.broadcast %431 : vector<1x32xf32> to vector<16x32xf32>
    %450 = arith.mulf %448, %449 : vector<16x32xf32>
    %451 = vector.broadcast %432 : vector<1x32xf32> to vector<16x32xf32>
    %452 = arith.addf %450, %451 : vector<16x32xf32>
    %cst_169 = arith.constant 0.000000e+00 : f32
    %453 = vector.broadcast %cst_169 : f32 to vector<16x32xf32>
    %454 = arith.cmpf oge, %452, %453 : vector<16x32xf32>
    %cst_170 = arith.constant 0.00999999977 : f32
    %455 = vector.broadcast %cst_170 : f32 to vector<16x32xf32>
    %456 = arith.mulf %455, %452 : vector<16x32xf32>
    %457 = arith.select %454, %452, %456 : vector<16x32xi1>, vector<16x32xf32>
    %c0_171 = arith.constant 0 : index
    %c0_172 = arith.constant 0 : index
    %c0_173 = arith.constant 0 : index
    %458 = vector.load %arg17[%c0_171, %c0_172, %c0_173] : memref<1x32x32xf32, #tpu.memory_space<vmem>>, vector<1x32x32xf32>
    %459 = vector.shape_cast %458 : vector<1x32x32xf32> to vector<32x32xf32>
    %cst_174 = arith.constant dense<0.000000e+00> : vector<16x32xf32>
    %460 = tpu.matmul %457, %459, %cst_174 {dimension_numbers = #tpu.dot_dimension_numbers<[1], [0], [0], [1], [0, 0, 1, 1], [], []>} : vector<16x32xf32>, vector<32x32xf32>, vector<16x32xf32> -> vector<16x32xf32>
    %c3_175 = arith.constant 3 : index
    %c0_176 = arith.constant 0 : index
    %461 = vector.load %arg18[%c3_175, %c0_176] : memref<6x32xf32, #tpu.memory_space<vmem>>, vector<1x32xf32>
    %462 = vector.broadcast %461 : vector<1x32xf32> to vector<16x32xf32>
    %463 = arith.addf %460, %462 : vector<16x32xf32>
    %c4_177 = arith.constant 4 : index
    %c0_178 = arith.constant 0 : index
    %464 = vector.load %arg18[%c4_177, %c0_178] : memref<6x32xf32, #tpu.memory_space<vmem>>, vector<1x32xf32>
    %c5_179 = arith.constant 5 : index
    %c0_180 = arith.constant 0 : index
    %465 = vector.load %arg18[%c5_179, %c0_180] : memref<6x32xf32, #tpu.memory_space<vmem>>, vector<1x32xf32>
    %cst_181 = arith.constant dense<0.000000e+00> : vector<16xf32>
    %466 = vector.multi_reduction <add>, %463, %cst_181 [1] : vector<16x32xf32> to vector<16xf32>
    %467 = vector.shape_cast %466 : vector<16xf32> to vector<16x1xf32>
    %cst_182 = arith.constant 3.200000e+01 : f32
    %468 = vector.broadcast %cst_182 : f32 to vector<16x1xf32>
    %469 = arith.divf %467, %468 : vector<16x1xf32>
    %470 = vector.broadcast %469 : vector<16x1xf32> to vector<16x32xf32>
    %471 = arith.subf %463, %470 : vector<16x32xf32>
    %472 = arith.mulf %471, %471 : vector<16x32xf32>
    %cst_183 = arith.constant dense<0.000000e+00> : vector<16xf32>
    %473 = vector.multi_reduction <add>, %472, %cst_183 [1] : vector<16x32xf32> to vector<16xf32>
    %474 = vector.shape_cast %473 : vector<16xf32> to vector<16x1xf32>
    %cst_184 = arith.constant 3.200000e+01 : f32
    %475 = vector.broadcast %cst_184 : f32 to vector<16x1xf32>
    %476 = arith.divf %474, %475 : vector<16x1xf32>
    %cst_185 = arith.constant 9.99999974E-6 : f32
    %477 = vector.broadcast %cst_185 : f32 to vector<16x1xf32>
    %478 = arith.addf %476, %477 : vector<16x1xf32>
    %479 = math.rsqrt %478 : vector<16x1xf32>
    %480 = vector.broadcast %479 : vector<16x1xf32> to vector<16x32xf32>
    %481 = arith.mulf %471, %480 : vector<16x32xf32>
    %482 = vector.broadcast %464 : vector<1x32xf32> to vector<16x32xf32>
    %483 = arith.mulf %481, %482 : vector<16x32xf32>
    %484 = vector.broadcast %465 : vector<1x32xf32> to vector<16x32xf32>
    %485 = arith.addf %483, %484 : vector<16x32xf32>
    %cst_186 = arith.constant 0.000000e+00 : f32
    %486 = vector.broadcast %cst_186 : f32 to vector<16x32xf32>
    %487 = arith.cmpf oge, %485, %486 : vector<16x32xf32>
    %cst_187 = arith.constant 0.00999999977 : f32
    %488 = vector.broadcast %cst_187 : f32 to vector<16x32xf32>
    %489 = arith.mulf %488, %485 : vector<16x32xf32>
    %490 = arith.select %487, %485, %489 : vector<16x32xi1>, vector<16x32xf32>
    %c0_188 = arith.constant 0 : index
    %c0_189 = arith.constant 0 : index
    %491 = vector.load %arg19[%c0_188, %c0_189] : memref<32x13xf32, #tpu.memory_space<vmem>>, vector<32x13xf32>
    %cst_190 = arith.constant dense<0.000000e+00> : vector<16x13xf32>
    %492 = tpu.matmul %490, %491, %cst_190 {dimension_numbers = #tpu.dot_dimension_numbers<[1], [0], [0], [1], [0, 0, 1, 1], [], []>} : vector<16x32xf32>, vector<32x13xf32>, vector<16x13xf32> -> vector<16x13xf32>
    %c0_191 = arith.constant 0 : index
    %c0_192 = arith.constant 0 : index
    %493 = vector.load %arg20[%c0_191, %c0_192] : memref<1x13xf32, #tpu.memory_space<vmem>>, vector<1x13xf32>
    %494 = vector.broadcast %493 : vector<1x13xf32> to vector<16x13xf32>
    %495 = arith.addf %492, %494 : vector<16x13xf32>
    %c0_193 = arith.constant 0 : index
    %c0_194 = arith.constant 0 : index
    %496 = vector.load %arg21[%c0_193, %c0_194] : memref<16x13xf32, #tpu.memory_space<vmem>>, vector<16x13xf32>
    tpu.vector_store %arg21[%c0_193, %c0_194], %495 {strides = array<i32>} : memref<16x13xf32, #tpu.memory_space<vmem>>, vector<16x13xf32>,
    return
  }
  func.func @transform_0(%arg0: i32) -> (i32, i32) {
    %c0_i32 = arith.constant 0 : i32
    %c0_i32_0 = arith.constant 0 : i32
    %c0_i32_1 = arith.constant 0 : i32
    return %c0_i32, %c0_i32_0 : i32, i32
  }
  func.func @transform_1(%arg0: i32) -> (i32, i32) {
    %c0_i32 = arith.constant 0 : i32
    %c0_i32_0 = arith.constant 0 : i32
    %c0_i32_1 = arith.constant 0 : i32
    return %c0_i32, %c0_i32_0 : i32, i32
  }
  func.func @transform_2(%arg0: i32) -> (i32, i32) {
    %c0_i32 = arith.constant 0 : i32
    %c0_i32_0 = arith.constant 0 : i32
    %c0_i32_1 = arith.constant 0 : i32
    return %c0_i32, %c0_i32_0 : i32, i32
  }
  func.func @transform_3(%arg0: i32) -> (i32, i32) {
    %c0_i32 = arith.constant 0 : i32
    %c0_i32_0 = arith.constant 0 : i32
    %c0_i32_1 = arith.constant 0 : i32
    return %c0_i32, %c0_i32_0 : i32, i32
  }
  func.func @transform_4(%arg0: i32) -> (i32, i32, i32) {
    %c0_i32 = arith.constant 0 : i32
    %c0_i32_0 = arith.constant 0 : i32
    %c0_i32_1 = arith.constant 0 : i32
    %c0_i32_2 = arith.constant 0 : i32
    return %c0_i32, %c0_i32_0, %c0_i32_1 : i32, i32, i32
  }
  func.func @transform_5(%arg0: i32) -> (i32, i32) {
    %c0_i32 = arith.constant 0 : i32
    %c0_i32_0 = arith.constant 0 : i32
    %c0_i32_1 = arith.constant 0 : i32
    return %c0_i32, %c0_i32_0 : i32, i32
  }
  func.func @transform_6(%arg0: i32) -> (i32, i32) {
    %c0_i32 = arith.constant 0 : i32
    %c0_i32_0 = arith.constant 0 : i32
    %c0_i32_1 = arith.constant 0 : i32
    return %c0_i32, %c0_i32_0 : i32, i32
  }
  func.func @transform_7(%arg0: i32) -> (i32, i32, i32) {
    %c0_i32 = arith.constant 0 : i32
    %c0_i32_0 = arith.constant 0 : i32
    %c0_i32_1 = arith.constant 0 : i32
    %c0_i32_2 = arith.constant 0 : i32
    return %c0_i32, %c0_i32_0, %c0_i32_1 : i32, i32, i32
  }
  func.func @transform_8(%arg0: i32) -> (i32, i32) {
    %c0_i32 = arith.constant 0 : i32
    %c0_i32_0 = arith.constant 0 : i32
    %c0_i32_1 = arith.constant 0 : i32
    return %c0_i32, %c0_i32_0 : i32, i32
  }
  func.func @transform_9(%arg0: i32) -> (i32, i32) {
    %c0_i32 = arith.constant 0 : i32
    %c0_i32_0 = arith.constant 0 : i32
    %c0_i32_1 = arith.constant 0 : i32
    return %c0_i32, %c0_i32_0 : i32, i32
  }
  func.func @transform_10(%arg0: i32) -> (i32, i32, i32) {
    %c0_i32 = arith.constant 0 : i32
    %c0_i32_0 = arith.constant 0 : i32
    %c0_i32_1 = arith.constant 0 : i32
    %c0_i32_2 = arith.constant 0 : i32
    return %c0_i32, %c0_i32_0, %c0_i32_1 : i32, i32, i32
  }
  func.func @transform_11(%arg0: i32) -> (i32, i32) {
    %c0_i32 = arith.constant 0 : i32
    %c0_i32_0 = arith.constant 0 : i32
    %c0_i32_1 = arith.constant 0 : i32
    return %c0_i32, %c0_i32_0 : i32, i32
  }
  func.func @transform_12(%arg0: i32) -> (i32, i32) {
    %c0_i32 = arith.constant 0 : i32
    %c0_i32_0 = arith.constant 0 : i32
    %c0_i32_1 = arith.constant 0 : i32
    return %c0_i32, %c0_i32_0 : i32, i32
  }
  func.func @transform_13(%arg0: i32) -> (i32, i32) {
    %c0_i32 = arith.constant 0 : i32
    %c0_i32_0 = arith.constant 0 : i32
    %c0_i32_1 = arith.constant 0 : i32
    return %c0_i32, %c0_i32_0 : i32, i32
  }
  func.func @transform_14(%arg0: i32) -> (i32, i32) {
    %c0_i32 = arith.constant 0 : i32
    %c0_i32_0 = arith.constant 0 : i32
    %c0_i32_1 = arith.constant 0 : i32
    return %c0_i32, %c0_i32_0 : i32, i32
  }
  func.func @transform_15(%arg0: i32) -> (i32, i32) {
    %c0_i32 = arith.constant 0 : i32
    %c0_i32_0 = arith.constant 0 : i32
    %c0_i32_1 = arith.constant 0 : i32
    return %c0_i32, %c0_i32_0 : i32, i32
  }
  func.func @transform_16(%arg0: i32) -> (i32, i32, i32) {
    %c0_i32 = arith.constant 0 : i32
    %c0_i32_0 = arith.constant 0 : i32
    %c0_i32_1 = arith.constant 0 : i32
    %c0_i32_2 = arith.constant 0 : i32
    return %c0_i32, %c0_i32_0, %c0_i32_1 : i32, i32, i32
  }
  func.func @transform_17(%arg0: i32) -> (i32, i32) {
    %c0_i32 = arith.constant 0 : i32
    %c0_i32_0 = arith.constant 0 : i32
    %c0_i32_1 = arith.constant 0 : i32
    return %c0_i32, %c0_i32_0 : i32, i32
  }
  func.func @transform_18(%arg0: i32) -> (i32, i32) {
    %c0_i32 = arith.constant 0 : i32
    %c0_i32_0 = arith.constant 0 : i32
    %c0_i32_1 = arith.constant 0 : i32
    return %c0_i32, %c0_i32_0 : i32, i32
  }
  func.func @transform_19(%arg0: i32) -> (i32, i32) {
    %c0_i32 = arith.constant 0 : i32
    %c0_i32_0 = arith.constant 0 : i32
    %c0_i32_1 = arith.constant 0 : i32
    return %c0_i32, %c0_i32_0 : i32, i32
  }
  func.func @transform_20(%arg0: i32) -> (i32, i32) {
    %c0_i32 = arith.constant 0 : i32
    %c0_i32_0 = arith.constant 0 : i32
    %c0_i32_1 = arith.constant 0 : i32
    return %c0_i32, %c0_i32_0 : i32, i32
  }
}

</mosaic_0001>

<llo_original>
// kernel: autoencoder_forward.2
$region0: #{autoencoder_forward.2}
  #allocation0 [shape = 'u32[]', space=smem, size = 0x4, offset = 0x4, fixed_abs, tag = 'smem constant byte address 0x4 - core index']
  #allocation1 [shape = 'u32[144,128]{1,0:T(1,128)}', space=vmem, size = 0x12000, scoped, tag = 'internal scratch']
  #allocation2 [shape = 'f32[16,32]{1,0:T(8,128)}', space=vmem, size = 0x2000, scoped, tag = 'scratch operand']
  %s0 = inlined_call_operand.vmem [shape: f32[16,64], index: 0, kind: input, shape index: {}]
  %s1 = inlined_call_operand.vmem [shape: f32[64,64], index: 1, kind: input, shape index: {}]
  %s2 = inlined_call_operand.vmem [shape: f32[32,16], index: 2, kind: input, shape index: {}]
  %s3 = inlined_call_operand.vmem [shape: f32[16,8], index: 3, kind: input, shape index: {}]
  %s4 = inlined_call_operand.vmem [shape: f32[2,8], index: 4, kind: input, shape index: {}]
  %s5 = inlined_call_operand.vmem [shape: f32[16,16], index: 5, kind: input, shape index: {}]
  %s6 = inlined_call_operand.vmem [shape: f32[8,96], index: 6, kind: input, shape index: {}]
  %s7 = inlined_call_operand.vmem [shape: f32[32,96], index: 7, kind: input, shape index: {}]
  %s8 = inlined_call_operand.vmem [shape: f32[2,96], index: 8, kind: input, shape index: {}]
  %s9 = inlined_call_operand.vmem [shape: f32[32,16], index: 9, kind: input, shape index: {}]
  %s10 = inlined_call_operand.vmem [shape: f32[1,16], index: 10, kind: input, shape index: {}]
  %s11 = inlined_call_operand.vmem [shape: f32[16,16], index: 11, kind: output, shape index: {}]
  %s12 = sld [smem:[#allocation0]]
  $region54: #{autoencoder_forward.2} parent=0
    _
  %s14 = ssub.s32 1, %s12
  %s15 = scalar_select 0, %s14, %s12
  // Predicated region
  $region2: #{autoencoder_forward.2} parent=0 // pred_check
    _
  $region3: #{autoencoder_forward.2} parent=0 // pred_check_branch
    %17 = sbr.rel (0) target = $region5
  $region4: #{autoencoder_forward.2} parent=0 // pred_region
    _
  $region5: #{autoencoder_forward.2} parent=0 // pred_fallthru
    _
  // Predicated region
  $region6: #{autoencoder_forward.2} parent=0 // pred_check
    _
  $region7: #{autoencoder_forward.2} parent=0 // pred_check_branch
    %19 = sbr.rel (0) target = $region9
  $region8: #{autoencoder_forward.2} parent=0 // pred_region
    _
  $region9: #{autoencoder_forward.2} parent=0 // pred_fallthru
    _
  // Predicated region
  $region10: #{autoencoder_forward.2} parent=0 // pred_check
    _
  $region11: #{autoencoder_forward.2} parent=0 // pred_check_branch
    %21 = sbr.rel (0) target = $region13
  $region12: #{autoencoder_forward.2} parent=0 // pred_region
    _
  $region13: #{autoencoder_forward.2} parent=0 // pred_fallthru
    _
  // Predicated region
  $region14: #{autoencoder_forward.2} parent=0 // pred_check
    _
  $region15: #{autoencoder_forward.2} parent=0 // pred_check_branch
    %23 = sbr.rel (0) target = $region17
  $region16: #{autoencoder_forward.2} parent=0 // pred_region
    _
  $region17: #{autoencoder_forward.2} parent=0 // pred_fallthru
    _
  // Predicated region
  $region18: #{autoencoder_forward.2} parent=0 // pred_check
    _
  $region19: #{autoencoder_forward.2} parent=0 // pred_check_branch
    %25 = sbr.rel (0) target = $region21
  $region20: #{autoencoder_forward.2} parent=0 // pred_region
    _
  $region21: #{autoencoder_forward.2} parent=0 // pred_fallthru
    _
  // Predicated region
  $region22: #{autoencoder_forward.2} parent=0 // pred_check
    _
  $region23: #{autoencoder_forward.2} parent=0 // pred_check_branch
    %27 = sbr.rel (0) target = $region25
  $region24: #{autoencoder_forward.2} parent=0 // pred_region
    _
  $region25: #{autoencoder_forward.2} parent=0 // pred_fallthru
    _
  // Predicated region
  $region26: #{autoencoder_forward.2} parent=0 // pred_check
    _
  $region27: #{autoencoder_forward.2} parent=0 // pred_check_branch
    %29 = sbr.rel (0) target = $region29
  $region28: #{autoencoder_forward.2} parent=0 // pred_region
    _
  $region29: #{autoencoder_forward.2} parent=0 // pred_fallthru
    _
  // Predicated region
  $region30: #{autoencoder_forward.2} parent=0 // pred_check
    _
  $region31: #{autoencoder_forward.2} parent=0 // pred_check_branch
    %31 = sbr.rel (0) target = $region33
  $region32: #{autoencoder_forward.2} parent=0 // pred_region
    _
  $region33: #{autoencoder_forward.2} parent=0 // pred_fallthru
    _
  // Predicated region
  $region34: #{autoencoder_forward.2} parent=0 // pred_check
    _
  $region35: #{autoencoder_forward.2} parent=0 // pred_check_branch
    %33 = sbr.rel (0) target = $region37
  $region36: #{autoencoder_forward.2} parent=0 // pred_region
    _
  $region37: #{autoencoder_forward.2} parent=0 // pred_fallthru
    _
  // Predicated region
  $region38: #{autoencoder_forward.2} parent=0 // pred_check
    _
  $region39: #{autoencoder_forward.2} parent=0 // pred_check_branch
    %35 = sbr.rel (0) target = $region41
  $region40: #{autoencoder_forward.2} parent=0 // pred_region
    _
  $region41: #{autoencoder_forward.2} parent=0 // pred_fallthru
    _
  // Predicated region
  $region42: #{autoencoder_forward.2} parent=0 // pred_check
    _
  $region43: #{autoencoder_forward.2} parent=0 // pred_check_branch
    %37 = sbr.rel (0) target = $region45
  $region44: #{autoencoder_forward.2} parent=0 // pred_region
    _
  $region45: #{autoencoder_forward.2} parent=0 // pred_fallthru
    _
  %v38 = vld [vmem:[%s0] sm:$0xff]
  %v39 = vld [vmem:[%s0 + $0x8] sm:$0xff]
  %v40 = vld [vmem:[%s1] sm:$0xff]
  %v41 = vld [vmem:[%s1 + $0x8] sm:$0xff]
  %v42 = vld [vmem:[%s1 + $0x10] sm:$0xff]
  %v43 = vld [vmem:[%s1 + $0x18] sm:$0xff]
  %v44 = vld [vmem:[%s1 + $0x20] sm:$0xff]
  %v45 = vld [vmem:[%s1 + $0x28] sm:$0xff]
  %v46 = vld [vmem:[%s1 + $0x30] sm:$0xff]
  %v47 = vld [vmem:[%s1 + $0x38] sm:$0xff]
  %vm48 = vcmask 523264
  %v50 = vsel %vm48, %v38, 0
  %v53 = vsel %vm48, %v39, 0
  %55 = vmatprep.subr.mxu0 0.0
  %56 = vmatpush1.msra.mxu0 %v40
  %57 = vmatprep.subr.mxu0 0.0
  %58 = vmatpush1.msra.mxu0 %v41
  %59 = vmatprep.subr.mxu0 0.0
  %60 = vmatpush1.msra.mxu0 %v42
  %61 = vmatprep.subr.mxu0 0.0
  %62 = vmatpush1.msra.mxu0 %v43
  %63 = vmatprep.subr.mxu0 0.0
  %64 = vmatpush1.msra.mxu0 %v44
  %65 = vmatprep.subr.mxu0 0.0
  %66 = vmatpush1.msra.mxu0 %v45
  %67 = vmatprep.subr.mxu0 0.0
  %68 = vmatpush1.msra.mxu0 %v46
  %69 = vmatprep.subr.mxu0 0.0
  %70 = vmatpush1.msra.mxu0 %v47
  %71 = vmatprep.subr.mxu0 0.0
  %72 = vmatpush1.msra.mxu0 0.0
  %73 = vmatprep.subr.mxu0 0.0
  %74 = vmatpush1.msra.mxu0 0.0
  %75 = vmatprep.subr.mxu0 0.0
  %76 = vmatpush1.msra.mxu0 0.0
  %77 = vmatprep.subr.mxu0 0.0
  %78 = vmatpush1.msra.mxu0 0.0
  %79 = vmatprep.subr.mxu0 0.0
  %80 = vmatpush1.msra.mxu0 0.0
  %81 = vmatprep.subr.mxu0 0.0
  %82 = vmatpush1.msra.mxu0 0.0
  %83 = vmatprep.subr.mxu0 0.0
  %84 = vmatpush1.msra.mxu0 0.0
  %85 = vmatprep.subr.mxu0 0.0
  %86 = vmatpush1.msra.mxu0 0.0
  %87 = vmatprep.subr.mxu0 0.0
  %88 = vmatpush1.msra.mxu0 0.0
  %89 = vmatprep.subr.mxu0 0.0
  %90 = vmatpush1.msra.mxu0 0.0
  %91 = vmatprep.subr.mxu0 0.0
  %92 = vmatpush1.msra.mxu0 0.0
  %93 = vmatprep.subr.mxu0 0.0
  %94 = vmatpush1.msra.mxu0 0.0
  %95 = vmatprep.subr.mxu0 0.0
  %96 = vmatpush1.msra.mxu0 0.0
  %97 = vmatprep.subr.mxu0 0.0
  %98 = vmatpush1.msra.mxu0 0.0
  %99 = vmatprep.subr.mxu0 0.0
  %100 = vmatpush1.msra.mxu0 0.0
  %101 = vmatprep.subr.mxu0 0.0
  %102 = vmatpush1.msra.mxu0 0.0
  %103 = vmatprep.subr.mxu0 0.0
  %104 = vmatpush1.msra.mxu0 0.0
  %105 = vmatprep.subr.mxu0 0.0
  %106 = vmatpush1.msra.mxu0 0.0
  %107 = vmatprep.subr.mxu0 0.0
  %108 = vmatpush1.msra.mxu0 0.0
  %109 = vmatprep.subr.mxu0 0.0
  %110 = vmatpush1.msra.mxu0 0.0
  %111 = vmatprep.subr.mxu0 0.0
  %112 = vmatpush1.msra.mxu0 0.0
  %113 = vmatprep.subr.mxu0 0.0
  %114 = vmatpush1.msra.mxu0 0.0
  %115 = vmatprep.subr.mxu0 0.0
  %116 = vmatpush1.msra.mxu0 0.0
  %117 = vmatprep.subr.mxu0 0.0
  %118 = vmatpush1.msra.mxu0 0.0
  %119 = vmatprep.mubr.f32.mxu0 0.0
  %120 = vmatmul.mubr.f32.gmra.mrb[0].mxu0 %v50
  %v121 = vpop.f32.mrb[0].mxu0
  %v122 = vadd.f32 0.0, %v121
  %v123 = vpop.f32.mrb[0].mxu0
  %124 = vmatprep.mubr.f32.mxu0 0.0
  %125 = vmatmul.mubr.f32.gmra.mrb[0].mxu0 %v53
  %v126 = vpop.f32.mrb[0].mxu0
  %v127 = vadd.f32 0.0, %v126
  %v128 = vpop.f32.mrb[0].mxu0
  %129 = vdwg.mxu0
  %v130 = vmul.f32 %v122, %v122
  %v131 = vmul.f32 %v127, %v127
  %134 = vrot.lane.b32.xlu0 %v130, 96
  %v135 = vpop.permute.xlu0 %134
  %136 = vrot.lane.b32.xlu0 %v131, 96
  %v137 = vpop.permute.xlu0 %136
  %v140 = vadd.f32 %v130, %v135
  %v141 = vadd.f32 %v131, %v137
  %v142 = vld [vmem:[%s2] sm:$0xff]
  %v143 = vld [vmem:[%s2 + $0x8] sm:$0xff]
  %v144 = vld [vmem:[%s2 + $0x10] sm:$0xff]
  %v145 = vld [vmem:[%s2 + $0x18] sm:$0xff]
  %vm146 = vcmask 261120
  %v148 = vsel %vm146, %v140, 0
  %v151 = vsel %vm146, %v141, 0
  %153 = vmatprep.subr.mxu0 0.0
  %154 = vmatpush1.msra.mxu0 %v142
  %155 = vmatprep.subr.mxu0 0.0
  %156 = vmatpush1.msra.mxu0 %v143
  %157 = vmatprep.subr.mxu0 0.0
  %158 = vmatpush1.msra.mxu0 %v144
  %159 = vmatprep.subr.mxu0 0.0
  %160 = vmatpush1.msra.mxu0 %v145
  %161 = vmatprep.subr.mxu0 0.0
  %162 = vmatpush1.msra.mxu0 0.0
  %163 = vmatprep.subr.mxu0 0.0
  %164 = vmatpush1.msra.mxu0 0.0
  %165 = vmatprep.subr.mxu0 0.0
  %166 = vmatpush1.msra.mxu0 0.0
  %167 = vmatprep.subr.mxu0 0.0
  %168 = vmatpush1.msra.mxu0 0.0
  %169 = vmatprep.subr.mxu0 0.0
  %170 = vmatpush1.msra.mxu0 0.0
  %171 = vmatprep.subr.mxu0 0.0
  %172 = vmatpush1.msra.mxu0 0.0
  %173 = vmatprep.subr.mxu0 0.0
  %174 = vmatpush1.msra.mxu0 0.0
  %175 = vmatprep.subr.mxu0 0.0
  %176 = vmatpush1.msra.mxu0 0.0
  %177 = vmatprep.subr.mxu0 0.0
  %178 = vmatpush1.msra.mxu0 0.0
  %179 = vmatprep.subr.mxu0 0.0
  %180 = vmatpush1.msra.mxu0 0.0
  %181 = vmatprep.subr.mxu0 0.0
  %182 = vmatpush1.msra.mxu0 0.0
  %183 = vmatprep.subr.mxu0 0.0
  %184 = vmatpush1.msra.mxu0 0.0
  %185 = vmatprep.subr.mxu0 0.0
  %186 = vmatpush1.msra.mxu0 0.0
  %187 = vmatprep.subr.mxu0 0.0
  %188 = vmatpush1.msra.mxu0 0.0
  %189 = vmatprep.subr.mxu0 0.0
  %190 = vmatpush1.msra.mxu0 0.0
  %191 = vmatprep.subr.mxu0 0.0
  %192 = vmatpush1.msra.mxu0 0.0
  %193 = vmatprep.subr.mxu0 0.0
  %194 = vmatpush1.msra.mxu0 0.0
  %195 = vmatprep.subr.mxu0 0.0
  %196 = vmatpush1.msra.mxu0 0.0
  %197 = vmatprep.subr.mxu0 0.0
  %198 = vmatpush1.msra.mxu0 0.0
  %199 = vmatprep.subr.mxu0 0.0
  %200 = vmatpush1.msra.mxu0 0.0
  %201 = vmatprep.subr.mxu0 0.0
  %202 = vmatpush1.msra.mxu0 0.0
  %203 = vmatprep.subr.mxu0 0.0
  %204 = vmatpush1.msra.mxu0 0.0
  %205 = vmatprep.subr.mxu0 0.0
  %206 = vmatpush1.msra.mxu0 0.0
  %207 = vmatprep.subr.mxu0 0.0
  %208 = vmatpush1.msra.mxu0 0.0
  %209 = vmatprep.subr.mxu0 0.0
  %210 = vmatpush1.msra.mxu0 0.0
  %211 = vmatprep.subr.mxu0 0.0
  %212 = vmatpush1.msra.mxu0 0.0
  %213 = vmatprep.subr.mxu0 0.0
  %214 = vmatpush1.msra.mxu0 0.0
  %215 = vmatprep.subr.mxu0 0.0
  %216 = vmatpush1.msra.mxu0 0.0
  %217 = vmatprep.mubr.f32.mxu0 0.0
  %218 = vmatmul.mubr.f32.gmra.mrb[0].mxu0 %v148
  %v219 = vpop.f32.mrb[0].mxu0
  %v220 = vadd.f32 1e-06, %v219
  %v221 = vpop.f32.mrb[0].mxu0
  %222 = vmatprep.mubr.f32.mxu0 0.0
  %223 = vmatmul.mubr.f32.gmra.mrb[0].mxu0 %v151
  %v224 = vpop.f32.mrb[0].mxu0
  %v225 = vadd.f32 1e-06, %v224
  %v226 = vpop.f32.mrb[0].mxu0
  %227 = vdwg.mxu0
  %v228 = vlog2.pop %v220
  %v229 = vmul.f32 %v228, 0.6931472
  %v230 = vlog2.pop %v225
  %v231 = vmul.f32 %v230, 0.6931472
  %v232 = vld [vmem:[%s3] sm:$0xff]
  %v233 = vld [vmem:[%s3 + $0x8] sm:$0xff]
  %vm234 = vcmask 130048
  %v236 = vsel %vm234, %v229, 0
  %v239 = vsel %vm234, %v231, 0
  %241 = vmatprep.subr.mxu0 0.0
  %242 = vmatpush1.msra.mxu0 %v232
  %243 = vmatprep.subr.mxu0 0.0
  %244 = vmatpush1.msra.mxu0 %v233
  %245 = vmatprep.subr.mxu0 0.0
  %246 = vmatpush1.msra.mxu0 0.0
  %247 = vmatprep.subr.mxu0 0.0
  %248 = vmatpush1.msra.mxu0 0.0
  %249 = vmatprep.subr.mxu0 0.0
  %250 = vmatpush1.msra.mxu0 0.0
  %251 = vmatprep.subr.mxu0 0.0
  %252 = vmatpush1.msra.mxu0 0.0
  %253 = vmatprep.subr.mxu0 0.0
  %254 = vmatpush1.msra.mxu0 0.0
  %255 = vmatprep.subr.mxu0 0.0
  %256 = vmatpush1.msra.mxu0 0.0
  %257 = vmatprep.subr.mxu0 0.0
  %258 = vmatpush1.msra.mxu0 0.0
  %259 = vmatprep.subr.mxu0 0.0
  %260 = vmatpush1.msra.mxu0 0.0
  %261 = vmatprep.subr.mxu0 0.0
  %262 = vmatpush1.msra.mxu0 0.0
  %263 = vmatprep.subr.mxu0 0.0
  %264 = vmatpush1.msra.mxu0 0.0
  %265 = vmatprep.subr.mxu0 0.0
  %266 = vmatpush1.msra.mxu0 0.0
  %267 = vmatprep.subr.mxu0 0.0
  %268 = vmatpush1.msra.mxu0 0.0
  %269 = vmatprep.subr.mxu0 0.0
  %270 = vmatpush1.msra.mxu0 0.0
  %271 = vmatprep.subr.mxu0 0.0
  %272 = vmatpush1.msra.mxu0 0.0
  %273 = vmatprep.subr.mxu0 0.0
  %274 = vmatpush1.msra.mxu0 0.0
  %275 = vmatprep.subr.mxu0 0.0
  %276 = vmatpush1.msra.mxu0 0.0
  %277 = vmatprep.subr.mxu0 0.0
  %278 = vmatpush1.msra.mxu0 0.0
  %279 = vmatprep.subr.mxu0 0.0
  %280 = vmatpush1.msra.mxu0 0.0
  %281 = vmatprep.subr.mxu0 0.0
  %282 = vmatpush1.msra.mxu0 0.0
  %283 = vmatprep.subr.mxu0 0.0
  %284 = vmatpush1.msra.mxu0 0.0
  %285 = vmatprep.subr.mxu0 0.0
  %286 = vmatpush1.msra.mxu0 0.0
  %287 = vmatprep.subr.mxu0 0.0
  %288 = vmatpush1.msra.mxu0 0.0
  %289 = vmatprep.subr.mxu0 0.0
  %290 = vmatpush1.msra.mxu0 0.0
  %291 = vmatprep.subr.mxu0 0.0
  %292 = vmatpush1.msra.mxu0 0.0
  %293 = vmatprep.subr.mxu0 0.0
  %294 = vmatpush1.msra.mxu0 0.0
  %295 = vmatprep.subr.mxu0 0.0
  %296 = vmatpush1.msra.mxu0 0.0
  %297 = vmatprep.subr.mxu0 0.0
  %298 = vmatpush1.msra.mxu0 0.0
  %299 = vmatprep.subr.mxu0 0.0
  %300 = vmatpush1.msra.mxu0 0.0
  %301 = vmatprep.subr.mxu0 0.0
  %302 = vmatpush1.msra.mxu0 0.0
  %303 = vmatprep.subr.mxu0 0.0
  %304 = vmatpush1.msra.mxu0 0.0
  %305 = vmatprep.mubr.f32.mxu0 0.0
  %306 = vmatmul.mubr.f32.gmra.mrb[0].mxu0 %v236
  %v307 = vpop.f32.mrb[0].mxu0
  %v308 = vadd.f32 0.0, %v307
  %v309 = vpop.f32.mrb[0].mxu0
  %310 = vmatprep.mubr.f32.mxu0 0.0
  %311 = vmatmul.mubr.f32.gmra.mrb[0].mxu0 %v239
  %v312 = vpop.f32.mrb[0].mxu0
  %v313 = vadd.f32 0.0, %v312
  %v314 = vpop.f32.mrb[0].mxu0
  %315 = vdwg.mxu0
  %v316 = vld [vmem:[%s5] sm:$0xff]
  %v317 = vld [vmem:[%s5 + $0x8] sm:$0xff]
  %v319 = vsel %vm234, %v316, 0
  %v322 = vsel %vm234, %v317, 0
  %324 = vmatprep.subr.mxu0 0.0
  %325 = vmatpush1.msra.mxu0 %v308
  %326 = vmatprep.subr.mxu0 0.0
  %327 = vmatpush1.msra.mxu0 %v313
  %328 = vmatprep.subr.mxu0 0.0
  %329 = vmatpush1.msra.mxu0 0.0
  %330 = vmatprep.subr.mxu0 0.0
  %331 = vmatpush1.msra.mxu0 0.0
  %332 = vmatprep.subr.mxu0 0.0
  %333 = vmatpush1.msra.mxu0 0.0
  %334 = vmatprep.subr.mxu0 0.0
  %335 = vmatpush1.msra.mxu0 0.0
  %336 = vmatprep.subr.mxu0 0.0
  %337 = vmatpush1.msra.mxu0 0.0
  %338 = vmatprep.subr.mxu0 0.0
  %339 = vmatpush1.msra.mxu0 0.0
  %340 = vmatprep.subr.mxu0 0.0
  %341 = vmatpush1.msra.mxu0 0.0
  %342 = vmatprep.subr.mxu0 0.0
  %343 = vmatpush1.msra.mxu0 0.0
  %344 = vmatprep.subr.mxu0 0.0
  %345 = vmatpush1.msra.mxu0 0.0
  %346 = vmatprep.subr.mxu0 0.0
  %347 = vmatpush1.msra.mxu0 0.0
  %348 = vmatprep.subr.mxu0 0.0
  %349 = vmatpush1.msra.mxu0 0.0
  %350 = vmatprep.subr.mxu0 0.0
  %351 = vmatpush1.msra.mxu0 0.0
  %352 = vmatprep.subr.mxu0 0.0
  %353 = vmatpush1.msra.mxu0 0.0
  %354 = vmatprep.subr.mxu0 0.0
  %355 = vmatpush1.msra.mxu0 0.0
  %356 = vmatprep.subr.mxu0 0.0
  %357 = vmatpush1.msra.mxu0 0.0
  %358 = vmatprep.subr.mxu0 0.0
  %359 = vmatpush1.msra.mxu0 0.0
  %360 = vmatprep.subr.mxu0 0.0
  %361 = vmatpush1.msra.mxu0 0.0
  %362 = vmatprep.subr.mxu0 0.0
  %363 = vmatpush1.msra.mxu0 0.0
  %364 = vmatprep.subr.mxu0 0.0
  %365 = vmatpush1.msra.mxu0 0.0
  %366 = vmatprep.subr.mxu0 0.0
  %367 = vmatpush1.msra.mxu0 0.0
  %368 = vmatprep.subr.mxu0 0.0
  %369 = vmatpush1.msra.mxu0 0.0
  %370 = vmatprep.subr.mxu0 0.0
  %371 = vmatpush1.msra.mxu0 0.0
  %372 = vmatprep.subr.mxu0 0.0
  %373 = vmatpush1.msra.mxu0 0.0
  %374 = vmatprep.subr.mxu0 0.0
  %375 = vmatpush1.msra.mxu0 0.0
  %376 = vmatprep.subr.mxu0 0.0
  %377 = vmatpush1.msra.mxu0 0.0
  %378 = vmatprep.subr.mxu0 0.0
  %379 = vmatpush1.msra.mxu0 0.0
  %380 = vmatprep.subr.mxu0 0.0
  %381 = vmatpush1.msra.mxu0 0.0
  %382 = vmatprep.subr.mxu0 0.0
  %383 = vmatpush1.msra.mxu0 0.0
  %384 = vmatprep.subr.mxu0 0.0
  %385 = vmatpush1.msra.mxu0 0.0
  %386 = vmatprep.subr.mxu0 0.0
  %387 = vmatpush1.msra.mxu0 0.0
  %388 = vmatprep.mubr.f32.mxu0 0.0
  %389 = vmatmul.mubr.f32.gmra.mrb[0].mxu0 %v319
  %v390 = vpop.f32.mrb[0].mxu0
  %v391 = vadd.f32 0.0, %v390
  %v392 = vpop.f32.mrb[0].mxu0
  %393 = vmatprep.mubr.f32.mxu0 0.0
  %394 = vmatmul.mubr.f32.gmra.mrb[0].mxu0 %v322
  %v395 = vpop.f32.mrb[0].mxu0
  %v396 = vadd.f32 0.0, %v395
  %v397 = vpop.f32.mrb[0].mxu0
  %398 = vdwg.mxu0
  %v399 = vsub.f32 %v308, %v391
  %v400 = vsub.f32 %v313, %v396
  %v401 = vmul.f32 %v399, %v399
  %v402 = vmul.f32 %v400, %v400
  %403 = vmatprep.subr.mxu0 0.0
  %404 = vmatpush1.msra.mxu0 %v401
  %405 = vmatprep.subr.mxu0 0.0
  %406 = vmatpush1.msra.mxu0 %v402
  %407 = vmatprep.subr.mxu0 0.0
  %408 = vmatpush1.msra.mxu0 0.0
  %409 = vmatprep.subr.mxu0 0.0
  %410 = vmatpush1.msra.mxu0 0.0
  %411 = vmatprep.subr.mxu0 0.0
  %412 = vmatpush1.msra.mxu0 0.0
  %413 = vmatprep.subr.mxu0 0.0
  %414 = vmatpush1.msra.mxu0 0.0
  %415 = vmatprep.subr.mxu0 0.0
  %416 = vmatpush1.msra.mxu0 0.0
  %417 = vmatprep.subr.mxu0 0.0
  %418 = vmatpush1.msra.mxu0 0.0
  %419 = vmatprep.subr.mxu0 0.0
  %420 = vmatpush1.msra.mxu0 0.0
  %421 = vmatprep.subr.mxu0 0.0
  %422 = vmatpush1.msra.mxu0 0.0
  %423 = vmatprep.subr.mxu0 0.0
  %424 = vmatpush1.msra.mxu0 0.0
  %425 = vmatprep.subr.mxu0 0.0
  %426 = vmatpush1.msra.mxu0 0.0
  %427 = vmatprep.subr.mxu0 0.0
  %428 = vmatpush1.msra.mxu0 0.0
  %429 = vmatprep.subr.mxu0 0.0
  %430 = vmatpush1.msra.mxu0 0.0
  %431 = vmatprep.subr.mxu0 0.0
  %432 = vmatpush1.msra.mxu0 0.0
  %433 = vmatprep.subr.mxu0 0.0
  %434 = vmatpush1.msra.mxu0 0.0
  %435 = vmatprep.subr.mxu0 0.0
  %436 = vmatpush1.msra.mxu0 0.0
  %437 = vmatprep.subr.mxu0 0.0
  %438 = vmatpush1.msra.mxu0 0.0
  %439 = vmatprep.subr.mxu0 0.0
  %440 = vmatpush1.msra.mxu0 0.0
  %441 = vmatprep.subr.mxu0 0.0
  %442 = vmatpush1.msra.mxu0 0.0
  %443 = vmatprep.subr.mxu0 0.0
  %444 = vmatpush1.msra.mxu0 0.0
  %445 = vmatprep.subr.mxu0 0.0
  %446 = vmatpush1.msra.mxu0 0.0
  %447 = vmatprep.subr.mxu0 0.0
  %448 = vmatpush1.msra.mxu0 0.0
  %449 = vmatprep.subr.mxu0 0.0
  %450 = vmatpush1.msra.mxu0 0.0
  %451 = vmatprep.subr.mxu0 0.0
  %452 = vmatpush1.msra.mxu0 0.0
  %453 = vmatprep.subr.mxu0 0.0
  %454 = vmatpush1.msra.mxu0 0.0
  %455 = vmatprep.subr.mxu0 0.0
  %456 = vmatpush1.msra.mxu0 0.0
  %457 = vmatprep.subr.mxu0 0.0
  %458 = vmatpush1.msra.mxu0 0.0
  %459 = vmatprep.subr.mxu0 0.0
  %460 = vmatpush1.msra.mxu0 0.0
  %461 = vmatprep.subr.mxu0 0.0
  %462 = vmatpush1.msra.mxu0 0.0
  %463 = vmatprep.subr.mxu0 0.0
  %464 = vmatpush1.msra.mxu0 0.0
  %465 = vmatprep.subr.mxu0 0.0
  %466 = vmatpush1.msra.mxu0 0.0
  %467 = vmatprep.mubr.f32.mxu0 0.0
  %468 = vmatmul.mubr.f32.gmra.mrb[0].mxu0 %v319
  %v469 = vpop.f32.mrb[0].mxu0
  %v470 = vadd.f32 1e-05, %v469
  %v471 = vpop.f32.mrb[0].mxu0
  %472 = vmatprep.mubr.f32.mxu0 0.0
  %473 = vmatmul.mubr.f32.gmra.mrb[0].mxu0 %v322
  %v474 = vpop.f32.mrb[0].mxu0
  %v475 = vadd.f32 1e-05, %v474
  %v476 = vpop.f32.mrb[0].mxu0
  %477 = vdwg.mxu0
  %v478 = vrsqrt.pop %v470
  %v479 = vrsqrt.pop %v475
  %v480 = vmul.f32 %v399, %v478
  %v481 = vmul.f32 %v400, %v479
  %v482 = vld [vmem:[%s4] sm:$0x1]
  %v483 = vlaneseq
  %v484 = vshrl.u32 %v483, 7
  %v485 = vsub.s32 0, %v484
  %v486 = vrot.slane %v482, %v485
  %v487 = vmul.f32 %v480, %v486
  %v488 = vmul.f32 %v481, %v486
  %v489 = vld [vmem:[%s4 + $0x1] sm:$0x1]
  %v490 = vlaneseq
  %v491 = vshrl.u32 %v490, 7
  %v492 = vsub.s32 0, %v491
  %v493 = vrot.slane %v489, %v492
  %v494 = vadd.f32 %v487, %v493
  %v495 = vadd.f32 %v488, %v493
  %v496 = vld [vmem:[%s6] sm:$0xff]
  %v497 = vld [vmem:[%s8] sm:$0x1]
  %v498 = vlaneseq
  %v499 = vshrl.u32 %v498, 7
  %v500 = vsub.s32 0, %v499
  %v501 = vrot.slane %v497, %v500
  %vm502 = vcmask 64512
  %v504 = vsel %vm502, %v494, 0
  %v507 = vsel %vm502, %v495, 0
  %509 = vmatprep.subr.mxu0 0.0
  %510 = vmatpush1.msra.mxu0 %v496
  %511 = vmatprep.subr.mxu0 0.0
  %512 = vmatpush1.msra.mxu0 0.0
  %513 = vmatprep.subr.mxu0 0.0
  %514 = vmatpush1.msra.mxu0 0.0
  %515 = vmatprep.subr.mxu0 0.0
  %516 = vmatpush1.msra.mxu0 0.0
  %517 = vmatprep.subr.mxu0 0.0
  %518 = vmatpush1.msra.mxu0 0.0
  %519 = vmatprep.subr.mxu0 0.0
  %520 = vmatpush1.msra.mxu0 0.0
  %521 = vmatprep.subr.mxu0 0.0
  %522 = vmatpush1.msra.mxu0 0.0
  %523 = vmatprep.subr.mxu0 0.0
  %524 = vmatpush1.msra.mxu0 0.0
  %525 = vmatprep.subr.mxu0 0.0
  %526 = vmatpush1.msra.mxu0 0.0
  %527 = vmatprep.subr.mxu0 0.0
  %528 = vmatpush1.msra.mxu0 0.0
  %529 = vmatprep.subr.mxu0 0.0
  %530 = vmatpush1.msra.mxu0 0.0
  %531 = vmatprep.subr.mxu0 0.0
  %532 = vmatpush1.msra.mxu0 0.0
  %533 = vmatprep.subr.mxu0 0.0
  %534 = vmatpush1.msra.mxu0 0.0
  %535 = vmatprep.subr.mxu0 0.0
  %536 = vmatpush1.msra.mxu0 0.0
  %537 = vmatprep.subr.mxu0 0.0
  %538 = vmatpush1.msra.mxu0 0.0
  %539 = vmatprep.subr.mxu0 0.0
  %540 = vmatpush1.msra.mxu0 0.0
  %541 = vmatprep.subr.mxu0 0.0
  %542 = vmatpush1.msra.mxu0 0.0
  %543 = vmatprep.subr.mxu0 0.0
  %544 = vmatpush1.msra.mxu0 0.0
  %545 = vmatprep.subr.mxu0 0.0
  %546 = vmatpush1.msra.mxu0 0.0
  %547 = vmatprep.subr.mxu0 0.0
  %548 = vmatpush1.msra.mxu0 0.0
  %549 = vmatprep.subr.mxu0 0.0
  %550 = vmatpush1.msra.mxu0 0.0
  %551 = vmatprep.subr.mxu0 0.0
  %552 = vmatpush1.msra.mxu0 0.0
  %553 = vmatprep.subr.mxu0 0.0
  %554 = vmatpush1.msra.mxu0 0.0
  %555 = vmatprep.subr.mxu0 0.0
  %556 = vmatpush1.msra.mxu0 0.0
  %557 = vmatprep.subr.mxu0 0.0
  %558 = vmatpush1.msra.mxu0 0.0
  %559 = vmatprep.subr.mxu0 0.0
  %560 = vmatpush1.msra.mxu0 0.0
  %561 = vmatprep.subr.mxu0 0.0
  %562 = vmatpush1.msra.mxu0 0.0
  %563 = vmatprep.subr.mxu0 0.0
  %564 = vmatpush1.msra.mxu0 0.0
  %565 = vmatprep.subr.mxu0 0.0
  %566 = vmatpush1.msra.mxu0 0.0
  %567 = vmatprep.subr.mxu0 0.0
  %568 = vmatpush1.msra.mxu0 0.0
  %569 = vmatprep.subr.mxu0 0.0
  %570 = vmatpush1.msra.mxu0 0.0
  %571 = vmatprep.subr.mxu0 0.0
  %572 = vmatpush1.msra.mxu0 0.0
  %573 = vmatprep.mubr.f32.mxu0 0.0
  %574 = vmatmul.mubr.f32.gmra.mrb[0].mxu0 %v504
  %v575 = vpop.f32.mrb[0].mxu0
  %v576 = vadd.f32 %v501, %v575
  %v577 = vpop.f32.mrb[0].mxu0
  %578 = vmatprep.mubr.f32.mxu0 0.0
  %579 = vmatmul.mubr.f32.gmra.mrb[0].mxu0 %v507
  %v580 = vpop.f32.mrb[0].mxu0
  %v581 = vadd.f32 %v501, %v580
  %v582 = vpop.f32.mrb[0].mxu0
  %583 = vdwg.mxu0
  %v584 = vld [vmem:[%s7] sm:$0xff]
  %v585 = vld [vmem:[%s7 + $0x8] sm:$0xff]
  %v586 = vld [vmem:[%s7 + $0x10] sm:$0xff]
  %v587 = vld [vmem:[%s7 + $0x18] sm:$0xff]
  %v588 = vld [vmem:[%s8 + $0x1] sm:$0x1]
  %v589 = vlaneseq
  %v590 = vshrl.u32 %v589, 7
  %v591 = vsub.s32 0, %v590
  %v592 = vrot.slane %v588, %v591
  %v594 = vsel %vm146, 0.0, 0
  %596 = vmatprep.subr.mxu0 0.0
  %597 = vmatpush1.msra.mxu0 %v584
  %598 = vmatprep.subr.mxu0 0.0
  %599 = vmatpush1.msra.mxu0 %v585
  %600 = vmatprep.subr.mxu0 0.0
  %601 = vmatpush1.msra.mxu0 %v586
  %602 = vmatprep.subr.mxu0 0.0
  %603 = vmatpush1.msra.mxu0 %v587
  %604 = vmatprep.subr.mxu0 0.0
  %605 = vmatpush1.msra.mxu0 0.0
  %606 = vmatprep.subr.mxu0 0.0
  %607 = vmatpush1.msra.mxu0 0.0
  %608 = vmatprep.subr.mxu0 0.0
  %609 = vmatpush1.msra.mxu0 0.0
  %610 = vmatprep.subr.mxu0 0.0
  %611 = vmatpush1.msra.mxu0 0.0
  %612 = vmatprep.subr.mxu0 0.0
  %613 = vmatpush1.msra.mxu0 0.0
  %614 = vmatprep.subr.mxu0 0.0
  %615 = vmatpush1.msra.mxu0 0.0
  %616 = vmatprep.subr.mxu0 0.0
  %617 = vmatpush1.msra.mxu0 0.0
  %618 = vmatprep.subr.mxu0 0.0
  %619 = vmatpush1.msra.mxu0 0.0
  %620 = vmatprep.subr.mxu0 0.0
  %621 = vmatpush1.msra.mxu0 0.0
  %622 = vmatprep.subr.mxu0 0.0
  %623 = vmatpush1.msra.mxu0 0.0
  %624 = vmatprep.subr.mxu0 0.0
  %625 = vmatpush1.msra.mxu0 0.0
  %626 = vmatprep.subr.mxu0 0.0
  %627 = vmatpush1.msra.mxu0 0.0
  %628 = vmatprep.subr.mxu0 0.0
  %629 = vmatpush1.msra.mxu0 0.0
  %630 = vmatprep.subr.mxu0 0.0
  %631 = vmatpush1.msra.mxu0 0.0
  %632 = vmatprep.subr.mxu0 0.0
  %633 = vmatpush1.msra.mxu0 0.0
  %634 = vmatprep.subr.mxu0 0.0
  %635 = vmatpush1.msra.mxu0 0.0
  %636 = vmatprep.subr.mxu0 0.0
  %637 = vmatpush1.msra.mxu0 0.0
  %638 = vmatprep.subr.mxu0 0.0
  %639 = vmatpush1.msra.mxu0 0.0
  %640 = vmatprep.subr.mxu0 0.0
  %641 = vmatpush1.msra.mxu0 0.0
  %642 = vmatprep.subr.mxu0 0.0
  %643 = vmatpush1.msra.mxu0 0.0
  %644 = vmatprep.subr.mxu0 0.0
  %645 = vmatpush1.msra.mxu0 0.0
  %646 = vmatprep.subr.mxu0 0.0
  %647 = vmatpush1.msra.mxu0 0.0
  %648 = vmatprep.subr.mxu0 0.0
  %649 = vmatpush1.msra.mxu0 0.0
  %650 = vmatprep.subr.mxu0 0.0
  %651 = vmatpush1.msra.mxu0 0.0
  %652 = vmatprep.subr.mxu0 0.0
  %653 = vmatpush1.msra.mxu0 0.0
  %654 = vmatprep.subr.mxu0 0.0
  %655 = vmatpush1.msra.mxu0 0.0
  %656 = vmatprep.subr.mxu0 0.0
  %657 = vmatpush1.msra.mxu0 0.0
  %658 = vmatprep.subr.mxu0 0.0
  %659 = vmatpush1.msra.mxu0 0.0
  %660 = vmatprep.mubr.f32.mxu0 0.0
  %661 = vmatmul.mubr.f32.gmra.mrb[0].mxu0 %v594
  %v662 = vpop.f32.mrb[0].mxu0
  %v663 = vadd.f32 %v592, %v662
  %v664 = vpop.f32.mrb[0].mxu0
  %665 = vdwg.mxu0
  %v666 = vadd.f32 %v576, %v663
  %v667 = vxor.u32 %v666, 2147483648
  %v668 = vmul.f32 %v667, 1.442695
  %v669 = vpow.pop %v668
  %v670 = vadd.f32 %v669, 1.0
  %v671 = vrcp.pop %v670
  %v672 = vmul.f32 1.0, %v671
  %674 = vrot.lane.b32.xlu0 %v663, 64
  %v675 = vpop.permute.xlu0 %674
  %v677 = vmul.f32 %v672, %v675
  %679 = vrot.lane.b32.xlu0 %v677, 64
  %v680 = vpop.permute.xlu0 %679
  %v682 = vadd.f32 %v576, %v680
  %v683 = vtanh.pop %v682
  %v684 = vsub.f32 1.0, %v672
  %686 = vrot.lane.b32.xlu0 %v683, 96
  %v687 = vpop.permute.xlu0 %686
  %v689 = vmul.f32 %v684, %v687
  %v690 = vmul.f32 %v672, 0.0
  %v691 = vadd.f32 %v689, %v690
  %693 = vrot.lane.b32.xlu0 %v691, 96
  %v694 = vpop.permute.xlu0 %693
  %vm696 = vcmask 254976
  %697 = vst.msk [vmem:[#allocation2] sm:$0x3] %vm696, %v694
  %v698 = vsel %vm146, %v694, 0
  %700 = vmatprep.subr.mxu0 0.0
  %701 = vmatpush1.msra.mxu0 %v584
  %702 = vmatprep.subr.mxu0 0.0
  %703 = vmatpush1.msra.mxu0 %v585
  %704 = vmatprep.subr.mxu0 0.0
  %705 = vmatpush1.msra.mxu0 %v586
  %706 = vmatprep.subr.mxu0 0.0
  %707 = vmatpush1.msra.mxu0 %v587
  %708 = vmatprep.subr.mxu0 0.0
  %709 = vmatpush1.msra.mxu0 0.0
  %710 = vmatprep.subr.mxu0 0.0
  %711 = vmatpush1.msra.mxu0 0.0
  %712 = vmatprep.subr.mxu0 0.0
  %713 = vmatpush1.msra.mxu0 0.0
  %714 = vmatprep.subr.mxu0 0.0
  %715 = vmatpush1.msra.mxu0 0.0
  %716 = vmatprep.subr.mxu0 0.0
  %717 = vmatpush1.msra.mxu0 0.0
  %718 = vmatprep.subr.mxu0 0.0
  %719 = vmatpush1.msra.mxu0 0.0
  %720 = vmatprep.subr.mxu0 0.0
  %721 = vmatpush1.msra.mxu0 0.0
  %722 = vmatprep.subr.mxu0 0.0
  %723 = vmatpush1.msra.mxu0 0.0
  %724 = vmatprep.subr.mxu0 0.0
  %725 = vmatpush1.msra.mxu0 0.0
  %726 = vmatprep.subr.mxu0 0.0
  %727 = vmatpush1.msra.mxu0 0.0
  %728 = vmatprep.subr.mxu0 0.0
  %729 = vmatpush1.msra.mxu0 0.0
  %730 = vmatprep.subr.mxu0 0.0
  %731 = vmatpush1.msra.mxu0 0.0
  %732 = vmatprep.subr.mxu0 0.0
  %733 = vmatpush1.msra.mxu0 0.0
  %734 = vmatprep.subr.mxu0 0.0
  %735 = vmatpush1.msra.mxu0 0.0
  %736 = vmatprep.subr.mxu0 0.0
  %737 = vmatpush1.msra.mxu0 0.0
  %738 = vmatprep.subr.mxu0 0.0
  %739 = vmatpush1.msra.mxu0 0.0
  %740 = vmatprep.subr.mxu0 0.0
  %741 = vmatpush1.msra.mxu0 0.0
  %742 = vmatprep.subr.mxu0 0.0
  %743 = vmatpush1.msra.mxu0 0.0
  %744 = vmatprep.subr.mxu0 0.0
  %745 = vmatpush1.msra.mxu0 0.0
  %746 = vmatprep.subr.mxu0 0.0
  %747 = vmatpush1.msra.mxu0 0.0
  %748 = vmatprep.subr.mxu0 0.0
  %749 = vmatpush1.msra.mxu0 0.0
  %750 = vmatprep.subr.mxu0 0.0
  %751 = vmatpush1.msra.mxu0 0.0
  %752 = vmatprep.subr.mxu0 0.0
  %753 = vmatpush1.msra.mxu0 0.0
  %754 = vmatprep.subr.mxu0 0.0
  %755 = vmatpush1.msra.mxu0 0.0
  %756 = vmatprep.subr.mxu0 0.0
  %757 = vmatpush1.msra.mxu0 0.0
  %758 = vmatprep.subr.mxu0 0.0
  %759 = vmatpush1.msra.mxu0 0.0
  %760 = vmatprep.subr.mxu0 0.0
  %761 = vmatpush1.msra.mxu0 0.0
  %762 = vmatprep.subr.mxu0 0.0
  %763 = vmatpush1.msra.mxu0 0.0
  %764 = vmatprep.mubr.f32.mxu0 0.0
  %765 = vmatmul.mubr.f32.gmra.mrb[0].mxu0 %v698
  %v766 = vpop.f32.mrb[0].mxu0
  %v767 = vadd.f32 %v592, %v766
  %v768 = vpop.f32.mrb[0].mxu0
  %769 = vdwg.mxu0
  %v771 = vrot.slane %v767, 6
  %v773 = vadd.f32 %v576, %v771
  %v774 = vxor.u32 %v773, 2147483648
  %v775 = vmul.f32 %v774, 1.442695
  %v776 = vpow.pop %v775
  %v777 = vadd.f32 %v776, 1.0
  %v778 = vrcp.pop %v777
  %v779 = vmul.f32 1.0, %v778
  %780 = vrot.lane.b32.xlu0 %v771, 64
  %v781 = vpop.permute.xlu0 %780
  %v783 = vmul.f32 %v779, %v781
  %785 = vrot.lane.b32.xlu0 %v783, 64
  %v786 = vpop.permute.xlu0 %785
  %v788 = vadd.f32 %v576, %v786
  %v789 = vtanh.pop %v788
  %v790 = vsub.f32 1.0, %v779
  %792 = vrot.lane.b32.xlu0 %v789, 96
  %v793 = vpop.permute.xlu0 %792
  %v795 = vmul.f32 %v790, %v793
  %v796 = vrot.slane %v691, 6
  %v798 = vmul.f32 %v779, %v796
  %v799 = vadd.f32 %v795, %v798
  %801 = vrot.lane.b32.xlu0 %v799, 96
  %v802 = vpop.permute.xlu0 %801
  %vm804 = vcmask 257026
  %805 = vst.msk [vmem:[#allocation2] sm:$0xc] %vm804, %v802
  %v806 = vrot.slane %v799, 2
  %807 = vrot.lane.b32.xlu0 %v806, 96
  %v808 = vpop.permute.xlu0 %807
  %v809 = vsel %vm146, %v808, 0
  %811 = vmatprep.subr.mxu0 0.0
  %812 = vmatpush1.msra.mxu0 %v584
  %813 = vmatprep.subr.mxu0 0.0
  %814 = vmatpush1.msra.mxu0 %v585
  %815 = vmatprep.subr.mxu0 0.0
  %816 = vmatpush1.msra.mxu0 %v586
  %817 = vmatprep.subr.mxu0 0.0
  %818 = vmatpush1.msra.mxu0 %v587
  %819 = vmatprep.subr.mxu0 0.0
  %820 = vmatpush1.msra.mxu0 0.0
  %821 = vmatprep.subr.mxu0 0.0
  %822 = vmatpush1.msra.mxu0 0.0
  %823 = vmatprep.subr.mxu0 0.0
  %824 = vmatpush1.msra.mxu0 0.0
  %825 = vmatprep.subr.mxu0 0.0
  %826 = vmatpush1.msra.mxu0 0.0
  %827 = vmatprep.subr.mxu0 0.0
  %828 = vmatpush1.msra.mxu0 0.0
  %829 = vmatprep.subr.mxu0 0.0
  %830 = vmatpush1.msra.mxu0 0.0
  %831 = vmatprep.subr.mxu0 0.0
  %832 = vmatpush1.msra.mxu0 0.0
  %833 = vmatprep.subr.mxu0 0.0
  %834 = vmatpush1.msra.mxu0 0.0
  %835 = vmatprep.subr.mxu0 0.0
  %836 = vmatpush1.msra.mxu0 0.0
  %837 = vmatprep.subr.mxu0 0.0
  %838 = vmatpush1.msra.mxu0 0.0
  %839 = vmatprep.subr.mxu0 0.0
  %840 = vmatpush1.msra.mxu0 0.0
  %841 = vmatprep.subr.mxu0 0.0
  %842 = vmatpush1.msra.mxu0 0.0
  %843 = vmatprep.subr.mxu0 0.0
  %844 = vmatpush1.msra.mxu0 0.0
  %845 = vmatprep.subr.mxu0 0.0
  %846 = vmatpush1.msra.mxu0 0.0
  %847 = vmatprep.subr.mxu0 0.0
  %848 = vmatpush1.msra.mxu0 0.0
  %849 = vmatprep.subr.mxu0 0.0
  %850 = vmatpush1.msra.mxu0 0.0
  %851 = vmatprep.subr.mxu0 0.0
  %852 = vmatpush1.msra.mxu0 0.0
  %853 = vmatprep.subr.mxu0 0.0
  %854 = vmatpush1.msra.mxu0 0.0
  %855 = vmatprep.subr.mxu0 0.0
  %856 = vmatpush1.msra.mxu0 0.0
  %857 = vmatprep.subr.mxu0 0.0
  %858 = vmatpush1.msra.mxu0 0.0
  %859 = vmatprep.subr.mxu0 0.0
  %860 = vmatpush1.msra.mxu0 0.0
  %861 = vmatprep.subr.mxu0 0.0
  %862 = vmatpush1.msra.mxu0 0.0
  %863 = vmatprep.subr.mxu0 0.0
  %864 = vmatpush1.msra.mxu0 0.0
  %865 = vmatprep.subr.mxu0 0.0
  %866 = vmatpush1.msra.mxu0 0.0
  %867 = vmatprep.subr.mxu0 0.0
  %868 = vmatpush1.msra.mxu0 0.0
  %869 = vmatprep.subr.mxu0 0.0
  %870 = vmatpush1.msra.mxu0 0.0
  %871 = vmatprep.subr.mxu0 0.0
  %872 = vmatpush1.msra.mxu0 0.0
  %873 = vmatprep.subr.mxu0 0.0
  %874 = vmatpush1.msra.mxu0 0.0
  %875 = vmatprep.mubr.f32.mxu0 0.0
  %876 = vmatmul.mubr.f32.gmra.mrb[0].mxu0 %v809
  %v877 = vpop.f32.mrb[0].mxu0
  %v878 = vadd.f32 %v592, %v877
  %v879 = vpop.f32.mrb[0].mxu0
  %880 = vdwg.mxu0
  %v882 = vrot.slane %v878, 4
  %v884 = vadd.f32 %v576, %v882
  %v885 = vxor.u32 %v884, 2147483648
  %v886 = vmul.f32 %v885, 1.442695
  %v887 = vpow.pop %v886
  %v888 = vadd.f32 %v887, 1.0
  %v889 = vrcp.pop %v888
  %v890 = vmul.f32 1.0, %v889
  %891 = vrot.lane.b32.xlu0 %v882, 64
  %v892 = vpop.permute.xlu0 %891
  %v894 = vmul.f32 %v890, %v892
  %896 = vrot.lane.b32.xlu0 %v894, 64
  %v897 = vpop.permute.xlu0 %896
  %v899 = vadd.f32 %v576, %v897
  %v900 = vtanh.pop %v899
  %v901 = vsub.f32 1.0, %v890
  %903 = vrot.lane.b32.xlu0 %v900, 96
  %v904 = vpop.permute.xlu0 %903
  %v906 = vmul.f32 %v901, %v904
  %v907 = vrot.slane %v799, 6
  %v909 = vmul.f32 %v890, %v907
  %v910 = vadd.f32 %v906, %v909
  %912 = vrot.lane.b32.xlu0 %v910, 96
  %v913 = vpop.permute.xlu0 %912
  %vm915 = vcmask 259076
  %916 = vst.msk [vmem:[#allocation2] sm:$0x30] %vm915, %v913
  %v917 = vrot.slane %v910, 4
  %918 = vrot.lane.b32.xlu0 %v917, 96
  %v919 = vpop.permute.xlu0 %918
  %v920 = vsel %vm146, %v919, 0
  %922 = vmatprep.subr.mxu0 0.0
  %923 = vmatpush1.msra.mxu0 %v584
  %924 = vmatprep.subr.mxu0 0.0
  %925 = vmatpush1.msra.mxu0 %v585
  %926 = vmatprep.subr.mxu0 0.0
  %927 = vmatpush1.msra.mxu0 %v586
  %928 = vmatprep.subr.mxu0 0.0
  %929 = vmatpush1.msra.mxu0 %v587
  %930 = vmatprep.subr.mxu0 0.0
  %931 = vmatpush1.msra.mxu0 0.0
  %932 = vmatprep.subr.mxu0 0.0
  %933 = vmatpush1.msra.mxu0 0.0
  %934 = vmatprep.subr.mxu0 0.0
  %935 = vmatpush1.msra.mxu0 0.0
  %936 = vmatprep.subr.mxu0 0.0
  %937 = vmatpush1.msra.mxu0 0.0
  %938 = vmatprep.subr.mxu0 0.0
  %939 = vmatpush1.msra.mxu0 0.0
  %940 = vmatprep.subr.mxu0 0.0
  %941 = vmatpush1.msra.mxu0 0.0
  %942 = vmatprep.subr.mxu0 0.0
  %943 = vmatpush1.msra.mxu0 0.0
  %944 = vmatprep.subr.mxu0 0.0
  %945 = vmatpush1.msra.mxu0 0.0
  %946 = vmatprep.subr.mxu0 0.0
  %947 = vmatpush1.msra.mxu0 0.0
  %948 = vmatprep.subr.mxu0 0.0
  %949 = vmatpush1.msra.mxu0 0.0
  %950 = vmatprep.subr.mxu0 0.0
  %951 = vmatpush1.msra.mxu0 0.0
  %952 = vmatprep.subr.mxu0 0.0
  %953 = vmatpush1.msra.mxu0 0.0
  %954 = vmatprep.subr.mxu0 0.0
  %955 = vmatpush1.msra.mxu0 0.0
  %956 = vmatprep.subr.mxu0 0.0
  %957 = vmatpush1.msra.mxu0 0.0
  %958 = vmatprep.subr.mxu0 0.0
  %959 = vmatpush1.msra.mxu0 0.0
  %960 = vmatprep.subr.mxu0 0.0
  %961 = vmatpush1.msra.mxu0 0.0
  %962 = vmatprep.subr.mxu0 0.0
  %963 = vmatpush1.msra.mxu0 0.0
  %964 = vmatprep.subr.mxu0 0.0
  %965 = vmatpush1.msra.mxu0 0.0
  %966 = vmatprep.subr.mxu0 0.0
  %967 = vmatpush1.msra.mxu0 0.0
  %968 = vmatprep.subr.mxu0 0.0
  %969 = vmatpush1.msra.mxu0 0.0
  %970 = vmatprep.subr.mxu0 0.0
  %971 = vmatpush1.msra.mxu0 0.0
  %972 = vmatprep.subr.mxu0 0.0
  %973 = vmatpush1.msra.mxu0 0.0
  %974 = vmatprep.subr.mxu0 0.0
  %975 = vmatpush1.msra.mxu0 0.0
  %976 = vmatprep.subr.mxu0 0.0
  %977 = vmatpush1.msra.mxu0 0.0
  %978 = vmatprep.subr.mxu0 0.0
  %979 = vmatpush1.msra.mxu0 0.0
  %980 = vmatprep.subr.mxu0 0.0
  %981 = vmatpush1.msra.mxu0 0.0
  %982 = vmatprep.subr.mxu0 0.0
  %983 = vmatpush1.msra.mxu0 0.0
  %984 = vmatprep.subr.mxu0 0.0
  %985 = vmatpush1.msra.mxu0 0.0
  %986 = vmatprep.mubr.f32.mxu0 0.0
  %987 = vmatmul.mubr.f32.gmra.mrb[0].mxu0 %v920
  %v988 = vpop.f32.mrb[0].mxu0
  %v989 = vadd.f32 %v592, %v988
  %v990 = vpop.f32.mrb[0].mxu0
  %991 = vdwg.mxu0
  %v993 = vrot.slane %v989, 2
  %v995 = vadd.f32 %v576, %v993
  %v996 = vxor.u32 %v995, 2147483648
  %v997 = vmul.f32 %v996, 1.442695
  %v998 = vpow.pop %v997
  %v999 = vadd.f32 %v998, 1.0
  %v1000 = vrcp.pop %v999
  %v1001 = vmul.f32 1.0, %v1000
  %1002 = vrot.lane.b32.xlu0 %v993, 64
  %v1003 = vpop.permute.xlu0 %1002
  %v1005 = vmul.f32 %v1001, %v1003
  %1007 = vrot.lane.b32.xlu0 %v1005, 64
  %v1008 = vpop.permute.xlu0 %1007
  %v1010 = vadd.f32 %v576, %v1008
  %v1011 = vtanh.pop %v1010
  %v1012 = vsub.f32 1.0, %v1001
  %1014 = vrot.lane.b32.xlu0 %v1011, 96
  %v1015 = vpop.permute.xlu0 %1014
  %v1017 = vmul.f32 %v1012, %v1015
  %v1018 = vrot.slane %v910, 6
  %v1020 = vmul.f32 %v1001, %v1018
  %v1021 = vadd.f32 %v1017, %v1020
  %1023 = vrot.lane.b32.xlu0 %v1021, 96
  %v1024 = vpop.permute.xlu0 %1023
  %vm1026 = vcmask 261126
  %1027 = vst.msk [vmem:[#allocation2] sm:$0xc0] %vm1026, %v1024
  %v1028 = vrot.slane %v1021, 6
  %1029 = vrot.lane.b32.xlu0 %v1028, 96
  %v1030 = vpop.permute.xlu0 %1029
  %v1031 = vsel %vm146, %v1030, 0
  %1033 = vmatprep.subr.mxu0 0.0
  %1034 = vmatpush1.msra.mxu0 %v584
  %1035 = vmatprep.subr.mxu0 0.0
  %1036 = vmatpush1.msra.mxu0 %v585
  %1037 = vmatprep.subr.mxu0 0.0
  %1038 = vmatpush1.msra.mxu0 %v586
  %1039 = vmatprep.subr.mxu0 0.0
  %1040 = vmatpush1.msra.mxu0 %v587
  %1041 = vmatprep.subr.mxu0 0.0
  %1042 = vmatpush1.msra.mxu0 0.0
  %1043 = vmatprep.subr.mxu0 0.0
  %1044 = vmatpush1.msra.mxu0 0.0
  %1045 = vmatprep.subr.mxu0 0.0
  %1046 = vmatpush1.msra.mxu0 0.0
  %1047 = vmatprep.subr.mxu0 0.0
  %1048 = vmatpush1.msra.mxu0 0.0
  %1049 = vmatprep.subr.mxu0 0.0
  %1050 = vmatpush1.msra.mxu0 0.0
  %1051 = vmatprep.subr.mxu0 0.0
  %1052 = vmatpush1.msra.mxu0 0.0
  %1053 = vmatprep.subr.mxu0 0.0
  %1054 = vmatpush1.msra.mxu0 0.0
  %1055 = vmatprep.subr.mxu0 0.0
  %1056 = vmatpush1.msra.mxu0 0.0
  %1057 = vmatprep.subr.mxu0 0.0
  %1058 = vmatpush1.msra.mxu0 0.0
  %1059 = vmatprep.subr.mxu0 0.0
  %1060 = vmatpush1.msra.mxu0 0.0
  %1061 = vmatprep.subr.mxu0 0.0
  %1062 = vmatpush1.msra.mxu0 0.0
  %1063 = vmatprep.subr.mxu0 0.0
  %1064 = vmatpush1.msra.mxu0 0.0
  %1065 = vmatprep.subr.mxu0 0.0
  %1066 = vmatpush1.msra.mxu0 0.0
  %1067 = vmatprep.subr.mxu0 0.0
  %1068 = vmatpush1.msra.mxu0 0.0
  %1069 = vmatprep.subr.mxu0 0.0
  %1070 = vmatpush1.msra.mxu0 0.0
  %1071 = vmatprep.subr.mxu0 0.0
  %1072 = vmatpush1.msra.mxu0 0.0
  %1073 = vmatprep.subr.mxu0 0.0
  %1074 = vmatpush1.msra.mxu0 0.0
  %1075 = vmatprep.subr.mxu0 0.0
  %1076 = vmatpush1.msra.mxu0 0.0
  %1077 = vmatprep.subr.mxu0 0.0
  %1078 = vmatpush1.msra.mxu0 0.0
  %1079 = vmatprep.subr.mxu0 0.0
  %1080 = vmatpush1.msra.mxu0 0.0
  %1081 = vmatprep.subr.mxu0 0.0
  %1082 = vmatpush1.msra.mxu0 0.0
  %1083 = vmatprep.subr.mxu0 0.0
  %1084 = vmatpush1.msra.mxu0 0.0
  %1085 = vmatprep.subr.mxu0 0.0
  %1086 = vmatpush1.msra.mxu0 0.0
  %1087 = vmatprep.subr.mxu0 0.0
  %1088 = vmatpush1.msra.mxu0 0.0
  %1089 = vmatprep.subr.mxu0 0.0
  %1090 = vmatpush1.msra.mxu0 0.0
  %1091 = vmatprep.subr.mxu0 0.0
  %1092 = vmatpush1.msra.mxu0 0.0
  %1093 = vmatprep.subr.mxu0 0.0
  %1094 = vmatpush1.msra.mxu0 0.0
  %1095 = vmatprep.subr.mxu0 0.0
  %1096 = vmatpush1.msra.mxu0 0.0
  %1097 = vmatprep.mubr.f32.mxu0 0.0
  %1098 = vmatmul.mubr.f32.gmra.mrb[0].mxu0 %v1031
  %v1099 = vpop.f32.mrb[0].mxu0
  %v1100 = vadd.f32 %v592, %v1099
  %v1101 = vpop.f32.mrb[0].mxu0
  %1102 = vdwg.mxu0
  %v1103 = vadd.f32 %v581, %v1100
  %v1104 = vxor.u32 %v1103, 2147483648
  %v1105 = vmul.f32 %v1104, 1.442695
  %v1106 = vpow.pop %v1105
  %v1107 = vadd.f32 %v1106, 1.0
  %v1108 = vrcp.pop %v1107
  %v1109 = vmul.f32 1.0, %v1108
  %1111 = vrot.lane.b32.xlu0 %v1100, 64
  %v1112 = vpop.permute.xlu0 %1111
  %v1114 = vmul.f32 %v1109, %v1112
  %1116 = vrot.lane.b32.xlu0 %v1114, 64
  %v1117 = vpop.permute.xlu0 %1116
  %v1119 = vadd.f32 %v581, %v1117
  %v1120 = vtanh.pop %v1119
  %v1121 = vsub.f32 1.0, %v1109
  %1123 = vrot.lane.b32.xlu0 %v1120, 96
  %v1124 = vpop.permute.xlu0 %1123
  %v1126 = vmul.f32 %v1121, %v1124
  %v1128 = vmul.f32 %v1109, %v1028
  %v1129 = vadd.f32 %v1126, %v1128
  %1131 = vrot.lane.b32.xlu0 %v1129, 96
  %v1132 = vpop.permute.xlu0 %1131
  %1134 = vst.msk [vmem:[#allocation2 + $0x8] sm:$0x3] %vm696, %v1132
  %v1135 = vsel %vm146, %v1132, 0
  %1137 = vmatprep.subr.mxu0 0.0
  %1138 = vmatpush1.msra.mxu0 %v584
  %1139 = vmatprep.subr.mxu0 0.0
  %1140 = vmatpush1.msra.mxu0 %v585
  %1141 = vmatprep.subr.mxu0 0.0
  %1142 = vmatpush1.msra.mxu0 %v586
  %1143 = vmatprep.subr.mxu0 0.0
  %1144 = vmatpush1.msra.mxu0 %v587
  %1145 = vmatprep.subr.mxu0 0.0
  %1146 = vmatpush1.msra.mxu0 0.0
  %1147 = vmatprep.subr.mxu0 0.0
  %1148 = vmatpush1.msra.mxu0 0.0
  %1149 = vmatprep.subr.mxu0 0.0
  %1150 = vmatpush1.msra.mxu0 0.0
  %1151 = vmatprep.subr.mxu0 0.0
  %1152 = vmatpush1.msra.mxu0 0.0
  %1153 = vmatprep.subr.mxu0 0.0
  %1154 = vmatpush1.msra.mxu0 0.0
  %1155 = vmatprep.subr.mxu0 0.0
  %1156 = vmatpush1.msra.mxu0 0.0
  %1157 = vmatprep.subr.mxu0 0.0
  %1158 = vmatpush1.msra.mxu0 0.0
  %1159 = vmatprep.subr.mxu0 0.0
  %1160 = vmatpush1.msra.mxu0 0.0
  %1161 = vmatprep.subr.mxu0 0.0
  %1162 = vmatpush1.msra.mxu0 0.0
  %1163 = vmatprep.subr.mxu0 0.0
  %1164 = vmatpush1.msra.mxu0 0.0
  %1165 = vmatprep.subr.mxu0 0.0
  %1166 = vmatpush1.msra.mxu0 0.0
  %1167 = vmatprep.subr.mxu0 0.0
  %1168 = vmatpush1.msra.mxu0 0.0
  %1169 = vmatprep.subr.mxu0 0.0
  %1170 = vmatpush1.msra.mxu0 0.0
  %1171 = vmatprep.subr.mxu0 0.0
  %1172 = vmatpush1.msra.mxu0 0.0
  %1173 = vmatprep.subr.mxu0 0.0
  %1174 = vmatpush1.msra.mxu0 0.0
  %1175 = vmatprep.subr.mxu0 0.0
  %1176 = vmatpush1.msra.mxu0 0.0
  %1177 = vmatprep.subr.mxu0 0.0
  %1178 = vmatpush1.msra.mxu0 0.0
  %1179 = vmatprep.subr.mxu0 0.0
  %1180 = vmatpush1.msra.mxu0 0.0
  %1181 = vmatprep.subr.mxu0 0.0
  %1182 = vmatpush1.msra.mxu0 0.0
  %1183 = vmatprep.subr.mxu0 0.0
  %1184 = vmatpush1.msra.mxu0 0.0
  %1185 = vmatprep.subr.mxu0 0.0
  %1186 = vmatpush1.msra.mxu0 0.0
  %1187 = vmatprep.subr.mxu0 0.0
  %1188 = vmatpush1.msra.mxu0 0.0
  %1189 = vmatprep.subr.mxu0 0.0
  %1190 = vmatpush1.msra.mxu0 0.0
  %1191 = vmatprep.subr.mxu0 0.0
  %1192 = vmatpush1.msra.mxu0 0.0
  %1193 = vmatprep.subr.mxu0 0.0
  %1194 = vmatpush1.msra.mxu0 0.0
  %1195 = vmatprep.subr.mxu0 0.0
  %1196 = vmatpush1.msra.mxu0 0.0
  %1197 = vmatprep.subr.mxu0 0.0
  %1198 = vmatpush1.msra.mxu0 0.0
  %1199 = vmatprep.subr.mxu0 0.0
  %1200 = vmatpush1.msra.mxu0 0.0
  %1201 = vmatprep.mubr.f32.mxu0 0.0
  %1202 = vmatmul.mubr.f32.gmra.mrb[0].mxu0 %v1135
  %v1203 = vpop.f32.mrb[0].mxu0
  %v1204 = vadd.f32 %v592, %v1203
  %v1205 = vpop.f32.mrb[0].mxu0
  %1206 = vdwg.mxu0
  %v1208 = vrot.slane %v1204, 6
  %v1210 = vadd.f32 %v581, %v1208
  %v1211 = vxor.u32 %v1210, 2147483648
  %v1212 = vmul.f32 %v1211, 1.442695
  %v1213 = vpow.pop %v1212
  %v1214 = vadd.f32 %v1213, 1.0
  %v1215 = vrcp.pop %v1214
  %v1216 = vmul.f32 1.0, %v1215
  %1217 = vrot.lane.b32.xlu0 %v1208, 64
  %v1218 = vpop.permute.xlu0 %1217
  %v1220 = vmul.f32 %v1216, %v1218
  %1222 = vrot.lane.b32.xlu0 %v1220, 64
  %v1223 = vpop.permute.xlu0 %1222
  %v1225 = vadd.f32 %v581, %v1223
  %v1226 = vtanh.pop %v1225
  %v1227 = vsub.f32 1.0, %v1216
  %1229 = vrot.lane.b32.xlu0 %v1226, 96
  %v1230 = vpop.permute.xlu0 %1229
  %v1232 = vmul.f32 %v1227, %v1230
  %v1233 = vrot.slane %v1129, 6
  %v1235 = vmul.f32 %v1216, %v1233
  %v1236 = vadd.f32 %v1232, %v1235
  %1238 = vrot.lane.b32.xlu0 %v1236, 96
  %v1239 = vpop.permute.xlu0 %1238
  %1241 = vst.msk [vmem:[#allocation2 + $0x8] sm:$0xc] %vm804, %v1239
  %v1242 = vrot.slane %v1236, 2
  %1243 = vrot.lane.b32.xlu0 %v1242, 96
  %v1244 = vpop.permute.xlu0 %1243
  %v1245 = vsel %vm146, %v1244, 0
  %1247 = vmatprep.subr.mxu0 0.0
  %1248 = vmatpush1.msra.mxu0 %v584
  %1249 = vmatprep.subr.mxu0 0.0
  %1250 = vmatpush1.msra.mxu0 %v585
  %1251 = vmatprep.subr.mxu0 0.0
  %1252 = vmatpush1.msra.mxu0 %v586
  %1253 = vmatprep.subr.mxu0 0.0
  %1254 = vmatpush1.msra.mxu0 %v587
  %1255 = vmatprep.subr.mxu0 0.0
  %1256 = vmatpush1.msra.mxu0 0.0
  %1257 = vmatprep.subr.mxu0 0.0
  %1258 = vmatpush1.msra.mxu0 0.0
  %1259 = vmatprep.subr.mxu0 0.0
  %1260 = vmatpush1.msra.mxu0 0.0
  %1261 = vmatprep.subr.mxu0 0.0
  %1262 = vmatpush1.msra.mxu0 0.0
  %1263 = vmatprep.subr.mxu0 0.0
  %1264 = vmatpush1.msra.mxu0 0.0
  %1265 = vmatprep.subr.mxu0 0.0
  %1266 = vmatpush1.msra.mxu0 0.0
  %1267 = vmatprep.subr.mxu0 0.0
  %1268 = vmatpush1.msra.mxu0 0.0
  %1269 = vmatprep.subr.mxu0 0.0
  %1270 = vmatpush1.msra.mxu0 0.0
  %1271 = vmatprep.subr.mxu0 0.0
  %1272 = vmatpush1.msra.mxu0 0.0
  %1273 = vmatprep.subr.mxu0 0.0
  %1274 = vmatpush1.msra.mxu0 0.0
  %1275 = vmatprep.subr.mxu0 0.0
  %1276 = vmatpush1.msra.mxu0 0.0
  %1277 = vmatprep.subr.mxu0 0.0
  %1278 = vmatpush1.msra.mxu0 0.0
  %1279 = vmatprep.subr.mxu0 0.0
  %1280 = vmatpush1.msra.mxu0 0.0
  %1281 = vmatprep.subr.mxu0 0.0
  %1282 = vmatpush1.msra.mxu0 0.0
  %1283 = vmatprep.subr.mxu0 0.0
  %1284 = vmatpush1.msra.mxu0 0.0
  %1285 = vmatprep.subr.mxu0 0.0
  %1286 = vmatpush1.msra.mxu0 0.0
  %1287 = vmatprep.subr.mxu0 0.0
  %1288 = vmatpush1.msra.mxu0 0.0
  %1289 = vmatprep.subr.mxu0 0.0
  %1290 = vmatpush1.msra.mxu0 0.0
  %1291 = vmatprep.subr.mxu0 0.0
  %1292 = vmatpush1.msra.mxu0 0.0
  %1293 = vmatprep.subr.mxu0 0.0
  %1294 = vmatpush1.msra.mxu0 0.0
  %1295 = vmatprep.subr.mxu0 0.0
  %1296 = vmatpush1.msra.mxu0 0.0
  %1297 = vmatprep.subr.mxu0 0.0
  %1298 = vmatpush1.msra.mxu0 0.0
  %1299 = vmatprep.subr.mxu0 0.0
  %1300 = vmatpush1.msra.mxu0 0.0
  %1301 = vmatprep.subr.mxu0 0.0
  %1302 = vmatpush1.msra.mxu0 0.0
  %1303 = vmatprep.subr.mxu0 0.0
  %1304 = vmatpush1.msra.mxu0 0.0
  %1305 = vmatprep.subr.mxu0 0.0
  %1306 = vmatpush1.msra.mxu0 0.0
  %1307 = vmatprep.subr.mxu0 0.0
  %1308 = vmatpush1.msra.mxu0 0.0
  %1309 = vmatprep.subr.mxu0 0.0
  %1310 = vmatpush1.msra.mxu0 0.0
  %1311 = vmatprep.mubr.f32.mxu0 0.0
  %1312 = vmatmul.mubr.f32.gmra.mrb[0].mxu0 %v1245
  %v1313 = vpop.f32.mrb[0].mxu0
  %v1314 = vadd.f32 %v592, %v1313
  %v1315 = vpop.f32.mrb[0].mxu0
  %1316 = vdwg.mxu0
  %v1318 = vrot.slane %v1314, 4
  %v1320 = vadd.f32 %v581, %v1318
  %v1321 = vxor.u32 %v1320, 2147483648
  %v1322 = vmul.f32 %v1321, 1.442695
  %v1323 = vpow.pop %v1322
  %v1324 = vadd.f32 %v1323, 1.0
  %v1325 = vrcp.pop %v1324
  %v1326 = vmul.f32 1.0, %v1325
  %1327 = vrot.lane.b32.xlu0 %v1318, 64
  %v1328 = vpop.permute.xlu0 %1327
  %v1330 = vmul.f32 %v1326, %v1328
  %1332 = vrot.lane.b32.xlu0 %v1330, 64
  %v1333 = vpop.permute.xlu0 %1332
  %v1335 = vadd.f32 %v581, %v1333
  %v1336 = vtanh.pop %v1335
  %v1337 = vsub.f32 1.0, %v1326
  %1339 = vrot.lane.b32.xlu0 %v1336, 96
  %v1340 = vpop.permute.xlu0 %1339
  %v1342 = vmul.f32 %v1337, %v1340
  %v1343 = vrot.slane %v1236, 6
  %v1345 = vmul.f32 %v1326, %v1343
  %v1346 = vadd.f32 %v1342, %v1345
  %1348 = vrot.lane.b32.xlu0 %v1346, 96
  %v1349 = vpop.permute.xlu0 %1348
  %1351 = vst.msk [vmem:[#allocation2 + $0x8] sm:$0x30] %vm915, %v1349
  %v1352 = vrot.slane %v1346, 4
  %1353 = vrot.lane.b32.xlu0 %v1352, 96
  %v1354 = vpop.permute.xlu0 %1353
  %v1355 = vsel %vm146, %v1354, 0
  %1357 = vmatprep.subr.mxu0 0.0
  %1358 = vmatpush1.msra.mxu0 %v584
  %1359 = vmatprep.subr.mxu0 0.0
  %1360 = vmatpush1.msra.mxu0 %v585
  %1361 = vmatprep.subr.mxu0 0.0
  %1362 = vmatpush1.msra.mxu0 %v586
  %1363 = vmatprep.subr.mxu0 0.0
  %1364 = vmatpush1.msra.mxu0 %v587
  %1365 = vmatprep.subr.mxu0 0.0
  %1366 = vmatpush1.msra.mxu0 0.0
  %1367 = vmatprep.subr.mxu0 0.0
  %1368 = vmatpush1.msra.mxu0 0.0
  %1369 = vmatprep.subr.mxu0 0.0
  %1370 = vmatpush1.msra.mxu0 0.0
  %1371 = vmatprep.subr.mxu0 0.0
  %1372 = vmatpush1.msra.mxu0 0.0
  %1373 = vmatprep.subr.mxu0 0.0
  %1374 = vmatpush1.msra.mxu0 0.0
  %1375 = vmatprep.subr.mxu0 0.0
  %1376 = vmatpush1.msra.mxu0 0.0
  %1377 = vmatprep.subr.mxu0 0.0
  %1378 = vmatpush1.msra.mxu0 0.0
  %1379 = vmatprep.subr.mxu0 0.0
  %1380 = vmatpush1.msra.mxu0 0.0
  %1381 = vmatprep.subr.mxu0 0.0
  %1382 = vmatpush1.msra.mxu0 0.0
  %1383 = vmatprep.subr.mxu0 0.0
  %1384 = vmatpush1.msra.mxu0 0.0
  %1385 = vmatprep.subr.mxu0 0.0
  %1386 = vmatpush1.msra.mxu0 0.0
  %1387 = vmatprep.subr.mxu0 0.0
  %1388 = vmatpush1.msra.mxu0 0.0
  %1389 = vmatprep.subr.mxu0 0.0
  %1390 = vmatpush1.msra.mxu0 0.0
  %1391 = vmatprep.subr.mxu0 0.0
  %1392 = vmatpush1.msra.mxu0 0.0
  %1393 = vmatprep.subr.mxu0 0.0
  %1394 = vmatpush1.msra.mxu0 0.0
  %1395 = vmatprep.subr.mxu0 0.0
  %1396 = vmatpush1.msra.mxu0 0.0
  %1397 = vmatprep.subr.mxu0 0.0
  %1398 = vmatpush1.msra.mxu0 0.0
  %1399 = vmatprep.subr.mxu0 0.0
  %1400 = vmatpush1.msra.mxu0 0.0
  %1401 = vmatprep.subr.mxu0 0.0
  %1402 = vmatpush1.msra.mxu0 0.0
  %1403 = vmatprep.subr.mxu0 0.0
  %1404 = vmatpush1.msra.mxu0 0.0
  %1405 = vmatprep.subr.mxu0 0.0
  %1406 = vmatpush1.msra.mxu0 0.0
  %1407 = vmatprep.subr.mxu0 0.0
  %1408 = vmatpush1.msra.mxu0 0.0
  %1409 = vmatprep.subr.mxu0 0.0
  %1410 = vmatpush1.msra.mxu0 0.0
  %1411 = vmatprep.subr.mxu0 0.0
  %1412 = vmatpush1.msra.mxu0 0.0
  %1413 = vmatprep.subr.mxu0 0.0
  %1414 = vmatpush1.msra.mxu0 0.0
  %1415 = vmatprep.subr.mxu0 0.0
  %1416 = vmatpush1.msra.mxu0 0.0
  %1417 = vmatprep.subr.mxu0 0.0
  %1418 = vmatpush1.msra.mxu0 0.0
  %1419 = vmatprep.subr.mxu0 0.0
  %1420 = vmatpush1.msra.mxu0 0.0
  %1421 = vmatprep.mubr.f32.mxu0 0.0
  %1422 = vmatmul.mubr.f32.gmra.mrb[0].mxu0 %v1355
  %v1423 = vpop.f32.mrb[0].mxu0
  %v1424 = vadd.f32 %v592, %v1423
  %v1425 = vpop.f32.mrb[0].mxu0
  %1426 = vdwg.mxu0
  %v1428 = vrot.slane %v1424, 2
  %v1430 = vadd.f32 %v581, %v1428
  %v1431 = vxor.u32 %v1430, 2147483648
  %v1432 = vmul.f32 %v1431, 1.442695
  %v1433 = vpow.pop %v1432
  %v1434 = vadd.f32 %v1433, 1.0
  %v1435 = vrcp.pop %v1434
  %v1436 = vmul.f32 1.0, %v1435
  %1437 = vrot.lane.b32.xlu0 %v1428, 64
  %v1438 = vpop.permute.xlu0 %1437
  %v1440 = vmul.f32 %v1436, %v1438
  %1442 = vrot.lane.b32.xlu0 %v1440, 64
  %v1443 = vpop.permute.xlu0 %1442
  %v1445 = vadd.f32 %v581, %v1443
  %v1446 = vtanh.pop %v1445
  %v1447 = vsub.f32 1.0, %v1436
  %1449 = vrot.lane.b32.xlu0 %v1446, 96
  %v1450 = vpop.permute.xlu0 %1449
  %v1452 = vmul.f32 %v1447, %v1450
  %v1453 = vrot.slane %v1346, 6
  %v1455 = vmul.f32 %v1436, %v1453
  %v1456 = vadd.f32 %v1452, %v1455
  %1458 = vrot.lane.b32.xlu0 %v1456, 96
  %v1459 = vpop.permute.xlu0 %1458
  %1461 = vst.msk [vmem:[#allocation2 + $0x8] sm:$0xc0] %vm1026, %v1459
  %v1462 = vld [vmem:[#allocation2] sm:$0xff]
  %v1463 = vld [vmem:[#allocation2 + $0x8] sm:$0xff]
  %v1464 = vld [vmem:[%s9] sm:$0xff]
  %v1465 = vld [vmem:[%s9 + $0x8] sm:$0xff]
  %v1466 = vld [vmem:[%s9 + $0x10] sm:$0xff]
  %v1467 = vld [vmem:[%s9 + $0x18] sm:$0xff]
  %v1468 = vld [vmem:[%s10] sm:$0x1]
  %v1470 = vlaneseq
  %v1471 = vshrl.u32 %v1470, 7
  %v1472 = vsub.s32 0, %v1471
  %v1473 = vrot.slane %v1468, %v1472
  %v1476 = vsel %vm146, %v1462, 0
  %v1479 = vsel %vm146, %v1463, 0
  %1481 = vmatprep.subr.mxu0 0.0
  %1482 = vmatpush1.msra.mxu0 %v1464
  %1483 = vmatprep.subr.mxu0 0.0
  %1484 = vmatpush1.msra.mxu0 %v1465
  %1485 = vmatprep.subr.mxu0 0.0
  %1486 = vmatpush1.msra.mxu0 %v1466
  %1487 = vmatprep.subr.mxu0 0.0
  %1488 = vmatpush1.msra.mxu0 %v1467
  %1489 = vmatprep.subr.mxu0 0.0
  %1490 = vmatpush1.msra.mxu0 0.0
  %1491 = vmatprep.subr.mxu0 0.0
  %1492 = vmatpush1.msra.mxu0 0.0
  %1493 = vmatprep.subr.mxu0 0.0
  %1494 = vmatpush1.msra.mxu0 0.0
  %1495 = vmatprep.subr.mxu0 0.0
  %1496 = vmatpush1.msra.mxu0 0.0
  %1497 = vmatprep.subr.mxu0 0.0
  %1498 = vmatpush1.msra.mxu0 0.0
  %1499 = vmatprep.subr.mxu0 0.0
  %1500 = vmatpush1.msra.mxu0 0.0
  %1501 = vmatprep.subr.mxu0 0.0
  %1502 = vmatpush1.msra.mxu0 0.0
  %1503 = vmatprep.subr.mxu0 0.0
  %1504 = vmatpush1.msra.mxu0 0.0
  %1505 = vmatprep.subr.mxu0 0.0
  %1506 = vmatpush1.msra.mxu0 0.0
  %1507 = vmatprep.subr.mxu0 0.0
  %1508 = vmatpush1.msra.mxu0 0.0
  %1509 = vmatprep.subr.mxu0 0.0
  %1510 = vmatpush1.msra.mxu0 0.0
  %1511 = vmatprep.subr.mxu0 0.0
  %1512 = vmatpush1.msra.mxu0 0.0
  %1513 = vmatprep.subr.mxu0 0.0
  %1514 = vmatpush1.msra.mxu0 0.0
  %1515 = vmatprep.subr.mxu0 0.0
  %1516 = vmatpush1.msra.mxu0 0.0
  %1517 = vmatprep.subr.mxu0 0.0
  %1518 = vmatpush1.msra.mxu0 0.0
  %1519 = vmatprep.subr.mxu0 0.0
  %1520 = vmatpush1.msra.mxu0 0.0
  %1521 = vmatprep.subr.mxu0 0.0
  %1522 = vmatpush1.msra.mxu0 0.0
  %1523 = vmatprep.subr.mxu0 0.0
  %1524 = vmatpush1.msra.mxu0 0.0
  %1525 = vmatprep.subr.mxu0 0.0
  %1526 = vmatpush1.msra.mxu0 0.0
  %1527 = vmatprep.subr.mxu0 0.0
  %1528 = vmatpush1.msra.mxu0 0.0
  %1529 = vmatprep.subr.mxu0 0.0
  %1530 = vmatpush1.msra.mxu0 0.0
  %1531 = vmatprep.subr.mxu0 0.0
  %1532 = vmatpush1.msra.mxu0 0.0
  %1533 = vmatprep.subr.mxu0 0.0
  %1534 = vmatpush1.msra.mxu0 0.0
  %1535 = vmatprep.subr.mxu0 0.0
  %1536 = vmatpush1.msra.mxu0 0.0
  %1537 = vmatprep.subr.mxu0 0.0
  %1538 = vmatpush1.msra.mxu0 0.0
  %1539 = vmatprep.subr.mxu0 0.0
  %1540 = vmatpush1.msra.mxu0 0.0
  %1541 = vmatprep.subr.mxu0 0.0
  %1542 = vmatpush1.msra.mxu0 0.0
  %1543 = vmatprep.subr.mxu0 0.0
  %1544 = vmatpush1.msra.mxu0 0.0
  %1545 = vmatprep.mubr.f32.mxu0 0.0
  %1546 = vmatmul.mubr.f32.gmra.mrb[0].mxu0 %v1476
  %v1547 = vpop.f32.mrb[0].mxu0
  %v1548 = vadd.f32 %v1473, %v1547
  %v1549 = vpop.f32.mrb[0].mxu0
  %1550 = vmatprep.mubr.f32.mxu0 0.0
  %1551 = vmatmul.mubr.f32.gmra.mrb[0].mxu0 %v1479
  %v1552 = vpop.f32.mrb[0].mxu0
  %v1553 = vadd.f32 %v1473, %v1552
  %v1554 = vpop.f32.mrb[0].mxu0
  %1555 = vdwg.mxu0
  %1556 = vst.msk [vmem:[%s11] sm:$0xff] %vm234, %v1548
  %1557 = vst.msk [vmem:[%s11 + $0x8] sm:$0xff] %vm234, %v1553
  // Predicated region
  $region46: #{autoencoder_forward.2} parent=0 // pred_check
    _
  $region47: #{autoencoder_forward.2} parent=0 // pred_check_branch
    %1559 = sbr.rel (0) target = $region49
  $region48: #{autoencoder_forward.2} parent=0 // pred_region
    _
  $region49: #{autoencoder_forward.2} parent=0 // pred_fallthru
    _
  // Predicated region
  $region50: #{autoencoder_forward.2} parent=0 // pred_check
    _
  $region51: #{autoencoder_forward.2} parent=0 // pred_check_branch
    %1561 = sbr.rel (0) target = $region53
  $region52: #{autoencoder_forward.2} parent=0 // pred_region
    _
  $region53: #{autoencoder_forward.2} parent=0 // pred_fallthru
    _

// kernel: autoencoder_forward.3
$region0: #{autoencoder_forward.3}
  #allocation0 [shape = 'u32[]', space=smem, size = 0x4, offset = 0x4, fixed_abs, tag = 'smem constant byte address 0x4 - core index']
  #allocation1 [shape = 'u32[144,128]{1,0:T(1,128)}', space=vmem, size = 0x12000, scoped, tag = 'internal scratch']
  #allocation2 [shape = 'f32[16,32]{1,0:T(8,128)}', space=vmem, size = 0x2000, scoped, tag = 'scratch operand']
  %s0 = inlined_call_operand.vmem [shape: f32[16,1], index: 0, kind: input, shape index: {}]
  %s1 = inlined_call_operand.vmem [shape: f32[16,1], index: 1, kind: input, shape index: {}]
  %s2 = inlined_call_operand.vmem [shape: f32[16,16], index: 2, kind: input, shape index: {}]
  %s3 = inlined_call_operand.vmem [shape: f32[1,32], index: 3, kind: input, shape index: {}]
  %s4 = inlined_call_operand.vmem [shape: f32[1,32,32], index: 4, kind: input, shape index: {}]
  %s5 = inlined_call_operand.vmem [shape: f32[6,32], index: 5, kind: input, shape index: {}]
  %s6 = inlined_call_operand.vmem [shape: f32[1,32], index: 6, kind: input, shape index: {}]
  %s7 = inlined_call_operand.vmem [shape: f32[1,32,32], index: 7, kind: input, shape index: {}]
  %s8 = inlined_call_operand.vmem [shape: f32[6,32], index: 8, kind: input, shape index: {}]
  %s9 = inlined_call_operand.vmem [shape: f32[16,32], index: 9, kind: input, shape index: {}]
  %s10 = inlined_call_operand.vmem [shape: f32[1,32,32], index: 10, kind: input, shape index: {}]
  %s11 = inlined_call_operand.vmem [shape: f32[6,32], index: 11, kind: input, shape index: {}]
  %s12 = inlined_call_operand.vmem [shape: f32[96,96], index: 12, kind: input, shape index: {}]
  %s13 = inlined_call_operand.vmem [shape: f32[32,96], index: 13, kind: input, shape index: {}]
  %s14 = inlined_call_operand.vmem [shape: f32[2,96], index: 14, kind: input, shape index: {}]
  %s15 = inlined_call_operand.vmem [shape: f32[128,32], index: 15, kind: input, shape index: {}]
  %s16 = inlined_call_operand.vmem [shape: f32[1,32,32], index: 16, kind: input, shape index: {}]
  %s17 = inlined_call_operand.vmem [shape: f32[6,32], index: 17, kind: input, shape index: {}]
  %s18 = inlined_call_operand.vmem [shape: f32[32,13], index: 18, kind: input, shape index: {}]
  %s19 = inlined_call_operand.vmem [shape: f32[1,13], index: 19, kind: input, shape index: {}]
  %s20 = inlined_call_operand.vmem [shape: f32[16,13], index: 20, kind: output, shape index: {}]
  %s21 = sld [smem:[#allocation0]]
  $region90: #{autoencoder_forward.3} parent=0
    _
  %s23 = ssub.s32 1, %s21
  %s24 = scalar_select 0, %s23, %s21
  // Predicated region
  $region2: #{autoencoder_forward.3} parent=0 // pred_check
    _
  $region3: #{autoencoder_forward.3} parent=0 // pred_check_branch
    %26 = sbr.rel (0) target = $region5
  $region4: #{autoencoder_forward.3} parent=0 // pred_region
    _
  $region5: #{autoencoder_forward.3} parent=0 // pred_fallthru
    _
  // Predicated region
  $region6: #{autoencoder_forward.3} parent=0 // pred_check
    _
  $region7: #{autoencoder_forward.3} parent=0 // pred_check_branch
    %28 = sbr.rel (0) target = $region9
  $region8: #{autoencoder_forward.3} parent=0 // pred_region
    _
  $region9: #{autoencoder_forward.3} parent=0 // pred_fallthru
    _
  // Predicated region
  $region10: #{autoencoder_forward.3} parent=0 // pred_check
    _
  $region11: #{autoencoder_forward.3} parent=0 // pred_check_branch
    %30 = sbr.rel (0) target = $region13
  $region12: #{autoencoder_forward.3} parent=0 // pred_region
    _
  $region13: #{autoencoder_forward.3} parent=0 // pred_fallthru
    _
  // Predicated region
  $region14: #{autoencoder_forward.3} parent=0 // pred_check
    _
  $region15: #{autoencoder_forward.3} parent=0 // pred_check_branch
    %32 = sbr.rel (0) target = $region17
  $region16: #{autoencoder_forward.3} parent=0 // pred_region
    _
  $region17: #{autoencoder_forward.3} parent=0 // pred_fallthru
    _
  // Predicated region
  $region18: #{autoencoder_forward.3} parent=0 // pred_check
    _
  $region19: #{autoencoder_forward.3} parent=0 // pred_check_branch
    %34 = sbr.rel (0) target = $region21
  $region20: #{autoencoder_forward.3} parent=0 // pred_region
    _
  $region21: #{autoencoder_forward.3} parent=0 // pred_fallthru
    _
  // Predicated region
  $region22: #{autoencoder_forward.3} parent=0 // pred_check
    _
  $region23: #{autoencoder_forward.3} parent=0 // pred_check_branch
    %36 = sbr.rel (0) target = $region25
  $region24: #{autoencoder_forward.3} parent=0 // pred_region
    _
  $region25: #{autoencoder_forward.3} parent=0 // pred_fallthru
    _
  // Predicated region
  $region26: #{autoencoder_forward.3} parent=0 // pred_check
    _
  $region27: #{autoencoder_forward.3} parent=0 // pred_check_branch
    %38 = sbr.rel (0) target = $region29
  $region28: #{autoencoder_forward.3} parent=0 // pred_region
    _
  $region29: #{autoencoder_forward.3} parent=0 // pred_fallthru
    _
  // Predicated region
  $region30: #{autoencoder_forward.3} parent=0 // pred_check
    _
  $region31: #{autoencoder_forward.3} parent=0 // pred_check_branch
    %40 = sbr.rel (0) target = $region33
  $region32: #{autoencoder_forward.3} parent=0 // pred_region
    _
  $region33: #{autoencoder_forward.3} parent=0 // pred_fallthru
    _
  // Predicated region
  $region34: #{autoencoder_forward.3} parent=0 // pred_check
    _
  $region35: #{autoencoder_forward.3} parent=0 // pred_check_branch
    %42 = sbr.rel (0) target = $region37
  $region36: #{autoencoder_forward.3} parent=0 // pred_region
    _
  $region37: #{autoencoder_forward.3} parent=0 // pred_fallthru
    _
  // Predicated region
  $region38: #{autoencoder_forward.3} parent=0 // pred_check
    _
  $region39: #{autoencoder_forward.3} parent=0 // pred_check_branch
    %44 = sbr.rel (0) target = $region41
  $region40: #{autoencoder_forward.3} parent=0 // pred_region
    _
  $region41: #{autoencoder_forward.3} parent=0 // pred_fallthru
    _
  // Predicated region
  $region42: #{autoencoder_forward.3} parent=0 // pred_check
    _
  $region43: #{autoencoder_forward.3} parent=0 // pred_check_branch
    %46 = sbr.rel (0) target = $region45
  $region44: #{autoencoder_forward.3} parent=0 // pred_region
    _
  $region45: #{autoencoder_forward.3} parent=0 // pred_fallthru
    _
  // Predicated region
  $region46: #{autoencoder_forward.3} parent=0 // pred_check
    _
  $region47: #{autoencoder_forward.3} parent=0 // pred_check_branch
    %48 = sbr.rel (0) target = $region49
  $region48: #{autoencoder_forward.3} parent=0 // pred_region
    _
  $region49: #{autoencoder_forward.3} parent=0 // pred_fallthru
    _
  // Predicated region
  $region50: #{autoencoder_forward.3} parent=0 // pred_check
    _
  $region51: #{autoencoder_forward.3} parent=0 // pred_check_branch
    %50 = sbr.rel (0) target = $region53
  $region52: #{autoencoder_forward.3} parent=0 // pred_region
    _
  $region53: #{autoencoder_forward.3} parent=0 // pred_fallthru
    _
  // Predicated region
  $region54: #{autoencoder_forward.3} parent=0 // pred_check
    _
  $region55: #{autoencoder_forward.3} parent=0 // pred_check_branch
    %52 = sbr.rel (0) target = $region57
  $region56: #{autoencoder_forward.3} parent=0 // pred_region
    _
  $region57: #{autoencoder_forward.3} parent=0 // pred_fallthru
    _
  // Predicated region
  $region58: #{autoencoder_forward.3} parent=0 // pred_check
    _
  $region59: #{autoencoder_forward.3} parent=0 // pred_check_branch
    %54 = sbr.rel (0) target = $region61
  $region60: #{autoencoder_forward.3} parent=0 // pred_region
    _
  $region61: #{autoencoder_forward.3} parent=0 // pred_fallthru
    _
  // Predicated region
  $region62: #{autoencoder_forward.3} parent=0 // pred_check
    _
  $region63: #{autoencoder_forward.3} parent=0 // pred_check_branch
    %56 = sbr.rel (0) target = $region65
  $region64: #{autoencoder_forward.3} parent=0 // pred_region
    _
  $region65: #{autoencoder_forward.3} parent=0 // pred_fallthru
    _
  // Predicated region
  $region66: #{autoencoder_forward.3} parent=0 // pred_check
    _
  $region67: #{autoencoder_forward.3} parent=0 // pred_check_branch
    %58 = sbr.rel (0) target = $region69
  $region68: #{autoencoder_forward.3} parent=0 // pred_region
    _
  $region69: #{autoencoder_forward.3} parent=0 // pred_fallthru
    _
  // Predicated region
  $region70: #{autoencoder_forward.3} parent=0 // pred_check
    _
  $region71: #{autoencoder_forward.3} parent=0 // pred_check_branch
    %60 = sbr.rel (0) target = $region73
  $region72: #{autoencoder_forward.3} parent=0 // pred_region
    _
  $region73: #{autoencoder_forward.3} parent=0 // pred_fallthru
    _
  // Predicated region
  $region74: #{autoencoder_forward.3} parent=0 // pred_check
    _
  $region75: #{autoencoder_forward.3} parent=0 // pred_check_branch
    %62 = sbr.rel (0) target = $region77
  $region76: #{autoencoder_forward.3} parent=0 // pred_region
    _
  $region77: #{autoencoder_forward.3} parent=0 // pred_fallthru
    _
  // Predicated region
  $region78: #{autoencoder_forward.3} parent=0 // pred_check
    _
  $region79: #{autoencoder_forward.3} parent=0 // pred_check_branch
    %64 = sbr.rel (0) target = $region81
  $region80: #{autoencoder_forward.3} parent=0 // pred_region
    _
  $region81: #{autoencoder_forward.3} parent=0 // pred_fallthru
    _
  %v65 = vld [vmem:[%s0] sm:$0xff]
  %v66 = vld [vmem:[%s0 + $0x8] sm:$0xff]
  %v67 = vld [vmem:[%s3] sm:$0x1]
  %69 = vset.pattern.permute.xlu0 0
  %70 = vperm.xlu0 %69, %v65
  %v71 = vpop.permute.xlu0 %70
  %74 = vset.pattern.permute.xlu0 0
  %75 = vperm.xlu0 %74, %v66
  %v76 = vpop.permute.xlu0 %75
  %v79 = vlaneseq
  %v80 = vshrl.u32 %v79, 7
  %v81 = vsub.s32 0, %v80
  %v82 = vrot.slane %v67, %v81
  %v84 = vmul.f32 %v71, %v82
  %v85 = vmul.f32 %v76, %v82
  %v86 = vld [vmem:[%s5] sm:$0x1]
  %v87 = vlaneseq
  %v88 = vshrl.u32 %v87, 7
  %v89 = vsub.s32 0, %v88
  %v90 = vrot.slane %v86, %v89
  %v91 = vadd.f32 %v84, %v90
  %v92 = vadd.f32 %v85, %v90
  %v93 = vld [vmem:[%s5 + $0x1] sm:$0x1]
  %v94 = vld [vmem:[%s5 + $0x2] sm:$0x1]
  %vm95 = vcmask 261120
  %v96 = vsel %vm95, %v91, 0.0
  %97 = vadd.xlane.f32.xlu0 %v96
  %v98 = vpop.xlane.xlu0 %97
  %v99 = vsel %vm95, %v92, 0.0
  %100 = vadd.xlane.f32.xlu0 %v99
  %v101 = vpop.xlane.xlu0 %100
  %v102 = vrcp.pop 32.0
  %v103 = vmul.f32 %v98, %v102
  %v104 = vmul.f32 %v101, %v102
  %v105 = vsub.f32 %v91, %v103
  %v106 = vsub.f32 %v92, %v104
  %v107 = vmul.f32 %v105, %v105
  %v108 = vmul.f32 %v106, %v106
  %v109 = vsel %vm95, %v107, 0.0
  %110 = vadd.xlane.f32.xlu0 %v109
  %v111 = vpop.xlane.xlu0 %110
  %v112 = vsel %vm95, %v108, 0.0
  %113 = vadd.xlane.f32.xlu0 %v112
  %v114 = vpop.xlane.xlu0 %113
  %v115 = vmul.f32 %v111, %v102
  %v116 = vmul.f32 %v114, %v102
  %v117 = vadd.f32 %v115, 1e-05
  %v118 = vadd.f32 %v116, 1e-05
  %v119 = vrsqrt.pop %v117
  %v120 = vrsqrt.pop %v118
  %v121 = vmul.f32 %v105, %v119
  %v122 = vmul.f32 %v106, %v120
  %v123 = vlaneseq
  %v124 = vshrl.u32 %v123, 7
  %v125 = vsub.s32 0, %v124
  %v126 = vrot.slane %v93, %v125
  %v127 = vmul.f32 %v121, %v126
  %v128 = vmul.f32 %v122, %v126
  %v129 = vlaneseq
  %v130 = vshrl.u32 %v129, 7
  %v131 = vsub.s32 0, %v130
  %v132 = vrot.slane %v94, %v131
  %v133 = vadd.f32 %v127, %v132
  %v134 = vadd.f32 %v128, %v132
  %vm135 = vcmp.ge.f32.partialorder %v133, 0.0
  %vm136 = vcmp.ge.f32.partialorder %v134, 0.0
  %v137 = vmul.f32 %v133, 0.01
  %v138 = vmul.f32 %v134, 0.01
  %v139 = vsel %vm135, %v133, %v137
  %v140 = vsel %vm136, %v134, %v138
  %v141 = vld [vmem:[%s4] sm:$0xff]
  %v142 = vld [vmem:[%s4 + $0x8] sm:$0xff]
  %v143 = vld [vmem:[%s4 + $0x10] sm:$0xff]
  %v144 = vld [vmem:[%s4 + $0x18] sm:$0xff]
  %v145 = vld [vmem:[%s5 + $0x3] sm:$0x1]
  %v146 = vlaneseq
  %v147 = vshrl.u32 %v146, 7
  %v148 = vsub.s32 0, %v147
  %v149 = vrot.slane %v145, %v148
  %v151 = vsel %vm95, %v139, 0
  %v154 = vsel %vm95, %v140, 0
  %156 = vmatprep.subr.mxu0 0.0
  %157 = vmatpush1.msra.mxu0 %v141
  %158 = vmatprep.subr.mxu0 0.0
  %159 = vmatpush1.msra.mxu0 %v142
  %160 = vmatprep.subr.mxu0 0.0
  %161 = vmatpush1.msra.mxu0 %v143
  %162 = vmatprep.subr.mxu0 0.0
  %163 = vmatpush1.msra.mxu0 %v144
  %164 = vmatprep.subr.mxu0 0.0
  %165 = vmatpush1.msra.mxu0 0.0
  %166 = vmatprep.subr.mxu0 0.0
  %167 = vmatpush1.msra.mxu0 0.0
  %168 = vmatprep.subr.mxu0 0.0
  %169 = vmatpush1.msra.mxu0 0.0
  %170 = vmatprep.subr.mxu0 0.0
  %171 = vmatpush1.msra.mxu0 0.0
  %172 = vmatprep.subr.mxu0 0.0
  %173 = vmatpush1.msra.mxu0 0.0
  %174 = vmatprep.subr.mxu0 0.0
  %175 = vmatpush1.msra.mxu0 0.0
  %176 = vmatprep.subr.mxu0 0.0
  %177 = vmatpush1.msra.mxu0 0.0
  %178 = vmatprep.subr.mxu0 0.0
  %179 = vmatpush1.msra.mxu0 0.0
  %180 = vmatprep.subr.mxu0 0.0
  %181 = vmatpush1.msra.mxu0 0.0
  %182 = vmatprep.subr.mxu0 0.0
  %183 = vmatpush1.msra.mxu0 0.0
  %184 = vmatprep.subr.mxu0 0.0
  %185 = vmatpush1.msra.mxu0 0.0
  %186 = vmatprep.subr.mxu0 0.0
  %187 = vmatpush1.msra.mxu0 0.0
  %188 = vmatprep.subr.mxu0 0.0
  %189 = vmatpush1.msra.mxu0 0.0
  %190 = vmatprep.subr.mxu0 0.0
  %191 = vmatpush1.msra.mxu0 0.0
  %192 = vmatprep.subr.mxu0 0.0
  %193 = vmatpush1.msra.mxu0 0.0
  %194 = vmatprep.subr.mxu0 0.0
  %195 = vmatpush1.msra.mxu0 0.0
  %196 = vmatprep.subr.mxu0 0.0
  %197 = vmatpush1.msra.mxu0 0.0
  %198 = vmatprep.subr.mxu0 0.0
  %199 = vmatpush1.msra.mxu0 0.0
  %200 = vmatprep.subr.mxu0 0.0
  %201 = vmatpush1.msra.mxu0 0.0
  %202 = vmatprep.subr.mxu0 0.0
  %203 = vmatpush1.msra.mxu0 0.0
  %204 = vmatprep.subr.mxu0 0.0
  %205 = vmatpush1.msra.mxu0 0.0
  %206 = vmatprep.subr.mxu0 0.0
  %207 = vmatpush1.msra.mxu0 0.0
  %208 = vmatprep.subr.mxu0 0.0
  %209 = vmatpush1.msra.mxu0 0.0
  %210 = vmatprep.subr.mxu0 0.0
  %211 = vmatpush1.msra.mxu0 0.0
  %212 = vmatprep.subr.mxu0 0.0
  %213 = vmatpush1.msra.mxu0 0.0
  %214 = vmatprep.subr.mxu0 0.0
  %215 = vmatpush1.msra.mxu0 0.0
  %216 = vmatprep.subr.mxu0 0.0
  %217 = vmatpush1.msra.mxu0 0.0
  %218 = vmatprep.subr.mxu0 0.0
  %219 = vmatpush1.msra.mxu0 0.0
  %220 = vmatprep.mubr.f32.mxu0 0.0
  %221 = vmatmul.mubr.f32.gmra.mrb[0].mxu0 %v151
  %v222 = vpop.f32.mrb[0].mxu0
  %v223 = vadd.f32 %v149, %v222
  %v224 = vpop.f32.mrb[0].mxu0
  %225 = vmatprep.mubr.f32.mxu0 0.0
  %226 = vmatmul.mubr.f32.gmra.mrb[0].mxu0 %v154
  %v227 = vpop.f32.mrb[0].mxu0
  %v228 = vadd.f32 %v149, %v227
  %v229 = vpop.f32.mrb[0].mxu0
  %230 = vdwg.mxu0
  %v231 = vld [vmem:[%s5 + $0x4] sm:$0x1]
  %v232 = vld [vmem:[%s5 + $0x5] sm:$0x1]
  %v233 = vsel %vm95, %v223, 0.0
  %234 = vadd.xlane.f32.xlu0 %v233
  %v235 = vpop.xlane.xlu0 %234
  %v236 = vsel %vm95, %v228, 0.0
  %237 = vadd.xlane.f32.xlu0 %v236
  %v238 = vpop.xlane.xlu0 %237
  %v239 = vmul.f32 %v235, %v102
  %v240 = vmul.f32 %v238, %v102
  %v241 = vsub.f32 %v223, %v239
  %v242 = vsub.f32 %v228, %v240
  %v243 = vmul.f32 %v241, %v241
  %v244 = vmul.f32 %v242, %v242
  %v245 = vsel %vm95, %v243, 0.0
  %246 = vadd.xlane.f32.xlu0 %v245
  %v247 = vpop.xlane.xlu0 %246
  %v248 = vsel %vm95, %v244, 0.0
  %249 = vadd.xlane.f32.xlu0 %v248
  %v250 = vpop.xlane.xlu0 %249
  %v251 = vmul.f32 %v247, %v102
  %v252 = vmul.f32 %v250, %v102
  %v253 = vadd.f32 %v251, 1e-05
  %v254 = vadd.f32 %v252, 1e-05
  %v255 = vrsqrt.pop %v253
  %v256 = vrsqrt.pop %v254
  %v257 = vmul.f32 %v241, %v255
  %v258 = vmul.f32 %v242, %v256
  %v259 = vlaneseq
  %v260 = vshrl.u32 %v259, 7
  %v261 = vsub.s32 0, %v260
  %v262 = vrot.slane %v231, %v261
  %v263 = vmul.f32 %v257, %v262
  %v264 = vmul.f32 %v258, %v262
  %v265 = vlaneseq
  %v266 = vshrl.u32 %v265, 7
  %v267 = vsub.s32 0, %v266
  %v268 = vrot.slane %v232, %v267
  %v269 = vadd.f32 %v263, %v268
  %v270 = vadd.f32 %v264, %v268
  %vm271 = vcmp.ge.f32.partialorder %v269, 0.0
  %vm272 = vcmp.ge.f32.partialorder %v270, 0.0
  %v273 = vmul.f32 %v269, 0.01
  %v274 = vmul.f32 %v270, 0.01
  %v275 = vsel %vm271, %v269, %v273
  %v276 = vsel %vm272, %v270, %v274
  %v277 = vld [vmem:[%s1] sm:$0xff]
  %v278 = vld [vmem:[%s1 + $0x8] sm:$0xff]
  %v279 = vld [vmem:[%s6] sm:$0x1]
  %281 = vset.pattern.permute.xlu0 0
  %282 = vperm.xlu0 %281, %v277
  %v283 = vpop.permute.xlu0 %282
  %286 = vset.pattern.permute.xlu0 0
  %287 = vperm.xlu0 %286, %v278
  %v288 = vpop.permute.xlu0 %287
  %v291 = vlaneseq
  %v292 = vshrl.u32 %v291, 7
  %v293 = vsub.s32 0, %v292
  %v294 = vrot.slane %v279, %v293
  %v296 = vmul.f32 %v283, %v294
  %v297 = vmul.f32 %v288, %v294
  %v298 = vld [vmem:[%s8] sm:$0x1]
  %v299 = vlaneseq
  %v300 = vshrl.u32 %v299, 7
  %v301 = vsub.s32 0, %v300
  %v302 = vrot.slane %v298, %v301
  %v303 = vadd.f32 %v296, %v302
  %v304 = vadd.f32 %v297, %v302
  %v305 = vld [vmem:[%s8 + $0x1] sm:$0x1]
  %v306 = vld [vmem:[%s8 + $0x2] sm:$0x1]
  %v307 = vsel %vm95, %v303, 0.0
  %308 = vadd.xlane.f32.xlu0 %v307
  %v309 = vpop.xlane.xlu0 %308
  %v310 = vsel %vm95, %v304, 0.0
  %311 = vadd.xlane.f32.xlu0 %v310
  %v312 = vpop.xlane.xlu0 %311
  %v313 = vmul.f32 %v309, %v102
  %v314 = vmul.f32 %v312, %v102
  %v315 = vsub.f32 %v303, %v313
  %v316 = vsub.f32 %v304, %v314
  %v317 = vmul.f32 %v315, %v315
  %v318 = vmul.f32 %v316, %v316
  %v319 = vsel %vm95, %v317, 0.0
  %320 = vadd.xlane.f32.xlu0 %v319
  %v321 = vpop.xlane.xlu0 %320
  %v322 = vsel %vm95, %v318, 0.0
  %323 = vadd.xlane.f32.xlu0 %v322
  %v324 = vpop.xlane.xlu0 %323
  %v325 = vmul.f32 %v321, %v102
  %v326 = vmul.f32 %v324, %v102
  %v327 = vadd.f32 %v325, 1e-05
  %v328 = vadd.f32 %v326, 1e-05
  %v329 = vrsqrt.pop %v327
  %v330 = vrsqrt.pop %v328
  %v331 = vmul.f32 %v315, %v329
  %v332 = vmul.f32 %v316, %v330
  %v333 = vlaneseq
  %v334 = vshrl.u32 %v333, 7
  %v335 = vsub.s32 0, %v334
  %v336 = vrot.slane %v305, %v335
  %v337 = vmul.f32 %v331, %v336
  %v338 = vmul.f32 %v332, %v336
  %v339 = vlaneseq
  %v340 = vshrl.u32 %v339, 7
  %v341 = vsub.s32 0, %v340
  %v342 = vrot.slane %v306, %v341
  %v343 = vadd.f32 %v337, %v342
  %v344 = vadd.f32 %v338, %v342
  %vm345 = vcmp.ge.f32.partialorder %v343, 0.0
  %vm346 = vcmp.ge.f32.partialorder %v344, 0.0
  %v347 = vmul.f32 %v343, 0.01
  %v348 = vmul.f32 %v344, 0.01
  %v349 = vsel %vm345, %v343, %v347
  %v350 = vsel %vm346, %v344, %v348
  %v351 = vld [vmem:[%s7] sm:$0xff]
  %v352 = vld [vmem:[%s7 + $0x8] sm:$0xff]
  %v353 = vld [vmem:[%s7 + $0x10] sm:$0xff]
  %v354 = vld [vmem:[%s7 + $0x18] sm:$0xff]
  %v355 = vld [vmem:[%s8 + $0x3] sm:$0x1]
  %v356 = vlaneseq
  %v357 = vshrl.u32 %v356, 7
  %v358 = vsub.s32 0, %v357
  %v359 = vrot.slane %v355, %v358
  %v361 = vsel %vm95, %v349, 0
  %v364 = vsel %vm95, %v350, 0
  %366 = vmatprep.subr.mxu0 0.0
  %367 = vmatpush1.msra.mxu0 %v351
  %368 = vmatprep.subr.mxu0 0.0
  %369 = vmatpush1.msra.mxu0 %v352
  %370 = vmatprep.subr.mxu0 0.0
  %371 = vmatpush1.msra.mxu0 %v353
  %372 = vmatprep.subr.mxu0 0.0
  %373 = vmatpush1.msra.mxu0 %v354
  %374 = vmatprep.subr.mxu0 0.0
  %375 = vmatpush1.msra.mxu0 0.0
  %376 = vmatprep.subr.mxu0 0.0
  %377 = vmatpush1.msra.mxu0 0.0
  %378 = vmatprep.subr.mxu0 0.0
  %379 = vmatpush1.msra.mxu0 0.0
  %380 = vmatprep.subr.mxu0 0.0
  %381 = vmatpush1.msra.mxu0 0.0
  %382 = vmatprep.subr.mxu0 0.0
  %383 = vmatpush1.msra.mxu0 0.0
  %384 = vmatprep.subr.mxu0 0.0
  %385 = vmatpush1.msra.mxu0 0.0
  %386 = vmatprep.subr.mxu0 0.0
  %387 = vmatpush1.msra.mxu0 0.0
  %388 = vmatprep.subr.mxu0 0.0
  %389 = vmatpush1.msra.mxu0 0.0
  %390 = vmatprep.subr.mxu0 0.0
  %391 = vmatpush1.msra.mxu0 0.0
  %392 = vmatprep.subr.mxu0 0.0
  %393 = vmatpush1.msra.mxu0 0.0
  %394 = vmatprep.subr.mxu0 0.0
  %395 = vmatpush1.msra.mxu0 0.0
  %396 = vmatprep.subr.mxu0 0.0
  %397 = vmatpush1.msra.mxu0 0.0
  %398 = vmatprep.subr.mxu0 0.0
  %399 = vmatpush1.msra.mxu0 0.0
  %400 = vmatprep.subr.mxu0 0.0
  %401 = vmatpush1.msra.mxu0 0.0
  %402 = vmatprep.subr.mxu0 0.0
  %403 = vmatpush1.msra.mxu0 0.0
  %404 = vmatprep.subr.mxu0 0.0
  %405 = vmatpush1.msra.mxu0 0.0
  %406 = vmatprep.subr.mxu0 0.0
  %407 = vmatpush1.msra.mxu0 0.0
  %408 = vmatprep.subr.mxu0 0.0
  %409 = vmatpush1.msra.mxu0 0.0
  %410 = vmatprep.subr.mxu0 0.0
  %411 = vmatpush1.msra.mxu0 0.0
  %412 = vmatprep.subr.mxu0 0.0
  %413 = vmatpush1.msra.mxu0 0.0
  %414 = vmatprep.subr.mxu0 0.0
  %415 = vmatpush1.msra.mxu0 0.0
  %416 = vmatprep.subr.mxu0 0.0
  %417 = vmatpush1.msra.mxu0 0.0
  %418 = vmatprep.subr.mxu0 0.0
  %419 = vmatpush1.msra.mxu0 0.0
  %420 = vmatprep.subr.mxu0 0.0
  %421 = vmatpush1.msra.mxu0 0.0
  %422 = vmatprep.subr.mxu0 0.0
  %423 = vmatpush1.msra.mxu0 0.0
  %424 = vmatprep.subr.mxu0 0.0
  %425 = vmatpush1.msra.mxu0 0.0
  %426 = vmatprep.subr.mxu0 0.0
  %427 = vmatpush1.msra.mxu0 0.0
  %428 = vmatprep.subr.mxu0 0.0
  %429 = vmatpush1.msra.mxu0 0.0
  %430 = vmatprep.mubr.f32.mxu0 0.0
  %431 = vmatmul.mubr.f32.gmra.mrb[0].mxu0 %v361
  %v432 = vpop.f32.mrb[0].mxu0
  %v433 = vadd.f32 %v359, %v432
  %v434 = vpop.f32.mrb[0].mxu0
  %435 = vmatprep.mubr.f32.mxu0 0.0
  %436 = vmatmul.mubr.f32.gmra.mrb[0].mxu0 %v364
  %v437 = vpop.f32.mrb[0].mxu0
  %v438 = vadd.f32 %v359, %v437
  %v439 = vpop.f32.mrb[0].mxu0
  %440 = vdwg.mxu0
  %v441 = vld [vmem:[%s8 + $0x4] sm:$0x1]
  %v442 = vld [vmem:[%s8 + $0x5] sm:$0x1]
  %v443 = vsel %vm95, %v433, 0.0
  %444 = vadd.xlane.f32.xlu0 %v443
  %v445 = vpop.xlane.xlu0 %444
  %v446 = vsel %vm95, %v438, 0.0
  %447 = vadd.xlane.f32.xlu0 %v446
  %v448 = vpop.xlane.xlu0 %447
  %v449 = vmul.f32 %v445, %v102
  %v450 = vmul.f32 %v448, %v102
  %v451 = vsub.f32 %v433, %v449
  %v452 = vsub.f32 %v438, %v450
  %v453 = vmul.f32 %v451, %v451
  %v454 = vmul.f32 %v452, %v452
  %v455 = vsel %vm95, %v453, 0.0
  %456 = vadd.xlane.f32.xlu0 %v455
  %v457 = vpop.xlane.xlu0 %456
  %v458 = vsel %vm95, %v454, 0.0
  %459 = vadd.xlane.f32.xlu0 %v458
  %v460 = vpop.xlane.xlu0 %459
  %v461 = vmul.f32 %v457, %v102
  %v462 = vmul.f32 %v460, %v102
  %v463 = vadd.f32 %v461, 1e-05
  %v464 = vadd.f32 %v462, 1e-05
  %v465 = vrsqrt.pop %v463
  %v466 = vrsqrt.pop %v464
  %v467 = vmul.f32 %v451, %v465
  %v468 = vmul.f32 %v452, %v466
  %v469 = vlaneseq
  %v470 = vshrl.u32 %v469, 7
  %v471 = vsub.s32 0, %v470
  %v472 = vrot.slane %v441, %v471
  %v473 = vmul.f32 %v467, %v472
  %v474 = vmul.f32 %v468, %v472
  %v475 = vlaneseq
  %v476 = vshrl.u32 %v475, 7
  %v477 = vsub.s32 0, %v476
  %v478 = vrot.slane %v442, %v477
  %v479 = vadd.f32 %v473, %v478
  %v480 = vadd.f32 %v474, %v478
  %vm481 = vcmp.ge.f32.partialorder %v479, 0.0
  %vm482 = vcmp.ge.f32.partialorder %v480, 0.0
  %v483 = vmul.f32 %v479, 0.01
  %v484 = vmul.f32 %v480, 0.01
  %v485 = vsel %vm481, %v479, %v483
  %v486 = vsel %vm482, %v480, %v484
  %v487 = vld [vmem:[%s2] sm:$0xff]
  %v488 = vld [vmem:[%s2 + $0x8] sm:$0xff]
  %v489 = vld [vmem:[%s9] sm:$0xff]
  %v490 = vld [vmem:[%s9 + $0x8] sm:$0xff]
  %v491 = vld [vmem:[%s11] sm:$0x1]
  %v492 = vlaneseq
  %v493 = vshrl.u32 %v492, 7
  %v494 = vsub.s32 0, %v493
  %v495 = vrot.slane %v491, %v494
  %vm496 = vcmask 130048
  %v498 = vsel %vm496, %v487, 0
  %v501 = vsel %vm496, %v488, 0
  %503 = vmatprep.subr.mxu0 0.0
  %504 = vmatpush1.msra.mxu0 %v489
  %505 = vmatprep.subr.mxu0 0.0
  %506 = vmatpush1.msra.mxu0 %v490
  %507 = vmatprep.subr.mxu0 0.0
  %508 = vmatpush1.msra.mxu0 0.0
  %509 = vmatprep.subr.mxu0 0.0
  %510 = vmatpush1.msra.mxu0 0.0
  %511 = vmatprep.subr.mxu0 0.0
  %512 = vmatpush1.msra.mxu0 0.0
  %513 = vmatprep.subr.mxu0 0.0
  %514 = vmatpush1.msra.mxu0 0.0
  %515 = vmatprep.subr.mxu0 0.0
  %516 = vmatpush1.msra.mxu0 0.0
  %517 = vmatprep.subr.mxu0 0.0
  %518 = vmatpush1.msra.mxu0 0.0
  %519 = vmatprep.subr.mxu0 0.0
  %520 = vmatpush1.msra.mxu0 0.0
  %521 = vmatprep.subr.mxu0 0.0
  %522 = vmatpush1.msra.mxu0 0.0
  %523 = vmatprep.subr.mxu0 0.0
  %524 = vmatpush1.msra.mxu0 0.0
  %525 = vmatprep.subr.mxu0 0.0
  %526 = vmatpush1.msra.mxu0 0.0
  %527 = vmatprep.subr.mxu0 0.0
  %528 = vmatpush1.msra.mxu0 0.0
  %529 = vmatprep.subr.mxu0 0.0
  %530 = vmatpush1.msra.mxu0 0.0
  %531 = vmatprep.subr.mxu0 0.0
  %532 = vmatpush1.msra.mxu0 0.0
  %533 = vmatprep.subr.mxu0 0.0
  %534 = vmatpush1.msra.mxu0 0.0
  %535 = vmatprep.subr.mxu0 0.0
  %536 = vmatpush1.msra.mxu0 0.0
  %537 = vmatprep.subr.mxu0 0.0
  %538 = vmatpush1.msra.mxu0 0.0
  %539 = vmatprep.subr.mxu0 0.0
  %540 = vmatpush1.msra.mxu0 0.0
  %541 = vmatprep.subr.mxu0 0.0
  %542 = vmatpush1.msra.mxu0 0.0
  %543 = vmatprep.subr.mxu0 0.0
  %544 = vmatpush1.msra.mxu0 0.0
  %545 = vmatprep.subr.mxu0 0.0
  %546 = vmatpush1.msra.mxu0 0.0
  %547 = vmatprep.subr.mxu0 0.0
  %548 = vmatpush1.msra.mxu0 0.0
  %549 = vmatprep.subr.mxu0 0.0
  %550 = vmatpush1.msra.mxu0 0.0
  %551 = vmatprep.subr.mxu0 0.0
  %552 = vmatpush1.msra.mxu0 0.0
  %553 = vmatprep.subr.mxu0 0.0
  %554 = vmatpush1.msra.mxu0 0.0
  %555 = vmatprep.subr.mxu0 0.0
  %556 = vmatpush1.msra.mxu0 0.0
  %557 = vmatprep.subr.mxu0 0.0
  %558 = vmatpush1.msra.mxu0 0.0
  %559 = vmatprep.subr.mxu0 0.0
  %560 = vmatpush1.msra.mxu0 0.0
  %561 = vmatprep.subr.mxu0 0.0
  %562 = vmatpush1.msra.mxu0 0.0
  %563 = vmatprep.subr.mxu0 0.0
  %564 = vmatpush1.msra.mxu0 0.0
  %565 = vmatprep.subr.mxu0 0.0
  %566 = vmatpush1.msra.mxu0 0.0
  %567 = vmatprep.mubr.f32.mxu0 0.0
  %568 = vmatmul.mubr.f32.gmra.mrb[0].mxu0 %v498
  %v569 = vpop.f32.mrb[0].mxu0
  %v570 = vadd.f32 %v495, %v569
  %v571 = vpop.f32.mrb[0].mxu0
  %572 = vmatprep.mubr.f32.mxu0 0.0
  %573 = vmatmul.mubr.f32.gmra.mrb[0].mxu0 %v501
  %v574 = vpop.f32.mrb[0].mxu0
  %v575 = vadd.f32 %v495, %v574
  %v576 = vpop.f32.mrb[0].mxu0
  %577 = vdwg.mxu0
  %v578 = vld [vmem:[%s11 + $0x1] sm:$0x1]
  %v579 = vld [vmem:[%s11 + $0x2] sm:$0x1]
  %v580 = vsel %vm95, %v570, 0.0
  %581 = vadd.xlane.f32.xlu0 %v580
  %v582 = vpop.xlane.xlu0 %581
  %v583 = vsel %vm95, %v575, 0.0
  %584 = vadd.xlane.f32.xlu0 %v583
  %v585 = vpop.xlane.xlu0 %584
  %v586 = vmul.f32 %v582, %v102
  %v587 = vmul.f32 %v585, %v102
  %v588 = vsub.f32 %v570, %v586
  %v589 = vsub.f32 %v575, %v587
  %v590 = vmul.f32 %v588, %v588
  %v591 = vmul.f32 %v589, %v589
  %v592 = vsel %vm95, %v590, 0.0
  %593 = vadd.xlane.f32.xlu0 %v592
  %v594 = vpop.xlane.xlu0 %593
  %v595 = vsel %vm95, %v591, 0.0
  %596 = vadd.xlane.f32.xlu0 %v595
  %v597 = vpop.xlane.xlu0 %596
  %v598 = vmul.f32 %v594, %v102
  %v599 = vmul.f32 %v597, %v102
  %v600 = vadd.f32 %v598, 1e-05
  %v601 = vadd.f32 %v599, 1e-05
  %v602 = vrsqrt.pop %v600
  %v603 = vrsqrt.pop %v601
  %v604 = vmul.f32 %v588, %v602
  %v605 = vmul.f32 %v589, %v603
  %v606 = vlaneseq
  %v607 = vshrl.u32 %v606, 7
  %v608 = vsub.s32 0, %v607
  %v609 = vrot.slane %v578, %v608
  %v610 = vmul.f32 %v604, %v609
  %v611 = vmul.f32 %v605, %v609
  %v612 = vlaneseq
  %v613 = vshrl.u32 %v612, 7
  %v614 = vsub.s32 0, %v613
  %v615 = vrot.slane %v579, %v614
  %v616 = vadd.f32 %v610, %v615
  %v617 = vadd.f32 %v611, %v615
  %vm618 = vcmp.ge.f32.partialorder %v616, 0.0
  %vm619 = vcmp.ge.f32.partialorder %v617, 0.0
  %v620 = vmul.f32 %v616, 0.01
  %v621 = vmul.f32 %v617, 0.01
  %v622 = vsel %vm618, %v616, %v620
  %v623 = vsel %vm619, %v617, %v621
  %v624 = vld [vmem:[%s10] sm:$0xff]
  %v625 = vld [vmem:[%s10 + $0x8] sm:$0xff]
  %v626 = vld [vmem:[%s10 + $0x10] sm:$0xff]
  %v627 = vld [vmem:[%s10 + $0x18] sm:$0xff]
  %v628 = vld [vmem:[%s11 + $0x3] sm:$0x1]
  %v629 = vlaneseq
  %v630 = vshrl.u32 %v629, 7
  %v631 = vsub.s32 0, %v630
  %v632 = vrot.slane %v628, %v631
  %v634 = vsel %vm95, %v622, 0
  %v637 = vsel %vm95, %v623, 0
  %639 = vmatprep.subr.mxu0 0.0
  %640 = vmatpush1.msra.mxu0 %v624
  %641 = vmatprep.subr.mxu0 0.0
  %642 = vmatpush1.msra.mxu0 %v625
  %643 = vmatprep.subr.mxu0 0.0
  %644 = vmatpush1.msra.mxu0 %v626
  %645 = vmatprep.subr.mxu0 0.0
  %646 = vmatpush1.msra.mxu0 %v627
  %647 = vmatprep.subr.mxu0 0.0
  %648 = vmatpush1.msra.mxu0 0.0
  %649 = vmatprep.subr.mxu0 0.0
  %650 = vmatpush1.msra.mxu0 0.0
  %651 = vmatprep.subr.mxu0 0.0
  %652 = vmatpush1.msra.mxu0 0.0
  %653 = vmatprep.subr.mxu0 0.0
  %654 = vmatpush1.msra.mxu0 0.0
  %655 = vmatprep.subr.mxu0 0.0
  %656 = vmatpush1.msra.mxu0 0.0
  %657 = vmatprep.subr.mxu0 0.0
  %658 = vmatpush1.msra.mxu0 0.0
  %659 = vmatprep.subr.mxu0 0.0
  %660 = vmatpush1.msra.mxu0 0.0
  %661 = vmatprep.subr.mxu0 0.0
  %662 = vmatpush1.msra.mxu0 0.0
  %663 = vmatprep.subr.mxu0 0.0
  %664 = vmatpush1.msra.mxu0 0.0
  %665 = vmatprep.subr.mxu0 0.0
  %666 = vmatpush1.msra.mxu0 0.0
  %667 = vmatprep.subr.mxu0 0.0
  %668 = vmatpush1.msra.mxu0 0.0
  %669 = vmatprep.subr.mxu0 0.0
  %670 = vmatpush1.msra.mxu0 0.0
  %671 = vmatprep.subr.mxu0 0.0
  %672 = vmatpush1.msra.mxu0 0.0
  %673 = vmatprep.subr.mxu0 0.0
  %674 = vmatpush1.msra.mxu0 0.0
  %675 = vmatprep.subr.mxu0 0.0
  %676 = vmatpush1.msra.mxu0 0.0
  %677 = vmatprep.subr.mxu0 0.0
  %678 = vmatpush1.msra.mxu0 0.0
  %679 = vmatprep.subr.mxu0 0.0
  %680 = vmatpush1.msra.mxu0 0.0
  %681 = vmatprep.subr.mxu0 0.0
  %682 = vmatpush1.msra.mxu0 0.0
  %683 = vmatprep.subr.mxu0 0.0
  %684 = vmatpush1.msra.mxu0 0.0
  %685 = vmatprep.subr.mxu0 0.0
  %686 = vmatpush1.msra.mxu0 0.0
  %687 = vmatprep.subr.mxu0 0.0
  %688 = vmatpush1.msra.mxu0 0.0
  %689 = vmatprep.subr.mxu0 0.0
  %690 = vmatpush1.msra.mxu0 0.0
  %691 = vmatprep.subr.mxu0 0.0
  %692 = vmatpush1.msra.mxu0 0.0
  %693 = vmatprep.subr.mxu0 0.0
  %694 = vmatpush1.msra.mxu0 0.0
  %695 = vmatprep.subr.mxu0 0.0
  %696 = vmatpush1.msra.mxu0 0.0
  %697 = vmatprep.subr.mxu0 0.0
  %698 = vmatpush1.msra.mxu0 0.0
  %699 = vmatprep.subr.mxu0 0.0
  %700 = vmatpush1.msra.mxu0 0.0
  %701 = vmatprep.subr.mxu0 0.0
  %702 = vmatpush1.msra.mxu0 0.0
  %703 = vmatprep.mubr.f32.mxu0 0.0
  %704 = vmatmul.mubr.f32.gmra.mrb[0].mxu0 %v634
  %v705 = vpop.f32.mrb[0].mxu0
  %v706 = vadd.f32 %v632, %v705
  %v707 = vpop.f32.mrb[0].mxu0
  %708 = vmatprep.mubr.f32.mxu0 0.0
  %709 = vmatmul.mubr.f32.gmra.mrb[0].mxu0 %v637
  %v710 = vpop.f32.mrb[0].mxu0
  %v711 = vadd.f32 %v632, %v710
  %v712 = vpop.f32.mrb[0].mxu0
  %713 = vdwg.mxu0
  %v714 = vld [vmem:[%s11 + $0x4] sm:$0x1]
  %v715 = vld [vmem:[%s11 + $0x5] sm:$0x1]
  %v716 = vsel %vm95, %v706, 0.0
  %717 = vadd.xlane.f32.xlu0 %v716
  %v718 = vpop.xlane.xlu0 %717
  %v719 = vsel %vm95, %v711, 0.0
  %720 = vadd.xlane.f32.xlu0 %v719
  %v721 = vpop.xlane.xlu0 %720
  %v722 = vmul.f32 %v718, %v102
  %v723 = vmul.f32 %v721, %v102
  %v724 = vsub.f32 %v706, %v722
  %v725 = vsub.f32 %v711, %v723
  %v726 = vmul.f32 %v724, %v724
  %v727 = vmul.f32 %v725, %v725
  %v728 = vsel %vm95, %v726, 0.0
  %729 = vadd.xlane.f32.xlu0 %v728
  %v730 = vpop.xlane.xlu0 %729
  %v731 = vsel %vm95, %v727, 0.0
  %732 = vadd.xlane.f32.xlu0 %v731
  %v733 = vpop.xlane.xlu0 %732
  %v734 = vmul.f32 %v730, %v102
  %v735 = vmul.f32 %v733, %v102
  %v736 = vadd.f32 %v734, 1e-05
  %v737 = vadd.f32 %v735, 1e-05
  %v738 = vrsqrt.pop %v736
  %v739 = vrsqrt.pop %v737
  %v740 = vmul.f32 %v724, %v738
  %v741 = vmul.f32 %v725, %v739
  %v742 = vlaneseq
  %v743 = vshrl.u32 %v742, 7
  %v744 = vsub.s32 0, %v743
  %v745 = vrot.slane %v714, %v744
  %v746 = vmul.f32 %v740, %v745
  %v747 = vmul.f32 %v741, %v745
  %v748 = vlaneseq
  %v749 = vshrl.u32 %v748, 7
  %v750 = vsub.s32 0, %v749
  %v751 = vrot.slane %v715, %v750
  %v752 = vadd.f32 %v746, %v751
  %v753 = vadd.f32 %v747, %v751
  %vm754 = vcmp.ge.f32.partialorder %v752, 0.0
  %vm755 = vcmp.ge.f32.partialorder %v753, 0.0
  %v756 = vmul.f32 %v752, 0.01
  %v757 = vmul.f32 %v753, 0.01
  %v758 = vsel %vm754, %v752, %v756
  %v759 = vsel %vm755, %v753, %v757
  %v760 = vld [vmem:[%s12] sm:$0xff]
  %v761 = vld [vmem:[%s12 + $0x8] sm:$0xff]
  %v762 = vld [vmem:[%s12 + $0x10] sm:$0xff]
  %v763 = vld [vmem:[%s12 + $0x18] sm:$0xff]
  %v764 = vld [vmem:[%s12 + $0x20] sm:$0xff]
  %v765 = vld [vmem:[%s12 + $0x28] sm:$0xff]
  %v766 = vld [vmem:[%s12 + $0x30] sm:$0xff]
  %v767 = vld [vmem:[%s12 + $0x38] sm:$0xff]
  %v769 = vsel %vm95, %v485, 0
  %v772 = vsel %vm95, %v486, 0
  %774 = vmatprep.subr.mxu0 0.0
  %775 = vmatpush1.msra.mxu0 %v764
  %776 = vmatprep.subr.mxu0 0.0
  %777 = vmatpush1.msra.mxu0 %v765
  %778 = vmatprep.subr.mxu0 0.0
  %779 = vmatpush1.msra.mxu0 %v766
  %780 = vmatprep.subr.mxu0 0.0
  %781 = vmatpush1.msra.mxu0 %v767
  %782 = vmatprep.subr.mxu0 0.0
  %783 = vmatpush1.msra.mxu0 0.0
  %784 = vmatprep.subr.mxu0 0.0
  %785 = vmatpush1.msra.mxu0 0.0
  %786 = vmatprep.subr.mxu0 0.0
  %787 = vmatpush1.msra.mxu0 0.0
  %788 = vmatprep.subr.mxu0 0.0
  %789 = vmatpush1.msra.mxu0 0.0
  %790 = vmatprep.subr.mxu0 0.0
  %791 = vmatpush1.msra.mxu0 0.0
  %792 = vmatprep.subr.mxu0 0.0
  %793 = vmatpush1.msra.mxu0 0.0
  %794 = vmatprep.subr.mxu0 0.0
  %795 = vmatpush1.msra.mxu0 0.0
  %796 = vmatprep.subr.mxu0 0.0
  %797 = vmatpush1.msra.mxu0 0.0
  %798 = vmatprep.subr.mxu0 0.0
  %799 = vmatpush1.msra.mxu0 0.0
  %800 = vmatprep.subr.mxu0 0.0
  %801 = vmatpush1.msra.mxu0 0.0
  %802 = vmatprep.subr.mxu0 0.0
  %803 = vmatpush1.msra.mxu0 0.0
  %804 = vmatprep.subr.mxu0 0.0
  %805 = vmatpush1.msra.mxu0 0.0
  %806 = vmatprep.subr.mxu0 0.0
  %807 = vmatpush1.msra.mxu0 0.0
  %808 = vmatprep.subr.mxu0 0.0
  %809 = vmatpush1.msra.mxu0 0.0
  %810 = vmatprep.subr.mxu0 0.0
  %811 = vmatpush1.msra.mxu0 0.0
  %812 = vmatprep.subr.mxu0 0.0
  %813 = vmatpush1.msra.mxu0 0.0
  %814 = vmatprep.subr.mxu0 0.0
  %815 = vmatpush1.msra.mxu0 0.0
  %816 = vmatprep.subr.mxu0 0.0
  %817 = vmatpush1.msra.mxu0 0.0
  %818 = vmatprep.subr.mxu0 0.0
  %819 = vmatpush1.msra.mxu0 0.0
  %820 = vmatprep.subr.mxu0 0.0
  %821 = vmatpush1.msra.mxu0 0.0
  %822 = vmatprep.subr.mxu0 0.0
  %823 = vmatpush1.msra.mxu0 0.0
  %824 = vmatprep.subr.mxu0 0.0
  %825 = vmatpush1.msra.mxu0 0.0
  %826 = vmatprep.subr.mxu0 0.0
  %827 = vmatpush1.msra.mxu0 0.0
  %828 = vmatprep.subr.mxu0 0.0
  %829 = vmatpush1.msra.mxu0 0.0
  %830 = vmatprep.subr.mxu0 0.0
  %831 = vmatpush1.msra.mxu0 0.0
  %832 = vmatprep.subr.mxu0 0.0
  %833 = vmatpush1.msra.mxu0 0.0
  %834 = vmatprep.subr.mxu0 0.0
  %835 = vmatpush1.msra.mxu0 0.0
  %836 = vmatprep.subr.mxu0 0.0
  %837 = vmatpush1.msra.mxu0 0.0
  %838 = vmatprep.mubr.f32.mxu0 0.0
  %839 = vmatmul.mubr.f32.gmra.mrb[0].mxu0 %v769
  %v840 = vpop.f32.mrb[0].mxu0
  %v841 = vadd.f32 0.0, %v840
  %v842 = vpop.f32.mrb[0].mxu0
  %843 = vmatprep.mubr.f32.mxu0 0.0
  %844 = vmatmul.mubr.f32.gmra.mrb[0].mxu0 %v772
  %v845 = vpop.f32.mrb[0].mxu0
  %v846 = vadd.f32 0.0, %v845
  %v847 = vpop.f32.mrb[0].mxu0
  %848 = vdwg.mxu0
  %v850 = vsel %vm95, %v275, 0
  %v853 = vsel %vm95, %v276, 0
  %855 = vmatprep.subr.mxu0 0.0
  %856 = vmatpush1.msra.mxu0 %v760
  %857 = vmatprep.subr.mxu0 0.0
  %858 = vmatpush1.msra.mxu0 %v761
  %859 = vmatprep.subr.mxu0 0.0
  %860 = vmatpush1.msra.mxu0 %v762
  %861 = vmatprep.subr.mxu0 0.0
  %862 = vmatpush1.msra.mxu0 %v763
  %863 = vmatprep.subr.mxu0 0.0
  %864 = vmatpush1.msra.mxu0 0.0
  %865 = vmatprep.subr.mxu0 0.0
  %866 = vmatpush1.msra.mxu0 0.0
  %867 = vmatprep.subr.mxu0 0.0
  %868 = vmatpush1.msra.mxu0 0.0
  %869 = vmatprep.subr.mxu0 0.0
  %870 = vmatpush1.msra.mxu0 0.0
  %871 = vmatprep.subr.mxu0 0.0
  %872 = vmatpush1.msra.mxu0 0.0
  %873 = vmatprep.subr.mxu0 0.0
  %874 = vmatpush1.msra.mxu0 0.0
  %875 = vmatprep.subr.mxu0 0.0
  %876 = vmatpush1.msra.mxu0 0.0
  %877 = vmatprep.subr.mxu0 0.0
  %878 = vmatpush1.msra.mxu0 0.0
  %879 = vmatprep.subr.mxu0 0.0
  %880 = vmatpush1.msra.mxu0 0.0
  %881 = vmatprep.subr.mxu0 0.0
  %882 = vmatpush1.msra.mxu0 0.0
  %883 = vmatprep.subr.mxu0 0.0
  %884 = vmatpush1.msra.mxu0 0.0
  %885 = vmatprep.subr.mxu0 0.0
  %886 = vmatpush1.msra.mxu0 0.0
  %887 = vmatprep.subr.mxu0 0.0
  %888 = vmatpush1.msra.mxu0 0.0
  %889 = vmatprep.subr.mxu0 0.0
  %890 = vmatpush1.msra.mxu0 0.0
  %891 = vmatprep.subr.mxu0 0.0
  %892 = vmatpush1.msra.mxu0 0.0
  %893 = vmatprep.subr.mxu0 0.0
  %894 = vmatpush1.msra.mxu0 0.0
  %895 = vmatprep.subr.mxu0 0.0
  %896 = vmatpush1.msra.mxu0 0.0
  %897 = vmatprep.subr.mxu0 0.0
  %898 = vmatpush1.msra.mxu0 0.0
  %899 = vmatprep.subr.mxu0 0.0
  %900 = vmatpush1.msra.mxu0 0.0
  %901 = vmatprep.subr.mxu0 0.0
  %902 = vmatpush1.msra.mxu0 0.0
  %903 = vmatprep.subr.mxu0 0.0
  %904 = vmatpush1.msra.mxu0 0.0
  %905 = vmatprep.subr.mxu0 0.0
  %906 = vmatpush1.msra.mxu0 0.0
  %907 = vmatprep.subr.mxu0 0.0
  %908 = vmatpush1.msra.mxu0 0.0
  %909 = vmatprep.subr.mxu0 0.0
  %910 = vmatpush1.msra.mxu0 0.0
  %911 = vmatprep.subr.mxu0 0.0
  %912 = vmatpush1.msra.mxu0 0.0
  %913 = vmatprep.subr.mxu0 0.0
  %914 = vmatpush1.msra.mxu0 0.0
  %915 = vmatprep.subr.mxu0 0.0
  %916 = vmatpush1.msra.mxu0 0.0
  %917 = vmatprep.subr.mxu0 0.0
  %918 = vmatpush1.msra.mxu0 0.0
  %919 = vmatprep.mubr.f32.mxu0 0.0
  %920 = vmatmul.mubr.f32.gmra.mrb[0].mxu0 %v850
  %v921 = vpop.f32.mrb[0].mxu0
  %v922 = vadd.f32 %v841, %v921
  %v923 = vpop.f32.mrb[0].mxu0
  %924 = vmatprep.mubr.f32.mxu0 0.0
  %925 = vmatmul.mubr.f32.gmra.mrb[0].mxu0 %v853
  %v926 = vpop.f32.mrb[0].mxu0
  %v927 = vadd.f32 %v846, %v926
  %v928 = vpop.f32.mrb[0].mxu0
  %929 = vdwg.mxu0
  %v930 = vld [vmem:[%s12 + $0x40] sm:$0xff]
  %v931 = vld [vmem:[%s12 + $0x48] sm:$0xff]
  %v932 = vld [vmem:[%s12 + $0x50] sm:$0xff]
  %v933 = vld [vmem:[%s12 + $0x58] sm:$0xff]
  %v935 = vsel %vm95, %v758, 0
  %v938 = vsel %vm95, %v759, 0
  %940 = vmatprep.subr.mxu0 0.0
  %941 = vmatpush1.msra.mxu0 %v930
  %942 = vmatprep.subr.mxu0 0.0
  %943 = vmatpush1.msra.mxu0 %v931
  %944 = vmatprep.subr.mxu0 0.0
  %945 = vmatpush1.msra.mxu0 %v932
  %946 = vmatprep.subr.mxu0 0.0
  %947 = vmatpush1.msra.mxu0 %v933
  %948 = vmatprep.subr.mxu0 0.0
  %949 = vmatpush1.msra.mxu0 0.0
  %950 = vmatprep.subr.mxu0 0.0
  %951 = vmatpush1.msra.mxu0 0.0
  %952 = vmatprep.subr.mxu0 0.0
  %953 = vmatpush1.msra.mxu0 0.0
  %954 = vmatprep.subr.mxu0 0.0
  %955 = vmatpush1.msra.mxu0 0.0
  %956 = vmatprep.subr.mxu0 0.0
  %957 = vmatpush1.msra.mxu0 0.0
  %958 = vmatprep.subr.mxu0 0.0
  %959 = vmatpush1.msra.mxu0 0.0
  %960 = vmatprep.subr.mxu0 0.0
  %961 = vmatpush1.msra.mxu0 0.0
  %962 = vmatprep.subr.mxu0 0.0
  %963 = vmatpush1.msra.mxu0 0.0
  %964 = vmatprep.subr.mxu0 0.0
  %965 = vmatpush1.msra.mxu0 0.0
  %966 = vmatprep.subr.mxu0 0.0
  %967 = vmatpush1.msra.mxu0 0.0
  %968 = vmatprep.subr.mxu0 0.0
  %969 = vmatpush1.msra.mxu0 0.0
  %970 = vmatprep.subr.mxu0 0.0
  %971 = vmatpush1.msra.mxu0 0.0
  %972 = vmatprep.subr.mxu0 0.0
  %973 = vmatpush1.msra.mxu0 0.0
  %974 = vmatprep.subr.mxu0 0.0
  %975 = vmatpush1.msra.mxu0 0.0
  %976 = vmatprep.subr.mxu0 0.0
  %977 = vmatpush1.msra.mxu0 0.0
  %978 = vmatprep.subr.mxu0 0.0
  %979 = vmatpush1.msra.mxu0 0.0
  %980 = vmatprep.subr.mxu0 0.0
  %981 = vmatpush1.msra.mxu0 0.0
  %982 = vmatprep.subr.mxu0 0.0
  %983 = vmatpush1.msra.mxu0 0.0
  %984 = vmatprep.subr.mxu0 0.0
  %985 = vmatpush1.msra.mxu0 0.0
  %986 = vmatprep.subr.mxu0 0.0
  %987 = vmatpush1.msra.mxu0 0.0
  %988 = vmatprep.subr.mxu0 0.0
  %989 = vmatpush1.msra.mxu0 0.0
  %990 = vmatprep.subr.mxu0 0.0
  %991 = vmatpush1.msra.mxu0 0.0
  %992 = vmatprep.subr.mxu0 0.0
  %993 = vmatpush1.msra.mxu0 0.0
  %994 = vmatprep.subr.mxu0 0.0
  %995 = vmatpush1.msra.mxu0 0.0
  %996 = vmatprep.subr.mxu0 0.0
  %997 = vmatpush1.msra.mxu0 0.0
  %998 = vmatprep.subr.mxu0 0.0
  %999 = vmatpush1.msra.mxu0 0.0
  %1000 = vmatprep.subr.mxu0 0.0
  %1001 = vmatpush1.msra.mxu0 0.0
  %1002 = vmatprep.subr.mxu0 0.0
  %1003 = vmatpush1.msra.mxu0 0.0
  %1004 = vmatprep.mubr.f32.mxu0 0.0
  %1005 = vmatmul.mubr.f32.gmra.mrb[0].mxu0 %v935
  %v1006 = vpop.f32.mrb[0].mxu0
  %v1007 = vadd.f32 0.0, %v1006
  %v1008 = vpop.f32.mrb[0].mxu0
  %1009 = vmatprep.mubr.f32.mxu0 0.0
  %1010 = vmatmul.mubr.f32.gmra.mrb[0].mxu0 %v938
  %v1011 = vpop.f32.mrb[0].mxu0
  %v1012 = vadd.f32 0.0, %v1011
  %v1013 = vpop.f32.mrb[0].mxu0
  %1014 = vdwg.mxu0
  %v1015 = vadd.f32 %v922, %v1007
  %v1016 = vadd.f32 %v927, %v1012
  %v1017 = vld [vmem:[%s14] sm:$0x1]
  %v1018 = vlaneseq
  %v1019 = vshrl.u32 %v1018, 7
  %v1020 = vsub.s32 0, %v1019
  %v1021 = vrot.slane %v1017, %v1020
  %v1022 = vadd.f32 %v1015, %v1021
  %v1023 = vadd.f32 %v1016, %v1021
  %v1024 = vld [vmem:[%s13] sm:$0xff]
  %v1025 = vld [vmem:[%s13 + $0x8] sm:$0xff]
  %v1026 = vld [vmem:[%s13 + $0x10] sm:$0xff]
  %v1027 = vld [vmem:[%s13 + $0x18] sm:$0xff]
  %v1028 = vld [vmem:[%s14 + $0x1] sm:$0x1]
  %v1029 = vlaneseq
  %v1030 = vshrl.u32 %v1029, 7
  %v1031 = vsub.s32 0, %v1030
  %v1032 = vrot.slane %v1028, %v1031
  %v1034 = vsel %vm95, 0.0, 0
  %1036 = vmatprep.subr.mxu0 0.0
  %1037 = vmatpush1.msra.mxu0 %v1024
  %1038 = vmatprep.subr.mxu0 0.0
  %1039 = vmatpush1.msra.mxu0 %v1025
  %1040 = vmatprep.subr.mxu0 0.0
  %1041 = vmatpush1.msra.mxu0 %v1026
  %1042 = vmatprep.subr.mxu0 0.0
  %1043 = vmatpush1.msra.mxu0 %v1027
  %1044 = vmatprep.subr.mxu0 0.0
  %1045 = vmatpush1.msra.mxu0 0.0
  %1046 = vmatprep.subr.mxu0 0.0
  %1047 = vmatpush1.msra.mxu0 0.0
  %1048 = vmatprep.subr.mxu0 0.0
  %1049 = vmatpush1.msra.mxu0 0.0
  %1050 = vmatprep.subr.mxu0 0.0
  %1051 = vmatpush1.msra.mxu0 0.0
  %1052 = vmatprep.subr.mxu0 0.0
  %1053 = vmatpush1.msra.mxu0 0.0
  %1054 = vmatprep.subr.mxu0 0.0
  %1055 = vmatpush1.msra.mxu0 0.0
  %1056 = vmatprep.subr.mxu0 0.0
  %1057 = vmatpush1.msra.mxu0 0.0
  %1058 = vmatprep.subr.mxu0 0.0
  %1059 = vmatpush1.msra.mxu0 0.0
  %1060 = vmatprep.subr.mxu0 0.0
  %1061 = vmatpush1.msra.mxu0 0.0
  %1062 = vmatprep.subr.mxu0 0.0
  %1063 = vmatpush1.msra.mxu0 0.0
  %1064 = vmatprep.subr.mxu0 0.0
  %1065 = vmatpush1.msra.mxu0 0.0
  %1066 = vmatprep.subr.mxu0 0.0
  %1067 = vmatpush1.msra.mxu0 0.0
  %1068 = vmatprep.subr.mxu0 0.0
  %1069 = vmatpush1.msra.mxu0 0.0
  %1070 = vmatprep.subr.mxu0 0.0
  %1071 = vmatpush1.msra.mxu0 0.0
  %1072 = vmatprep.subr.mxu0 0.0
  %1073 = vmatpush1.msra.mxu0 0.0
  %1074 = vmatprep.subr.mxu0 0.0
  %1075 = vmatpush1.msra.mxu0 0.0
  %1076 = vmatprep.subr.mxu0 0.0
  %1077 = vmatpush1.msra.mxu0 0.0
  %1078 = vmatprep.subr.mxu0 0.0
  %1079 = vmatpush1.msra.mxu0 0.0
  %1080 = vmatprep.subr.mxu0 0.0
  %1081 = vmatpush1.msra.mxu0 0.0
  %1082 = vmatprep.subr.mxu0 0.0
  %1083 = vmatpush1.msra.mxu0 0.0
  %1084 = vmatprep.subr.mxu0 0.0
  %1085 = vmatpush1.msra.mxu0 0.0
  %1086 = vmatprep.subr.mxu0 0.0
  %1087 = vmatpush1.msra.mxu0 0.0
  %1088 = vmatprep.subr.mxu0 0.0
  %1089 = vmatpush1.msra.mxu0 0.0
  %1090 = vmatprep.subr.mxu0 0.0
  %1091 = vmatpush1.msra.mxu0 0.0
  %1092 = vmatprep.subr.mxu0 0.0
  %1093 = vmatpush1.msra.mxu0 0.0
  %1094 = vmatprep.subr.mxu0 0.0
  %1095 = vmatpush1.msra.mxu0 0.0
  %1096 = vmatprep.subr.mxu0 0.0
  %1097 = vmatpush1.msra.mxu0 0.0
  %1098 = vmatprep.subr.mxu0 0.0
  %1099 = vmatpush1.msra.mxu0 0.0
  %1100 = vmatprep.mubr.f32.mxu0 0.0
  %1101 = vmatmul.mubr.f32.gmra.mrb[0].mxu0 %v1034
  %v1102 = vpop.f32.mrb[0].mxu0
  %v1103 = vadd.f32 %v1032, %v1102
  %v1104 = vpop.f32.mrb[0].mxu0
  %1105 = vdwg.mxu0
  %v1106 = vadd.f32 %v1022, %v1103
  %v1107 = vxor.u32 %v1106, 2147483648
  %v1108 = vmul.f32 %v1107, 1.442695
  %v1109 = vpow.pop %v1108
  %v1110 = vadd.f32 %v1109, 1.0
  %v1111 = vrcp.pop %v1110
  %v1112 = vmul.f32 1.0, %v1111
  %1114 = vrot.lane.b32.xlu0 %v1103, 64
  %v1115 = vpop.permute.xlu0 %1114
  %v1117 = vmul.f32 %v1112, %v1115
  %1119 = vrot.lane.b32.xlu0 %v1117, 64
  %v1120 = vpop.permute.xlu0 %1119
  %v1122 = vadd.f32 %v1022, %v1120
  %v1123 = vtanh.pop %v1122
  %v1124 = vsub.f32 1.0, %v1112
  %1126 = vrot.lane.b32.xlu0 %v1123, 96
  %v1127 = vpop.permute.xlu0 %1126
  %v1129 = vmul.f32 %v1124, %v1127
  %v1130 = vmul.f32 %v1112, 0.0
  %v1131 = vadd.f32 %v1129, %v1130
  %1133 = vrot.lane.b32.xlu0 %v1131, 96
  %v1134 = vpop.permute.xlu0 %1133
  %vm1136 = vcmask 254976
  %1137 = vst.msk [vmem:[#allocation2] sm:$0x3] %vm1136, %v1134
  %v1138 = vsel %vm95, %v1134, 0
  %1140 = vmatprep.subr.mxu0 0.0
  %1141 = vmatpush1.msra.mxu0 %v1024
  %1142 = vmatprep.subr.mxu0 0.0
  %1143 = vmatpush1.msra.mxu0 %v1025
  %1144 = vmatprep.subr.mxu0 0.0
  %1145 = vmatpush1.msra.mxu0 %v1026
  %1146 = vmatprep.subr.mxu0 0.0
  %1147 = vmatpush1.msra.mxu0 %v1027
  %1148 = vmatprep.subr.mxu0 0.0
  %1149 = vmatpush1.msra.mxu0 0.0
  %1150 = vmatprep.subr.mxu0 0.0
  %1151 = vmatpush1.msra.mxu0 0.0
  %1152 = vmatprep.subr.mxu0 0.0
  %1153 = vmatpush1.msra.mxu0 0.0
  %1154 = vmatprep.subr.mxu0 0.0
  %1155 = vmatpush1.msra.mxu0 0.0
  %1156 = vmatprep.subr.mxu0 0.0
  %1157 = vmatpush1.msra.mxu0 0.0
  %1158 = vmatprep.subr.mxu0 0.0
  %1159 = vmatpush1.msra.mxu0 0.0
  %1160 = vmatprep.subr.mxu0 0.0
  %1161 = vmatpush1.msra.mxu0 0.0
  %1162 = vmatprep.subr.mxu0 0.0
  %1163 = vmatpush1.msra.mxu0 0.0
  %1164 = vmatprep.subr.mxu0 0.0
  %1165 = vmatpush1.msra.mxu0 0.0
  %1166 = vmatprep.subr.mxu0 0.0
  %1167 = vmatpush1.msra.mxu0 0.0
  %1168 = vmatprep.subr.mxu0 0.0
  %1169 = vmatpush1.msra.mxu0 0.0
  %1170 = vmatprep.subr.mxu0 0.0
  %1171 = vmatpush1.msra.mxu0 0.0
  %1172 = vmatprep.subr.mxu0 0.0
  %1173 = vmatpush1.msra.mxu0 0.0
  %1174 = vmatprep.subr.mxu0 0.0
  %1175 = vmatpush1.msra.mxu0 0.0
  %1176 = vmatprep.subr.mxu0 0.0
  %1177 = vmatpush1.msra.mxu0 0.0
  %1178 = vmatprep.subr.mxu0 0.0
  %1179 = vmatpush1.msra.mxu0 0.0
  %1180 = vmatprep.subr.mxu0 0.0
  %1181 = vmatpush1.msra.mxu0 0.0
  %1182 = vmatprep.subr.mxu0 0.0
  %1183 = vmatpush1.msra.mxu0 0.0
  %1184 = vmatprep.subr.mxu0 0.0
  %1185 = vmatpush1.msra.mxu0 0.0
  %1186 = vmatprep.subr.mxu0 0.0
  %1187 = vmatpush1.msra.mxu0 0.0
  %1188 = vmatprep.subr.mxu0 0.0
  %1189 = vmatpush1.msra.mxu0 0.0
  %1190 = vmatprep.subr.mxu0 0.0
  %1191 = vmatpush1.msra.mxu0 0.0
  %1192 = vmatprep.subr.mxu0 0.0
  %1193 = vmatpush1.msra.mxu0 0.0
  %1194 = vmatprep.subr.mxu0 0.0
  %1195 = vmatpush1.msra.mxu0 0.0
  %1196 = vmatprep.subr.mxu0 0.0
  %1197 = vmatpush1.msra.mxu0 0.0
  %1198 = vmatprep.subr.mxu0 0.0
  %1199 = vmatpush1.msra.mxu0 0.0
  %1200 = vmatprep.subr.mxu0 0.0
  %1201 = vmatpush1.msra.mxu0 0.0
  %1202 = vmatprep.subr.mxu0 0.0
  %1203 = vmatpush1.msra.mxu0 0.0
  %1204 = vmatprep.mubr.f32.mxu0 0.0
  %1205 = vmatmul.mubr.f32.gmra.mrb[0].mxu0 %v1138
  %v1206 = vpop.f32.mrb[0].mxu0
  %v1207 = vadd.f32 %v1032, %v1206
  %v1208 = vpop.f32.mrb[0].mxu0
  %1209 = vdwg.mxu0
  %v1211 = vrot.slane %v1207, 6
  %v1213 = vadd.f32 %v1022, %v1211
  %v1214 = vxor.u32 %v1213, 2147483648
  %v1215 = vmul.f32 %v1214, 1.442695
  %v1216 = vpow.pop %v1215
  %v1217 = vadd.f32 %v1216, 1.0
  %v1218 = vrcp.pop %v1217
  %v1219 = vmul.f32 1.0, %v1218
  %1220 = vrot.lane.b32.xlu0 %v1211, 64
  %v1221 = vpop.permute.xlu0 %1220
  %v1223 = vmul.f32 %v1219, %v1221
  %1225 = vrot.lane.b32.xlu0 %v1223, 64
  %v1226 = vpop.permute.xlu0 %1225
  %v1228 = vadd.f32 %v1022, %v1226
  %v1229 = vtanh.pop %v1228
  %v1230 = vsub.f32 1.0, %v1219
  %1232 = vrot.lane.b32.xlu0 %v1229, 96
  %v1233 = vpop.permute.xlu0 %1232
  %v1235 = vmul.f32 %v1230, %v1233
  %v1236 = vrot.slane %v1131, 6
  %v1238 = vmul.f32 %v1219, %v1236
  %v1239 = vadd.f32 %v1235, %v1238
  %1241 = vrot.lane.b32.xlu0 %v1239, 96
  %v1242 = vpop.permute.xlu0 %1241
  %vm1244 = vcmask 257026
  %1245 = vst.msk [vmem:[#allocation2] sm:$0xc] %vm1244, %v1242
  %v1246 = vrot.slane %v1239, 2
  %1247 = vrot.lane.b32.xlu0 %v1246, 96
  %v1248 = vpop.permute.xlu0 %1247
  %v1249 = vsel %vm95, %v1248, 0
  %1251 = vmatprep.subr.mxu0 0.0
  %1252 = vmatpush1.msra.mxu0 %v1024
  %1253 = vmatprep.subr.mxu0 0.0
  %1254 = vmatpush1.msra.mxu0 %v1025
  %1255 = vmatprep.subr.mxu0 0.0
  %1256 = vmatpush1.msra.mxu0 %v1026
  %1257 = vmatprep.subr.mxu0 0.0
  %1258 = vmatpush1.msra.mxu0 %v1027
  %1259 = vmatprep.subr.mxu0 0.0
  %1260 = vmatpush1.msra.mxu0 0.0
  %1261 = vmatprep.subr.mxu0 0.0
  %1262 = vmatpush1.msra.mxu0 0.0
  %1263 = vmatprep.subr.mxu0 0.0
  %1264 = vmatpush1.msra.mxu0 0.0
  %1265 = vmatprep.subr.mxu0 0.0
  %1266 = vmatpush1.msra.mxu0 0.0
  %1267 = vmatprep.subr.mxu0 0.0
  %1268 = vmatpush1.msra.mxu0 0.0
  %1269 = vmatprep.subr.mxu0 0.0
  %1270 = vmatpush1.msra.mxu0 0.0
  %1271 = vmatprep.subr.mxu0 0.0
  %1272 = vmatpush1.msra.mxu0 0.0
  %1273 = vmatprep.subr.mxu0 0.0
  %1274 = vmatpush1.msra.mxu0 0.0
  %1275 = vmatprep.subr.mxu0 0.0
  %1276 = vmatpush1.msra.mxu0 0.0
  %1277 = vmatprep.subr.mxu0 0.0
  %1278 = vmatpush1.msra.mxu0 0.0
  %1279 = vmatprep.subr.mxu0 0.0
  %1280 = vmatpush1.msra.mxu0 0.0
  %1281 = vmatprep.subr.mxu0 0.0
  %1282 = vmatpush1.msra.mxu0 0.0
  %1283 = vmatprep.subr.mxu0 0.0
  %1284 = vmatpush1.msra.mxu0 0.0
  %1285 = vmatprep.subr.mxu0 0.0
  %1286 = vmatpush1.msra.mxu0 0.0
  %1287 = vmatprep.subr.mxu0 0.0
  %1288 = vmatpush1.msra.mxu0 0.0
  %1289 = vmatprep.subr.mxu0 0.0
  %1290 = vmatpush1.msra.mxu0 0.0
  %1291 = vmatprep.subr.mxu0 0.0
  %1292 = vmatpush1.msra.mxu0 0.0
  %1293 = vmatprep.subr.mxu0 0.0
  %1294 = vmatpush1.msra.mxu0 0.0
  %1295 = vmatprep.subr.mxu0 0.0
  %1296 = vmatpush1.msra.mxu0 0.0
  %1297 = vmatprep.subr.mxu0 0.0
  %1298 = vmatpush1.msra.mxu0 0.0
  %1299 = vmatprep.subr.mxu0 0.0
  %1300 = vmatpush1.msra.mxu0 0.0
  %1301 = vmatprep.subr.mxu0 0.0
  %1302 = vmatpush1.msra.mxu0 0.0
  %1303 = vmatprep.subr.mxu0 0.0
  %1304 = vmatpush1.msra.mxu0 0.0
  %1305 = vmatprep.subr.mxu0 0.0
  %1306 = vmatpush1.msra.mxu0 0.0
  %1307 = vmatprep.subr.mxu0 0.0
  %1308 = vmatpush1.msra.mxu0 0.0
  %1309 = vmatprep.subr.mxu0 0.0
  %1310 = vmatpush1.msra.mxu0 0.0
  %1311 = vmatprep.subr.mxu0 0.0
  %1312 = vmatpush1.msra.mxu0 0.0
  %1313 = vmatprep.subr.mxu0 0.0
  %1314 = vmatpush1.msra.mxu0 0.0
  %1315 = vmatprep.mubr.f32.mxu0 0.0
  %1316 = vmatmul.mubr.f32.gmra.mrb[0].mxu0 %v1249
  %v1317 = vpop.f32.mrb[0].mxu0
  %v1318 = vadd.f32 %v1032, %v1317
  %v1319 = vpop.f32.mrb[0].mxu0
  %1320 = vdwg.mxu0
  %v1322 = vrot.slane %v1318, 4
  %v1324 = vadd.f32 %v1022, %v1322
  %v1325 = vxor.u32 %v1324, 2147483648
  %v1326 = vmul.f32 %v1325, 1.442695
  %v1327 = vpow.pop %v1326
  %v1328 = vadd.f32 %v1327, 1.0
  %v1329 = vrcp.pop %v1328
  %v1330 = vmul.f32 1.0, %v1329
  %1331 = vrot.lane.b32.xlu0 %v1322, 64
  %v1332 = vpop.permute.xlu0 %1331
  %v1334 = vmul.f32 %v1330, %v1332
  %1336 = vrot.lane.b32.xlu0 %v1334, 64
  %v1337 = vpop.permute.xlu0 %1336
  %v1339 = vadd.f32 %v1022, %v1337
  %v1340 = vtanh.pop %v1339
  %v1341 = vsub.f32 1.0, %v1330
  %1343 = vrot.lane.b32.xlu0 %v1340, 96
  %v1344 = vpop.permute.xlu0 %1343
  %v1346 = vmul.f32 %v1341, %v1344
  %v1347 = vrot.slane %v1239, 6
  %v1349 = vmul.f32 %v1330, %v1347
  %v1350 = vadd.f32 %v1346, %v1349
  %1352 = vrot.lane.b32.xlu0 %v1350, 96
  %v1353 = vpop.permute.xlu0 %1352
  %vm1355 = vcmask 259076
  %1356 = vst.msk [vmem:[#allocation2] sm:$0x30] %vm1355, %v1353
  %v1357 = vrot.slane %v1350, 4
  %1358 = vrot.lane.b32.xlu0 %v1357, 96
  %v1359 = vpop.permute.xlu0 %1358
  %v1360 = vsel %vm95, %v1359, 0
  %1362 = vmatprep.subr.mxu0 0.0
  %1363 = vmatpush1.msra.mxu0 %v1024
  %1364 = vmatprep.subr.mxu0 0.0
  %1365 = vmatpush1.msra.mxu0 %v1025
  %1366 = vmatprep.subr.mxu0 0.0
  %1367 = vmatpush1.msra.mxu0 %v1026
  %1368 = vmatprep.subr.mxu0 0.0
  %1369 = vmatpush1.msra.mxu0 %v1027
  %1370 = vmatprep.subr.mxu0 0.0
  %1371 = vmatpush1.msra.mxu0 0.0
  %1372 = vmatprep.subr.mxu0 0.0
  %1373 = vmatpush1.msra.mxu0 0.0
  %1374 = vmatprep.subr.mxu0 0.0
  %1375 = vmatpush1.msra.mxu0 0.0
  %1376 = vmatprep.subr.mxu0 0.0
  %1377 = vmatpush1.msra.mxu0 0.0
  %1378 = vmatprep.subr.mxu0 0.0
  %1379 = vmatpush1.msra.mxu0 0.0
  %1380 = vmatprep.subr.mxu0 0.0
  %1381 = vmatpush1.msra.mxu0 0.0
  %1382 = vmatprep.subr.mxu0 0.0
  %1383 = vmatpush1.msra.mxu0 0.0
  %1384 = vmatprep.subr.mxu0 0.0
  %1385 = vmatpush1.msra.mxu0 0.0
  %1386 = vmatprep.subr.mxu0 0.0
  %1387 = vmatpush1.msra.mxu0 0.0
  %1388 = vmatprep.subr.mxu0 0.0
  %1389 = vmatpush1.msra.mxu0 0.0
  %1390 = vmatprep.subr.mxu0 0.0
  %1391 = vmatpush1.msra.mxu0 0.0
  %1392 = vmatprep.subr.mxu0 0.0
  %1393 = vmatpush1.msra.mxu0 0.0
  %1394 = vmatprep.subr.mxu0 0.0
  %1395 = vmatpush1.msra.mxu0 0.0
  %1396 = vmatprep.subr.mxu0 0.0
  %1397 = vmatpush1.msra.mxu0 0.0
  %1398 = vmatprep.subr.mxu0 0.0
  %1399 = vmatpush1.msra.mxu0 0.0
  %1400 = vmatprep.subr.mxu0 0.0
  %1401 = vmatpush1.msra.mxu0 0.0
  %1402 = vmatprep.subr.mxu0 0.0
  %1403 = vmatpush1.msra.mxu0 0.0
  %1404 = vmatprep.subr.mxu0 0.0
  %1405 = vmatpush1.msra.mxu0 0.0
  %1406 = vmatprep.subr.mxu0 0.0
  %1407 = vmatpush1.msra.mxu0 0.0
  %1408 = vmatprep.subr.mxu0 0.0
  %1409 = vmatpush1.msra.mxu0 0.0
  %1410 = vmatprep.subr.mxu0 0.0
  %1411 = vmatpush1.msra.mxu0 0.0
  %1412 = vmatprep.subr.mxu0 0.0
  %1413 = vmatpush1.msra.mxu0 0.0
  %1414 = vmatprep.subr.mxu0 0.0
  %1415 = vmatpush1.msra.mxu0 0.0
  %1416 = vmatprep.subr.mxu0 0.0
  %1417 = vmatpush1.msra.mxu0 0.0
  %1418 = vmatprep.subr.mxu0 0.0
  %1419 = vmatpush1.msra.mxu0 0.0
  %1420 = vmatprep.subr.mxu0 0.0
  %1421 = vmatpush1.msra.mxu0 0.0
  %1422 = vmatprep.subr.mxu0 0.0
  %1423 = vmatpush1.msra.mxu0 0.0
  %1424 = vmatprep.subr.mxu0 0.0
  %1425 = vmatpush1.msra.mxu0 0.0
  %1426 = vmatprep.mubr.f32.mxu0 0.0
  %1427 = vmatmul.mubr.f32.gmra.mrb[0].mxu0 %v1360
  %v1428 = vpop.f32.mrb[0].mxu0
  %v1429 = vadd.f32 %v1032, %v1428
  %v1430 = vpop.f32.mrb[0].mxu0
  %1431 = vdwg.mxu0
  %v1433 = vrot.slane %v1429, 2
  %v1435 = vadd.f32 %v1022, %v1433
  %v1436 = vxor.u32 %v1435, 2147483648
  %v1437 = vmul.f32 %v1436, 1.442695
  %v1438 = vpow.pop %v1437
  %v1439 = vadd.f32 %v1438, 1.0
  %v1440 = vrcp.pop %v1439
  %v1441 = vmul.f32 1.0, %v1440
  %1442 = vrot.lane.b32.xlu0 %v1433, 64
  %v1443 = vpop.permute.xlu0 %1442
  %v1445 = vmul.f32 %v1441, %v1443
  %1447 = vrot.lane.b32.xlu0 %v1445, 64
  %v1448 = vpop.permute.xlu0 %1447
  %v1450 = vadd.f32 %v1022, %v1448
  %v1451 = vtanh.pop %v1450
  %v1452 = vsub.f32 1.0, %v1441
  %1454 = vrot.lane.b32.xlu0 %v1451, 96
  %v1455 = vpop.permute.xlu0 %1454
  %v1457 = vmul.f32 %v1452, %v1455
  %v1458 = vrot.slane %v1350, 6
  %v1460 = vmul.f32 %v1441, %v1458
  %v1461 = vadd.f32 %v1457, %v1460
  %1463 = vrot.lane.b32.xlu0 %v1461, 96
  %v1464 = vpop.permute.xlu0 %1463
  %vm1466 = vcmask 261126
  %1467 = vst.msk [vmem:[#allocation2] sm:$0xc0] %vm1466, %v1464
  %v1468 = vrot.slane %v1461, 6
  %1469 = vrot.lane.b32.xlu0 %v1468, 96
  %v1470 = vpop.permute.xlu0 %1469
  %v1471 = vsel %vm95, %v1470, 0
  %1473 = vmatprep.subr.mxu0 0.0
  %1474 = vmatpush1.msra.mxu0 %v1024
  %1475 = vmatprep.subr.mxu0 0.0
  %1476 = vmatpush1.msra.mxu0 %v1025
  %1477 = vmatprep.subr.mxu0 0.0
  %1478 = vmatpush1.msra.mxu0 %v1026
  %1479 = vmatprep.subr.mxu0 0.0
  %1480 = vmatpush1.msra.mxu0 %v1027
  %1481 = vmatprep.subr.mxu0 0.0
  %1482 = vmatpush1.msra.mxu0 0.0
  %1483 = vmatprep.subr.mxu0 0.0
  %1484 = vmatpush1.msra.mxu0 0.0
  %1485 = vmatprep.subr.mxu0 0.0
  %1486 = vmatpush1.msra.mxu0 0.0
  %1487 = vmatprep.subr.mxu0 0.0
  %1488 = vmatpush1.msra.mxu0 0.0
  %1489 = vmatprep.subr.mxu0 0.0
  %1490 = vmatpush1.msra.mxu0 0.0
  %1491 = vmatprep.subr.mxu0 0.0
  %1492 = vmatpush1.msra.mxu0 0.0
  %1493 = vmatprep.subr.mxu0 0.0
  %1494 = vmatpush1.msra.mxu0 0.0
  %1495 = vmatprep.subr.mxu0 0.0
  %1496 = vmatpush1.msra.mxu0 0.0
  %1497 = vmatprep.subr.mxu0 0.0
  %1498 = vmatpush1.msra.mxu0 0.0
  %1499 = vmatprep.subr.mxu0 0.0
  %1500 = vmatpush1.msra.mxu0 0.0
  %1501 = vmatprep.subr.mxu0 0.0
  %1502 = vmatpush1.msra.mxu0 0.0
  %1503 = vmatprep.subr.mxu0 0.0
  %1504 = vmatpush1.msra.mxu0 0.0
  %1505 = vmatprep.subr.mxu0 0.0
  %1506 = vmatpush1.msra.mxu0 0.0
  %1507 = vmatprep.subr.mxu0 0.0
  %1508 = vmatpush1.msra.mxu0 0.0
  %1509 = vmatprep.subr.mxu0 0.0
  %1510 = vmatpush1.msra.mxu0 0.0
  %1511 = vmatprep.subr.mxu0 0.0
  %1512 = vmatpush1.msra.mxu0 0.0
  %1513 = vmatprep.subr.mxu0 0.0
  %1514 = vmatpush1.msra.mxu0 0.0
  %1515 = vmatprep.subr.mxu0 0.0
  %1516 = vmatpush1.msra.mxu0 0.0
  %1517 = vmatprep.subr.mxu0 0.0
  %1518 = vmatpush1.msra.mxu0 0.0
  %1519 = vmatprep.subr.mxu0 0.0
  %1520 = vmatpush1.msra.mxu0 0.0
  %1521 = vmatprep.subr.mxu0 0.0
  %1522 = vmatpush1.msra.mxu0 0.0
  %1523 = vmatprep.subr.mxu0 0.0
  %1524 = vmatpush1.msra.mxu0 0.0
  %1525 = vmatprep.subr.mxu0 0.0
  %1526 = vmatpush1.msra.mxu0 0.0
  %1527 = vmatprep.subr.mxu0 0.0
  %1528 = vmatpush1.msra.mxu0 0.0
  %1529 = vmatprep.subr.mxu0 0.0
  %1530 = vmatpush1.msra.mxu0 0.0
  %1531 = vmatprep.subr.mxu0 0.0
  %1532 = vmatpush1.msra.mxu0 0.0
  %1533 = vmatprep.subr.mxu0 0.0
  %1534 = vmatpush1.msra.mxu0 0.0
  %1535 = vmatprep.subr.mxu0 0.0
  %1536 = vmatpush1.msra.mxu0 0.0
  %1537 = vmatprep.mubr.f32.mxu0 0.0
  %1538 = vmatmul.mubr.f32.gmra.mrb[0].mxu0 %v1471
  %v1539 = vpop.f32.mrb[0].mxu0
  %v1540 = vadd.f32 %v1032, %v1539
  %v1541 = vpop.f32.mrb[0].mxu0
  %1542 = vdwg.mxu0
  %v1543 = vadd.f32 %v1023, %v1540
  %v1544 = vxor.u32 %v1543, 2147483648
  %v1545 = vmul.f32 %v1544, 1.442695
  %v1546 = vpow.pop %v1545
  %v1547 = vadd.f32 %v1546, 1.0
  %v1548 = vrcp.pop %v1547
  %v1549 = vmul.f32 1.0, %v1548
  %1551 = vrot.lane.b32.xlu0 %v1540, 64
  %v1552 = vpop.permute.xlu0 %1551
  %v1554 = vmul.f32 %v1549, %v1552
  %1556 = vrot.lane.b32.xlu0 %v1554, 64
  %v1557 = vpop.permute.xlu0 %1556
  %v1559 = vadd.f32 %v1023, %v1557
  %v1560 = vtanh.pop %v1559
  %v1561 = vsub.f32 1.0, %v1549
  %1563 = vrot.lane.b32.xlu0 %v1560, 96
  %v1564 = vpop.permute.xlu0 %1563
  %v1566 = vmul.f32 %v1561, %v1564
  %v1568 = vmul.f32 %v1549, %v1468
  %v1569 = vadd.f32 %v1566, %v1568
  %1571 = vrot.lane.b32.xlu0 %v1569, 96
  %v1572 = vpop.permute.xlu0 %1571
  %1574 = vst.msk [vmem:[#allocation2 + $0x8] sm:$0x3] %vm1136, %v1572
  %v1575 = vsel %vm95, %v1572, 0
  %1577 = vmatprep.subr.mxu0 0.0
  %1578 = vmatpush1.msra.mxu0 %v1024
  %1579 = vmatprep.subr.mxu0 0.0
  %1580 = vmatpush1.msra.mxu0 %v1025
  %1581 = vmatprep.subr.mxu0 0.0
  %1582 = vmatpush1.msra.mxu0 %v1026
  %1583 = vmatprep.subr.mxu0 0.0
  %1584 = vmatpush1.msra.mxu0 %v1027
  %1585 = vmatprep.subr.mxu0 0.0
  %1586 = vmatpush1.msra.mxu0 0.0
  %1587 = vmatprep.subr.mxu0 0.0
  %1588 = vmatpush1.msra.mxu0 0.0
  %1589 = vmatprep.subr.mxu0 0.0
  %1590 = vmatpush1.msra.mxu0 0.0
  %1591 = vmatprep.subr.mxu0 0.0
  %1592 = vmatpush1.msra.mxu0 0.0
  %1593 = vmatprep.subr.mxu0 0.0
  %1594 = vmatpush1.msra.mxu0 0.0
  %1595 = vmatprep.subr.mxu0 0.0
  %1596 = vmatpush1.msra.mxu0 0.0
  %1597 = vmatprep.subr.mxu0 0.0
  %1598 = vmatpush1.msra.mxu0 0.0
  %1599 = vmatprep.subr.mxu0 0.0
  %1600 = vmatpush1.msra.mxu0 0.0
  %1601 = vmatprep.subr.mxu0 0.0
  %1602 = vmatpush1.msra.mxu0 0.0
  %1603 = vmatprep.subr.mxu0 0.0
  %1604 = vmatpush1.msra.mxu0 0.0
  %1605 = vmatprep.subr.mxu0 0.0
  %1606 = vmatpush1.msra.mxu0 0.0
  %1607 = vmatprep.subr.mxu0 0.0
  %1608 = vmatpush1.msra.mxu0 0.0
  %1609 = vmatprep.subr.mxu0 0.0
  %1610 = vmatpush1.msra.mxu0 0.0
  %1611 = vmatprep.subr.mxu0 0.0
  %1612 = vmatpush1.msra.mxu0 0.0
  %1613 = vmatprep.subr.mxu0 0.0
  %1614 = vmatpush1.msra.mxu0 0.0
  %1615 = vmatprep.subr.mxu0 0.0
  %1616 = vmatpush1.msra.mxu0 0.0
  %1617 = vmatprep.subr.mxu0 0.0
  %1618 = vmatpush1.msra.mxu0 0.0
  %1619 = vmatprep.subr.mxu0 0.0
  %1620 = vmatpush1.msra.mxu0 0.0
  %1621 = vmatprep.subr.mxu0 0.0
  %1622 = vmatpush1.msra.mxu0 0.0
  %1623 = vmatprep.subr.mxu0 0.0
  %1624 = vmatpush1.msra.mxu0 0.0
  %1625 = vmatprep.subr.mxu0 0.0
  %1626 = vmatpush1.msra.mxu0 0.0
  %1627 = vmatprep.subr.mxu0 0.0
  %1628 = vmatpush1.msra.mxu0 0.0
  %1629 = vmatprep.subr.mxu0 0.0
  %1630 = vmatpush1.msra.mxu0 0.0
  %1631 = vmatprep.subr.mxu0 0.0
  %1632 = vmatpush1.msra.mxu0 0.0
  %1633 = vmatprep.subr.mxu0 0.0
  %1634 = vmatpush1.msra.mxu0 0.0
  %1635 = vmatprep.subr.mxu0 0.0
  %1636 = vmatpush1.msra.mxu0 0.0
  %1637 = vmatprep.subr.mxu0 0.0
  %1638 = vmatpush1.msra.mxu0 0.0
  %1639 = vmatprep.subr.mxu0 0.0
  %1640 = vmatpush1.msra.mxu0 0.0
  %1641 = vmatprep.mubr.f32.mxu0 0.0
  %1642 = vmatmul.mubr.f32.gmra.mrb[0].mxu0 %v1575
  %v1643 = vpop.f32.mrb[0].mxu0
  %v1644 = vadd.f32 %v1032, %v1643
  %v1645 = vpop.f32.mrb[0].mxu0
  %1646 = vdwg.mxu0
  %v1648 = vrot.slane %v1644, 6
  %v1650 = vadd.f32 %v1023, %v1648
  %v1651 = vxor.u32 %v1650, 2147483648
  %v1652 = vmul.f32 %v1651, 1.442695
  %v1653 = vpow.pop %v1652
  %v1654 = vadd.f32 %v1653, 1.0
  %v1655 = vrcp.pop %v1654
  %v1656 = vmul.f32 1.0, %v1655
  %1657 = vrot.lane.b32.xlu0 %v1648, 64
  %v1658 = vpop.permute.xlu0 %1657
  %v1660 = vmul.f32 %v1656, %v1658
  %1662 = vrot.lane.b32.xlu0 %v1660, 64
  %v1663 = vpop.permute.xlu0 %1662
  %v1665 = vadd.f32 %v1023, %v1663
  %v1666 = vtanh.pop %v1665
  %v1667 = vsub.f32 1.0, %v1656
  %1669 = vrot.lane.b32.xlu0 %v1666, 96
  %v1670 = vpop.permute.xlu0 %1669
  %v1672 = vmul.f32 %v1667, %v1670
  %v1673 = vrot.slane %v1569, 6
  %v1675 = vmul.f32 %v1656, %v1673
  %v1676 = vadd.f32 %v1672, %v1675
  %1678 = vrot.lane.b32.xlu0 %v1676, 96
  %v1679 = vpop.permute.xlu0 %1678
  %1681 = vst.msk [vmem:[#allocation2 + $0x8] sm:$0xc] %vm1244, %v1679
  %v1682 = vrot.slane %v1676, 2
  %1683 = vrot.lane.b32.xlu0 %v1682, 96
  %v1684 = vpop.permute.xlu0 %1683
  %v1685 = vsel %vm95, %v1684, 0
  %1687 = vmatprep.subr.mxu0 0.0
  %1688 = vmatpush1.msra.mxu0 %v1024
  %1689 = vmatprep.subr.mxu0 0.0
  %1690 = vmatpush1.msra.mxu0 %v1025
  %1691 = vmatprep.subr.mxu0 0.0
  %1692 = vmatpush1.msra.mxu0 %v1026
  %1693 = vmatprep.subr.mxu0 0.0
  %1694 = vmatpush1.msra.mxu0 %v1027
  %1695 = vmatprep.subr.mxu0 0.0
  %1696 = vmatpush1.msra.mxu0 0.0
  %1697 = vmatprep.subr.mxu0 0.0
  %1698 = vmatpush1.msra.mxu0 0.0
  %1699 = vmatprep.subr.mxu0 0.0
  %1700 = vmatpush1.msra.mxu0 0.0
  %1701 = vmatprep.subr.mxu0 0.0
  %1702 = vmatpush1.msra.mxu0 0.0
  %1703 = vmatprep.subr.mxu0 0.0
  %1704 = vmatpush1.msra.mxu0 0.0
  %1705 = vmatprep.subr.mxu0 0.0
  %1706 = vmatpush1.msra.mxu0 0.0
  %1707 = vmatprep.subr.mxu0 0.0
  %1708 = vmatpush1.msra.mxu0 0.0
  %1709 = vmatprep.subr.mxu0 0.0
  %1710 = vmatpush1.msra.mxu0 0.0
  %1711 = vmatprep.subr.mxu0 0.0
  %1712 = vmatpush1.msra.mxu0 0.0
  %1713 = vmatprep.subr.mxu0 0.0
  %1714 = vmatpush1.msra.mxu0 0.0
  %1715 = vmatprep.subr.mxu0 0.0
  %1716 = vmatpush1.msra.mxu0 0.0
  %1717 = vmatprep.subr.mxu0 0.0
  %1718 = vmatpush1.msra.mxu0 0.0
  %1719 = vmatprep.subr.mxu0 0.0
  %1720 = vmatpush1.msra.mxu0 0.0
  %1721 = vmatprep.subr.mxu0 0.0
  %1722 = vmatpush1.msra.mxu0 0.0
  %1723 = vmatprep.subr.mxu0 0.0
  %1724 = vmatpush1.msra.mxu0 0.0
  %1725 = vmatprep.subr.mxu0 0.0
  %1726 = vmatpush1.msra.mxu0 0.0
  %1727 = vmatprep.subr.mxu0 0.0
  %1728 = vmatpush1.msra.mxu0 0.0
  %1729 = vmatprep.subr.mxu0 0.0
  %1730 = vmatpush1.msra.mxu0 0.0
  %1731 = vmatprep.subr.mxu0 0.0
  %1732 = vmatpush1.msra.mxu0 0.0
  %1733 = vmatprep.subr.mxu0 0.0
  %1734 = vmatpush1.msra.mxu0 0.0
  %1735 = vmatprep.subr.mxu0 0.0
  %1736 = vmatpush1.msra.mxu0 0.0
  %1737 = vmatprep.subr.mxu0 0.0
  %1738 = vmatpush1.msra.mxu0 0.0
  %1739 = vmatprep.subr.mxu0 0.0
  %1740 = vmatpush1.msra.mxu0 0.0
  %1741 = vmatprep.subr.mxu0 0.0
  %1742 = vmatpush1.msra.mxu0 0.0
  %1743 = vmatprep.subr.mxu0 0.0
  %1744 = vmatpush1.msra.mxu0 0.0
  %1745 = vmatprep.subr.mxu0 0.0
  %1746 = vmatpush1.msra.mxu0 0.0
  %1747 = vmatprep.subr.mxu0 0.0
  %1748 = vmatpush1.msra.mxu0 0.0
  %1749 = vmatprep.subr.mxu0 0.0
  %1750 = vmatpush1.msra.mxu0 0.0
  %1751 = vmatprep.mubr.f32.mxu0 0.0
  %1752 = vmatmul.mubr.f32.gmra.mrb[0].mxu0 %v1685
  %v1753 = vpop.f32.mrb[0].mxu0
  %v1754 = vadd.f32 %v1032, %v1753
  %v1755 = vpop.f32.mrb[0].mxu0
  %1756 = vdwg.mxu0
  %v1758 = vrot.slane %v1754, 4
  %v1760 = vadd.f32 %v1023, %v1758
  %v1761 = vxor.u32 %v1760, 2147483648
  %v1762 = vmul.f32 %v1761, 1.442695
  %v1763 = vpow.pop %v1762
  %v1764 = vadd.f32 %v1763, 1.0
  %v1765 = vrcp.pop %v1764
  %v1766 = vmul.f32 1.0, %v1765
  %1767 = vrot.lane.b32.xlu0 %v1758, 64
  %v1768 = vpop.permute.xlu0 %1767
  %v1770 = vmul.f32 %v1766, %v1768
  %1772 = vrot.lane.b32.xlu0 %v1770, 64
  %v1773 = vpop.permute.xlu0 %1772
  %v1775 = vadd.f32 %v1023, %v1773
  %v1776 = vtanh.pop %v1775
  %v1777 = vsub.f32 1.0, %v1766
  %1779 = vrot.lane.b32.xlu0 %v1776, 96
  %v1780 = vpop.permute.xlu0 %1779
  %v1782 = vmul.f32 %v1777, %v1780
  %v1783 = vrot.slane %v1676, 6
  %v1785 = vmul.f32 %v1766, %v1783
  %v1786 = vadd.f32 %v1782, %v1785
  %1788 = vrot.lane.b32.xlu0 %v1786, 96
  %v1789 = vpop.permute.xlu0 %1788
  %1791 = vst.msk [vmem:[#allocation2 + $0x8] sm:$0x30] %vm1355, %v1789
  %v1792 = vrot.slane %v1786, 4
  %1793 = vrot.lane.b32.xlu0 %v1792, 96
  %v1794 = vpop.permute.xlu0 %1793
  %v1795 = vsel %vm95, %v1794, 0
  %1797 = vmatprep.subr.mxu0 0.0
  %1798 = vmatpush1.msra.mxu0 %v1024
  %1799 = vmatprep.subr.mxu0 0.0
  %1800 = vmatpush1.msra.mxu0 %v1025
  %1801 = vmatprep.subr.mxu0 0.0
  %1802 = vmatpush1.msra.mxu0 %v1026
  %1803 = vmatprep.subr.mxu0 0.0
  %1804 = vmatpush1.msra.mxu0 %v1027
  %1805 = vmatprep.subr.mxu0 0.0
  %1806 = vmatpush1.msra.mxu0 0.0
  %1807 = vmatprep.subr.mxu0 0.0
  %1808 = vmatpush1.msra.mxu0 0.0
  %1809 = vmatprep.subr.mxu0 0.0
  %1810 = vmatpush1.msra.mxu0 0.0
  %1811 = vmatprep.subr.mxu0 0.0
  %1812 = vmatpush1.msra.mxu0 0.0
  %1813 = vmatprep.subr.mxu0 0.0
  %1814 = vmatpush1.msra.mxu0 0.0
  %1815 = vmatprep.subr.mxu0 0.0
  %1816 = vmatpush1.msra.mxu0 0.0
  %1817 = vmatprep.subr.mxu0 0.0
  %1818 = vmatpush1.msra.mxu0 0.0
  %1819 = vmatprep.subr.mxu0 0.0
  %1820 = vmatpush1.msra.mxu0 0.0
  %1821 = vmatprep.subr.mxu0 0.0
  %1822 = vmatpush1.msra.mxu0 0.0
  %1823 = vmatprep.subr.mxu0 0.0
  %1824 = vmatpush1.msra.mxu0 0.0
  %1825 = vmatprep.subr.mxu0 0.0
  %1826 = vmatpush1.msra.mxu0 0.0
  %1827 = vmatprep.subr.mxu0 0.0
  %1828 = vmatpush1.msra.mxu0 0.0
  %1829 = vmatprep.subr.mxu0 0.0
  %1830 = vmatpush1.msra.mxu0 0.0
  %1831 = vmatprep.subr.mxu0 0.0
  %1832 = vmatpush1.msra.mxu0 0.0
  %1833 = vmatprep.subr.mxu0 0.0
  %1834 = vmatpush1.msra.mxu0 0.0
  %1835 = vmatprep.subr.mxu0 0.0
  %1836 = vmatpush1.msra.mxu0 0.0
  %1837 = vmatprep.subr.mxu0 0.0
  %1838 = vmatpush1.msra.mxu0 0.0
  %1839 = vmatprep.subr.mxu0 0.0
  %1840 = vmatpush1.msra.mxu0 0.0
  %1841 = vmatprep.subr.mxu0 0.0
  %1842 = vmatpush1.msra.mxu0 0.0
  %1843 = vmatprep.subr.mxu0 0.0
  %1844 = vmatpush1.msra.mxu0 0.0
  %1845 = vmatprep.subr.mxu0 0.0
  %1846 = vmatpush1.msra.mxu0 0.0
  %1847 = vmatprep.subr.mxu0 0.0
  %1848 = vmatpush1.msra.mxu0 0.0
  %1849 = vmatprep.subr.mxu0 0.0
  %1850 = vmatpush1.msra.mxu0 0.0
  %1851 = vmatprep.subr.mxu0 0.0
  %1852 = vmatpush1.msra.mxu0 0.0
  %1853 = vmatprep.subr.mxu0 0.0
  %1854 = vmatpush1.msra.mxu0 0.0
  %1855 = vmatprep.subr.mxu0 0.0
  %1856 = vmatpush1.msra.mxu0 0.0
  %1857 = vmatprep.subr.mxu0 0.0
  %1858 = vmatpush1.msra.mxu0 0.0
  %1859 = vmatprep.subr.mxu0 0.0
  %1860 = vmatpush1.msra.mxu0 0.0
  %1861 = vmatprep.mubr.f32.mxu0 0.0
  %1862 = vmatmul.mubr.f32.gmra.mrb[0].mxu0 %v1795
  %v1863 = vpop.f32.mrb[0].mxu0
  %v1864 = vadd.f32 %v1032, %v1863
  %v1865 = vpop.f32.mrb[0].mxu0
  %1866 = vdwg.mxu0
  %v1868 = vrot.slane %v1864, 2
  %v1870 = vadd.f32 %v1023, %v1868
  %v1871 = vxor.u32 %v1870, 2147483648
  %v1872 = vmul.f32 %v1871, 1.442695
  %v1873 = vpow.pop %v1872
  %v1874 = vadd.f32 %v1873, 1.0
  %v1875 = vrcp.pop %v1874
  %v1876 = vmul.f32 1.0, %v1875
  %1877 = vrot.lane.b32.xlu0 %v1868, 64
  %v1878 = vpop.permute.xlu0 %1877
  %v1880 = vmul.f32 %v1876, %v1878
  %1882 = vrot.lane.b32.xlu0 %v1880, 64
  %v1883 = vpop.permute.xlu0 %1882
  %v1885 = vadd.f32 %v1023, %v1883
  %v1886 = vtanh.pop %v1885
  %v1887 = vsub.f32 1.0, %v1876
  %1889 = vrot.lane.b32.xlu0 %v1886, 96
  %v1890 = vpop.permute.xlu0 %1889
  %v1892 = vmul.f32 %v1887, %v1890
  %v1893 = vrot.slane %v1786, 6
  %v1895 = vmul.f32 %v1876, %v1893
  %v1896 = vadd.f32 %v1892, %v1895
  %1898 = vrot.lane.b32.xlu0 %v1896, 96
  %v1899 = vpop.permute.xlu0 %1898
  %1901 = vst.msk [vmem:[#allocation2 + $0x8] sm:$0xc0] %vm1466, %v1899
  %v1902 = vld [vmem:[#allocation2] sm:$0xff]
  %v1903 = vld [vmem:[#allocation2 + $0x8] sm:$0xff]
  %v1904 = vld [vmem:[%s15] sm:$0xff]
  %v1905 = vld [vmem:[%s15 + $0x8] sm:$0xff]
  %v1906 = vld [vmem:[%s15 + $0x10] sm:$0xff]
  %v1907 = vld [vmem:[%s15 + $0x18] sm:$0xff]
  %v1908 = vld [vmem:[%s15 + $0x20] sm:$0xff]
  %v1909 = vld [vmem:[%s15 + $0x28] sm:$0xff]
  %v1910 = vld [vmem:[%s15 + $0x30] sm:$0xff]
  %v1911 = vld [vmem:[%s15 + $0x38] sm:$0xff]
  %1912 = vmatprep.subr.mxu0 0.0
  %1913 = vmatpush1.msra.mxu0 %v1908
  %1914 = vmatprep.subr.mxu0 0.0
  %1915 = vmatpush1.msra.mxu0 %v1909
  %1916 = vmatprep.subr.mxu0 0.0
  %1917 = vmatpush1.msra.mxu0 %v1910
  %1918 = vmatprep.subr.mxu0 0.0
  %1919 = vmatpush1.msra.mxu0 %v1911
  %1920 = vmatprep.subr.mxu0 0.0
  %1921 = vmatpush1.msra.mxu0 0.0
  %1922 = vmatprep.subr.mxu0 0.0
  %1923 = vmatpush1.msra.mxu0 0.0
  %1924 = vmatprep.subr.mxu0 0.0
  %1925 = vmatpush1.msra.mxu0 0.0
  %1926 = vmatprep.subr.mxu0 0.0
  %1927 = vmatpush1.msra.mxu0 0.0
  %1928 = vmatprep.subr.mxu0 0.0
  %1929 = vmatpush1.msra.mxu0 0.0
  %1930 = vmatprep.subr.mxu0 0.0
  %1931 = vmatpush1.msra.mxu0 0.0
  %1932 = vmatprep.subr.mxu0 0.0
  %1933 = vmatpush1.msra.mxu0 0.0
  %1934 = vmatprep.subr.mxu0 0.0
  %1935 = vmatpush1.msra.mxu0 0.0
  %1936 = vmatprep.subr.mxu0 0.0
  %1937 = vmatpush1.msra.mxu0 0.0
  %1938 = vmatprep.subr.mxu0 0.0
  %1939 = vmatpush1.msra.mxu0 0.0
  %1940 = vmatprep.subr.mxu0 0.0
  %1941 = vmatpush1.msra.mxu0 0.0
  %1942 = vmatprep.subr.mxu0 0.0
  %1943 = vmatpush1.msra.mxu0 0.0
  %1944 = vmatprep.subr.mxu0 0.0
  %1945 = vmatpush1.msra.mxu0 0.0
  %1946 = vmatprep.subr.mxu0 0.0
  %1947 = vmatpush1.msra.mxu0 0.0
  %1948 = vmatprep.subr.mxu0 0.0
  %1949 = vmatpush1.msra.mxu0 0.0
  %1950 = vmatprep.subr.mxu0 0.0
  %1951 = vmatpush1.msra.mxu0 0.0
  %1952 = vmatprep.subr.mxu0 0.0
  %1953 = vmatpush1.msra.mxu0 0.0
  %1954 = vmatprep.subr.mxu0 0.0
  %1955 = vmatpush1.msra.mxu0 0.0
  %1956 = vmatprep.subr.mxu0 0.0
  %1957 = vmatpush1.msra.mxu0 0.0
  %1958 = vmatprep.subr.mxu0 0.0
  %1959 = vmatpush1.msra.mxu0 0.0
  %1960 = vmatprep.subr.mxu0 0.0
  %1961 = vmatpush1.msra.mxu0 0.0
  %1962 = vmatprep.subr.mxu0 0.0
  %1963 = vmatpush1.msra.mxu0 0.0
  %1964 = vmatprep.subr.mxu0 0.0
  %1965 = vmatpush1.msra.mxu0 0.0
  %1966 = vmatprep.subr.mxu0 0.0
  %1967 = vmatpush1.msra.mxu0 0.0
  %1968 = vmatprep.subr.mxu0 0.0
  %1969 = vmatpush1.msra.mxu0 0.0
  %1970 = vmatprep.subr.mxu0 0.0
  %1971 = vmatpush1.msra.mxu0 0.0
  %1972 = vmatprep.subr.mxu0 0.0
  %1973 = vmatpush1.msra.mxu0 0.0
  %1974 = vmatprep.subr.mxu0 0.0
  %1975 = vmatpush1.msra.mxu0 0.0
  %1976 = vmatprep.mubr.f32.mxu0 0.0
  %1977 = vmatmul.mubr.f32.gmra.mrb[0].mxu0 %v769
  %v1978 = vpop.f32.mrb[0].mxu0
  %v1979 = vadd.f32 0.0, %v1978
  %v1980 = vpop.f32.mrb[0].mxu0
  %1981 = vmatprep.mubr.f32.mxu0 0.0
  %1982 = vmatmul.mubr.f32.gmra.mrb[0].mxu0 %v772
  %v1983 = vpop.f32.mrb[0].mxu0
  %v1984 = vadd.f32 0.0, %v1983
  %v1985 = vpop.f32.mrb[0].mxu0
  %1986 = vdwg.mxu0
  %1987 = vmatprep.subr.mxu0 0.0
  %1988 = vmatpush1.msra.mxu0 %v1904
  %1989 = vmatprep.subr.mxu0 0.0
  %1990 = vmatpush1.msra.mxu0 %v1905
  %1991 = vmatprep.subr.mxu0 0.0
  %1992 = vmatpush1.msra.mxu0 %v1906
  %1993 = vmatprep.subr.mxu0 0.0
  %1994 = vmatpush1.msra.mxu0 %v1907
  %1995 = vmatprep.subr.mxu0 0.0
  %1996 = vmatpush1.msra.mxu0 0.0
  %1997 = vmatprep.subr.mxu0 0.0
  %1998 = vmatpush1.msra.mxu0 0.0
  %1999 = vmatprep.subr.mxu0 0.0
  %2000 = vmatpush1.msra.mxu0 0.0
  %2001 = vmatprep.subr.mxu0 0.0
  %2002 = vmatpush1.msra.mxu0 0.0
  %2003 = vmatprep.subr.mxu0 0.0
  %2004 = vmatpush1.msra.mxu0 0.0
  %2005 = vmatprep.subr.mxu0 0.0
  %2006 = vmatpush1.msra.mxu0 0.0
  %2007 = vmatprep.subr.mxu0 0.0
  %2008 = vmatpush1.msra.mxu0 0.0
  %2009 = vmatprep.subr.mxu0 0.0
  %2010 = vmatpush1.msra.mxu0 0.0
  %2011 = vmatprep.subr.mxu0 0.0
  %2012 = vmatpush1.msra.mxu0 0.0
  %2013 = vmatprep.subr.mxu0 0.0
  %2014 = vmatpush1.msra.mxu0 0.0
  %2015 = vmatprep.subr.mxu0 0.0
  %2016 = vmatpush1.msra.mxu0 0.0
  %2017 = vmatprep.subr.mxu0 0.0
  %2018 = vmatpush1.msra.mxu0 0.0
  %2019 = vmatprep.subr.mxu0 0.0
  %2020 = vmatpush1.msra.mxu0 0.0
  %2021 = vmatprep.subr.mxu0 0.0
  %2022 = vmatpush1.msra.mxu0 0.0
  %2023 = vmatprep.subr.mxu0 0.0
  %2024 = vmatpush1.msra.mxu0 0.0
  %2025 = vmatprep.subr.mxu0 0.0
  %2026 = vmatpush1.msra.mxu0 0.0
  %2027 = vmatprep.subr.mxu0 0.0
  %2028 = vmatpush1.msra.mxu0 0.0
  %2029 = vmatprep.subr.mxu0 0.0
  %2030 = vmatpush1.msra.mxu0 0.0
  %2031 = vmatprep.subr.mxu0 0.0
  %2032 = vmatpush1.msra.mxu0 0.0
  %2033 = vmatprep.subr.mxu0 0.0
  %2034 = vmatpush1.msra.mxu0 0.0
  %2035 = vmatprep.subr.mxu0 0.0
  %2036 = vmatpush1.msra.mxu0 0.0
  %2037 = vmatprep.subr.mxu0 0.0
  %2038 = vmatpush1.msra.mxu0 0.0
  %2039 = vmatprep.subr.mxu0 0.0
  %2040 = vmatpush1.msra.mxu0 0.0
  %2041 = vmatprep.subr.mxu0 0.0
  %2042 = vmatpush1.msra.mxu0 0.0
  %2043 = vmatprep.subr.mxu0 0.0
  %2044 = vmatpush1.msra.mxu0 0.0
  %2045 = vmatprep.subr.mxu0 0.0
  %2046 = vmatpush1.msra.mxu0 0.0
  %2047 = vmatprep.subr.mxu0 0.0
  %2048 = vmatpush1.msra.mxu0 0.0
  %2049 = vmatprep.subr.mxu0 0.0
  %2050 = vmatpush1.msra.mxu0 0.0
  %2051 = vmatprep.mubr.f32.mxu0 0.0
  %2052 = vmatmul.mubr.f32.gmra.mrb[0].mxu0 %v850
  %v2053 = vpop.f32.mrb[0].mxu0
  %v2054 = vadd.f32 %v1979, %v2053
  %v2055 = vpop.f32.mrb[0].mxu0
  %2056 = vmatprep.mubr.f32.mxu0 0.0
  %2057 = vmatmul.mubr.f32.gmra.mrb[0].mxu0 %v853
  %v2058 = vpop.f32.mrb[0].mxu0
  %v2059 = vadd.f32 %v1984, %v2058
  %v2060 = vpop.f32.mrb[0].mxu0
  %2061 = vdwg.mxu0
  %v2062 = vld [vmem:[%s15 + $0x40] sm:$0xff]
  %v2063 = vld [vmem:[%s15 + $0x48] sm:$0xff]
  %v2064 = vld [vmem:[%s15 + $0x50] sm:$0xff]
  %v2065 = vld [vmem:[%s15 + $0x58] sm:$0xff]
  %2066 = vmatprep.subr.mxu0 0.0
  %2067 = vmatpush1.msra.mxu0 %v2062
  %2068 = vmatprep.subr.mxu0 0.0
  %2069 = vmatpush1.msra.mxu0 %v2063
  %2070 = vmatprep.subr.mxu0 0.0
  %2071 = vmatpush1.msra.mxu0 %v2064
  %2072 = vmatprep.subr.mxu0 0.0
  %2073 = vmatpush1.msra.mxu0 %v2065
  %2074 = vmatprep.subr.mxu0 0.0
  %2075 = vmatpush1.msra.mxu0 0.0
  %2076 = vmatprep.subr.mxu0 0.0
  %2077 = vmatpush1.msra.mxu0 0.0
  %2078 = vmatprep.subr.mxu0 0.0
  %2079 = vmatpush1.msra.mxu0 0.0
  %2080 = vmatprep.subr.mxu0 0.0
  %2081 = vmatpush1.msra.mxu0 0.0
  %2082 = vmatprep.subr.mxu0 0.0
  %2083 = vmatpush1.msra.mxu0 0.0
  %2084 = vmatprep.subr.mxu0 0.0
  %2085 = vmatpush1.msra.mxu0 0.0
  %2086 = vmatprep.subr.mxu0 0.0
  %2087 = vmatpush1.msra.mxu0 0.0
  %2088 = vmatprep.subr.mxu0 0.0
  %2089 = vmatpush1.msra.mxu0 0.0
  %2090 = vmatprep.subr.mxu0 0.0
  %2091 = vmatpush1.msra.mxu0 0.0
  %2092 = vmatprep.subr.mxu0 0.0
  %2093 = vmatpush1.msra.mxu0 0.0
  %2094 = vmatprep.subr.mxu0 0.0
  %2095 = vmatpush1.msra.mxu0 0.0
  %2096 = vmatprep.subr.mxu0 0.0
  %2097 = vmatpush1.msra.mxu0 0.0
  %2098 = vmatprep.subr.mxu0 0.0
  %2099 = vmatpush1.msra.mxu0 0.0
  %2100 = vmatprep.subr.mxu0 0.0
  %2101 = vmatpush1.msra.mxu0 0.0
  %2102 = vmatprep.subr.mxu0 0.0
  %2103 = vmatpush1.msra.mxu0 0.0
  %2104 = vmatprep.subr.mxu0 0.0
  %2105 = vmatpush1.msra.mxu0 0.0
  %2106 = vmatprep.subr.mxu0 0.0
  %2107 = vmatpush1.msra.mxu0 0.0
  %2108 = vmatprep.subr.mxu0 0.0
  %2109 = vmatpush1.msra.mxu0 0.0
  %2110 = vmatprep.subr.mxu0 0.0
  %2111 = vmatpush1.msra.mxu0 0.0
  %2112 = vmatprep.subr.mxu0 0.0
  %2113 = vmatpush1.msra.mxu0 0.0
  %2114 = vmatprep.subr.mxu0 0.0
  %2115 = vmatpush1.msra.mxu0 0.0
  %2116 = vmatprep.subr.mxu0 0.0
  %2117 = vmatpush1.msra.mxu0 0.0
  %2118 = vmatprep.subr.mxu0 0.0
  %2119 = vmatpush1.msra.mxu0 0.0
  %2120 = vmatprep.subr.mxu0 0.0
  %2121 = vmatpush1.msra.mxu0 0.0
  %2122 = vmatprep.subr.mxu0 0.0
  %2123 = vmatpush1.msra.mxu0 0.0
  %2124 = vmatprep.subr.mxu0 0.0
  %2125 = vmatpush1.msra.mxu0 0.0
  %2126 = vmatprep.subr.mxu0 0.0
  %2127 = vmatpush1.msra.mxu0 0.0
  %2128 = vmatprep.subr.mxu0 0.0
  %2129 = vmatpush1.msra.mxu0 0.0
  %2130 = vmatprep.mubr.f32.mxu0 0.0
  %2131 = vmatmul.mubr.f32.gmra.mrb[0].mxu0 %v935
  %v2132 = vpop.f32.mrb[0].mxu0
  %v2133 = vadd.f32 0.0, %v2132
  %v2134 = vpop.f32.mrb[0].mxu0
  %2135 = vmatprep.mubr.f32.mxu0 0.0
  %2136 = vmatmul.mubr.f32.gmra.mrb[0].mxu0 %v938
  %v2137 = vpop.f32.mrb[0].mxu0
  %v2138 = vadd.f32 0.0, %v2137
  %v2139 = vpop.f32.mrb[0].mxu0
  %2140 = vdwg.mxu0
  %v2141 = vadd.f32 %v2054, %v2133
  %v2142 = vadd.f32 %v2059, %v2138
  %v2143 = vld [vmem:[%s15 + $0x60] sm:$0xff]
  %v2144 = vld [vmem:[%s15 + $0x68] sm:$0xff]
  %v2145 = vld [vmem:[%s15 + $0x70] sm:$0xff]
  %v2146 = vld [vmem:[%s15 + $0x78] sm:$0xff]
  %v2148 = vsel %vm95, %v1902, 0
  %v2151 = vsel %vm95, %v1903, 0
  %2153 = vmatprep.subr.mxu0 0.0
  %2154 = vmatpush1.msra.mxu0 %v2143
  %2155 = vmatprep.subr.mxu0 0.0
  %2156 = vmatpush1.msra.mxu0 %v2144
  %2157 = vmatprep.subr.mxu0 0.0
  %2158 = vmatpush1.msra.mxu0 %v2145
  %2159 = vmatprep.subr.mxu0 0.0
  %2160 = vmatpush1.msra.mxu0 %v2146
  %2161 = vmatprep.subr.mxu0 0.0
  %2162 = vmatpush1.msra.mxu0 0.0
  %2163 = vmatprep.subr.mxu0 0.0
  %2164 = vmatpush1.msra.mxu0 0.0
  %2165 = vmatprep.subr.mxu0 0.0
  %2166 = vmatpush1.msra.mxu0 0.0
  %2167 = vmatprep.subr.mxu0 0.0
  %2168 = vmatpush1.msra.mxu0 0.0
  %2169 = vmatprep.subr.mxu0 0.0
  %2170 = vmatpush1.msra.mxu0 0.0
  %2171 = vmatprep.subr.mxu0 0.0
  %2172 = vmatpush1.msra.mxu0 0.0
  %2173 = vmatprep.subr.mxu0 0.0
  %2174 = vmatpush1.msra.mxu0 0.0
  %2175 = vmatprep.subr.mxu0 0.0
  %2176 = vmatpush1.msra.mxu0 0.0
  %2177 = vmatprep.subr.mxu0 0.0
  %2178 = vmatpush1.msra.mxu0 0.0
  %2179 = vmatprep.subr.mxu0 0.0
  %2180 = vmatpush1.msra.mxu0 0.0
  %2181 = vmatprep.subr.mxu0 0.0
  %2182 = vmatpush1.msra.mxu0 0.0
  %2183 = vmatprep.subr.mxu0 0.0
  %2184 = vmatpush1.msra.mxu0 0.0
  %2185 = vmatprep.subr.mxu0 0.0
  %2186 = vmatpush1.msra.mxu0 0.0
  %2187 = vmatprep.subr.mxu0 0.0
  %2188 = vmatpush1.msra.mxu0 0.0
  %2189 = vmatprep.subr.mxu0 0.0
  %2190 = vmatpush1.msra.mxu0 0.0
  %2191 = vmatprep.subr.mxu0 0.0
  %2192 = vmatpush1.msra.mxu0 0.0
  %2193 = vmatprep.subr.mxu0 0.0
  %2194 = vmatpush1.msra.mxu0 0.0
  %2195 = vmatprep.subr.mxu0 0.0
  %2196 = vmatpush1.msra.mxu0 0.0
  %2197 = vmatprep.subr.mxu0 0.0
  %2198 = vmatpush1.msra.mxu0 0.0
  %2199 = vmatprep.subr.mxu0 0.0
  %2200 = vmatpush1.msra.mxu0 0.0
  %2201 = vmatprep.subr.mxu0 0.0
  %2202 = vmatpush1.msra.mxu0 0.0
  %2203 = vmatprep.subr.mxu0 0.0
  %2204 = vmatpush1.msra.mxu0 0.0
  %2205 = vmatprep.subr.mxu0 0.0
  %2206 = vmatpush1.msra.mxu0 0.0
  %2207 = vmatprep.subr.mxu0 0.0
  %2208 = vmatpush1.msra.mxu0 0.0
  %2209 = vmatprep.subr.mxu0 0.0
  %2210 = vmatpush1.msra.mxu0 0.0
  %2211 = vmatprep.subr.mxu0 0.0
  %2212 = vmatpush1.msra.mxu0 0.0
  %2213 = vmatprep.subr.mxu0 0.0
  %2214 = vmatpush1.msra.mxu0 0.0
  %2215 = vmatprep.subr.mxu0 0.0
  %2216 = vmatpush1.msra.mxu0 0.0
  %2217 = vmatprep.mubr.f32.mxu0 0.0
  %2218 = vmatmul.mubr.f32.gmra.mrb[0].mxu0 %v2148
  %v2219 = vpop.f32.mrb[0].mxu0
  %v2220 = vadd.f32 0.0, %v2219
  %v2221 = vpop.f32.mrb[0].mxu0
  %2222 = vmatprep.mubr.f32.mxu0 0.0
  %2223 = vmatmul.mubr.f32.gmra.mrb[0].mxu0 %v2151
  %v2224 = vpop.f32.mrb[0].mxu0
  %v2225 = vadd.f32 0.0, %v2224
  %v2226 = vpop.f32.mrb[0].mxu0
  %2227 = vdwg.mxu0
  %v2228 = vadd.f32 %v2141, %v2220
  %v2229 = vadd.f32 %v2142, %v2225
  %v2230 = vld [vmem:[%s17] sm:$0x1]
  %v2231 = vlaneseq
  %v2232 = vshrl.u32 %v2231, 7
  %v2233 = vsub.s32 0, %v2232
  %v2234 = vrot.slane %v2230, %v2233
  %v2235 = vadd.f32 %v2228, %v2234
  %v2236 = vadd.f32 %v2229, %v2234
  %v2237 = vld [vmem:[%s17 + $0x1] sm:$0x1]
  %v2238 = vld [vmem:[%s17 + $0x2] sm:$0x1]
  %v2239 = vsel %vm95, %v2235, 0.0
  %2240 = vadd.xlane.f32.xlu0 %v2239
  %v2241 = vpop.xlane.xlu0 %2240
  %v2242 = vsel %vm95, %v2236, 0.0
  %2243 = vadd.xlane.f32.xlu0 %v2242
  %v2244 = vpop.xlane.xlu0 %2243
  %v2245 = vmul.f32 %v2241, %v102
  %v2246 = vmul.f32 %v2244, %v102
  %v2247 = vsub.f32 %v2235, %v2245
  %v2248 = vsub.f32 %v2236, %v2246
  %v2249 = vmul.f32 %v2247, %v2247
  %v2250 = vmul.f32 %v2248, %v2248
  %v2251 = vsel %vm95, %v2249, 0.0
  %2252 = vadd.xlane.f32.xlu0 %v2251
  %v2253 = vpop.xlane.xlu0 %2252
  %v2254 = vsel %vm95, %v2250, 0.0
  %2255 = vadd.xlane.f32.xlu0 %v2254
  %v2256 = vpop.xlane.xlu0 %2255
  %v2257 = vmul.f32 %v2253, %v102
  %v2258 = vmul.f32 %v2256, %v102
  %v2259 = vadd.f32 %v2257, 1e-05
  %v2260 = vadd.f32 %v2258, 1e-05
  %v2261 = vrsqrt.pop %v2259
  %v2262 = vrsqrt.pop %v2260
  %v2263 = vmul.f32 %v2247, %v2261
  %v2264 = vmul.f32 %v2248, %v2262
  %v2265 = vlaneseq
  %v2266 = vshrl.u32 %v2265, 7
  %v2267 = vsub.s32 0, %v2266
  %v2268 = vrot.slane %v2237, %v2267
  %v2269 = vmul.f32 %v2263, %v2268
  %v2270 = vmul.f32 %v2264, %v2268
  %v2271 = vlaneseq
  %v2272 = vshrl.u32 %v2271, 7
  %v2273 = vsub.s32 0, %v2272
  %v2274 = vrot.slane %v2238, %v2273
  %v2275 = vadd.f32 %v2269, %v2274
  %v2276 = vadd.f32 %v2270, %v2274
  %vm2277 = vcmp.ge.f32.partialorder %v2275, 0.0
  %vm2278 = vcmp.ge.f32.partialorder %v2276, 0.0
  %v2279 = vmul.f32 %v2275, 0.01
  %v2280 = vmul.f32 %v2276, 0.01
  %v2281 = vsel %vm2277, %v2275, %v2279
  %v2282 = vsel %vm2278, %v2276, %v2280
  %v2283 = vld [vmem:[%s16] sm:$0xff]
  %v2284 = vld [vmem:[%s16 + $0x8] sm:$0xff]
  %v2285 = vld [vmem:[%s16 + $0x10] sm:$0xff]
  %v2286 = vld [vmem:[%s16 + $0x18] sm:$0xff]
  %v2287 = vld [vmem:[%s17 + $0x3] sm:$0x1]
  %v2288 = vlaneseq
  %v2289 = vshrl.u32 %v2288, 7
  %v2290 = vsub.s32 0, %v2289
  %v2291 = vrot.slane %v2287, %v2290
  %v2293 = vsel %vm95, %v2281, 0
  %v2296 = vsel %vm95, %v2282, 0
  %2298 = vmatprep.subr.mxu0 0.0
  %2299 = vmatpush1.msra.mxu0 %v2283
  %2300 = vmatprep.subr.mxu0 0.0
  %2301 = vmatpush1.msra.mxu0 %v2284
  %2302 = vmatprep.subr.mxu0 0.0
  %2303 = vmatpush1.msra.mxu0 %v2285
  %2304 = vmatprep.subr.mxu0 0.0
  %2305 = vmatpush1.msra.mxu0 %v2286
  %2306 = vmatprep.subr.mxu0 0.0
  %2307 = vmatpush1.msra.mxu0 0.0
  %2308 = vmatprep.subr.mxu0 0.0
  %2309 = vmatpush1.msra.mxu0 0.0
  %2310 = vmatprep.subr.mxu0 0.0
  %2311 = vmatpush1.msra.mxu0 0.0
  %2312 = vmatprep.subr.mxu0 0.0
  %2313 = vmatpush1.msra.mxu0 0.0
  %2314 = vmatprep.subr.mxu0 0.0
  %2315 = vmatpush1.msra.mxu0 0.0
  %2316 = vmatprep.subr.mxu0 0.0
  %2317 = vmatpush1.msra.mxu0 0.0
  %2318 = vmatprep.subr.mxu0 0.0
  %2319 = vmatpush1.msra.mxu0 0.0
  %2320 = vmatprep.subr.mxu0 0.0
  %2321 = vmatpush1.msra.mxu0 0.0
  %2322 = vmatprep.subr.mxu0 0.0
  %2323 = vmatpush1.msra.mxu0 0.0
  %2324 = vmatprep.subr.mxu0 0.0
  %2325 = vmatpush1.msra.mxu0 0.0
  %2326 = vmatprep.subr.mxu0 0.0
  %2327 = vmatpush1.msra.mxu0 0.0
  %2328 = vmatprep.subr.mxu0 0.0
  %2329 = vmatpush1.msra.mxu0 0.0
  %2330 = vmatprep.subr.mxu0 0.0
  %2331 = vmatpush1.msra.mxu0 0.0
  %2332 = vmatprep.subr.mxu0 0.0
  %2333 = vmatpush1.msra.mxu0 0.0
  %2334 = vmatprep.subr.mxu0 0.0
  %2335 = vmatpush1.msra.mxu0 0.0
  %2336 = vmatprep.subr.mxu0 0.0
  %2337 = vmatpush1.msra.mxu0 0.0
  %2338 = vmatprep.subr.mxu0 0.0
  %2339 = vmatpush1.msra.mxu0 0.0
  %2340 = vmatprep.subr.mxu0 0.0
  %2341 = vmatpush1.msra.mxu0 0.0
  %2342 = vmatprep.subr.mxu0 0.0
  %2343 = vmatpush1.msra.mxu0 0.0
  %2344 = vmatprep.subr.mxu0 0.0
  %2345 = vmatpush1.msra.mxu0 0.0
  %2346 = vmatprep.subr.mxu0 0.0
  %2347 = vmatpush1.msra.mxu0 0.0
  %2348 = vmatprep.subr.mxu0 0.0
  %2349 = vmatpush1.msra.mxu0 0.0
  %2350 = vmatprep.subr.mxu0 0.0
  %2351 = vmatpush1.msra.mxu0 0.0
  %2352 = vmatprep.subr.mxu0 0.0
  %2353 = vmatpush1.msra.mxu0 0.0
  %2354 = vmatprep.subr.mxu0 0.0
  %2355 = vmatpush1.msra.mxu0 0.0
  %2356 = vmatprep.subr.mxu0 0.0
  %2357 = vmatpush1.msra.mxu0 0.0
  %2358 = vmatprep.subr.mxu0 0.0
  %2359 = vmatpush1.msra.mxu0 0.0
  %2360 = vmatprep.subr.mxu0 0.0
  %2361 = vmatpush1.msra.mxu0 0.0
  %2362 = vmatprep.mubr.f32.mxu0 0.0
  %2363 = vmatmul.mubr.f32.gmra.mrb[0].mxu0 %v2293
  %v2364 = vpop.f32.mrb[0].mxu0
  %v2365 = vadd.f32 %v2291, %v2364
  %v2366 = vpop.f32.mrb[0].mxu0
  %2367 = vmatprep.mubr.f32.mxu0 0.0
  %2368 = vmatmul.mubr.f32.gmra.mrb[0].mxu0 %v2296
  %v2369 = vpop.f32.mrb[0].mxu0
  %v2370 = vadd.f32 %v2291, %v2369
  %v2371 = vpop.f32.mrb[0].mxu0
  %2372 = vdwg.mxu0
  %v2373 = vld [vmem:[%s17 + $0x4] sm:$0x1]
  %v2374 = vld [vmem:[%s17 + $0x5] sm:$0x1]
  %v2375 = vsel %vm95, %v2365, 0.0
  %2376 = vadd.xlane.f32.xlu0 %v2375
  %v2377 = vpop.xlane.xlu0 %2376
  %v2378 = vsel %vm95, %v2370, 0.0
  %2379 = vadd.xlane.f32.xlu0 %v2378
  %v2380 = vpop.xlane.xlu0 %2379
  %v2381 = vmul.f32 %v2377, %v102
  %v2382 = vmul.f32 %v2380, %v102
  %v2383 = vsub.f32 %v2365, %v2381
  %v2384 = vsub.f32 %v2370, %v2382
  %v2385 = vmul.f32 %v2383, %v2383
  %v2386 = vmul.f32 %v2384, %v2384
  %v2387 = vsel %vm95, %v2385, 0.0
  %2388 = vadd.xlane.f32.xlu0 %v2387
  %v2389 = vpop.xlane.xlu0 %2388
  %v2390 = vsel %vm95, %v2386, 0.0
  %2391 = vadd.xlane.f32.xlu0 %v2390
  %v2392 = vpop.xlane.xlu0 %2391
  %v2393 = vmul.f32 %v2389, %v102
  %v2394 = vmul.f32 %v2392, %v102
  %v2395 = vadd.f32 %v2393, 1e-05
  %v2396 = vadd.f32 %v2394, 1e-05
  %v2397 = vrsqrt.pop %v2395
  %v2398 = vrsqrt.pop %v2396
  %v2399 = vmul.f32 %v2383, %v2397
  %v2400 = vmul.f32 %v2384, %v2398
  %v2401 = vlaneseq
  %v2402 = vshrl.u32 %v2401, 7
  %v2403 = vsub.s32 0, %v2402
  %v2404 = vrot.slane %v2373, %v2403
  %v2405 = vmul.f32 %v2399, %v2404
  %v2406 = vmul.f32 %v2400, %v2404
  %v2407 = vlaneseq
  %v2408 = vshrl.u32 %v2407, 7
  %v2409 = vsub.s32 0, %v2408
  %v2410 = vrot.slane %v2374, %v2409
  %v2411 = vadd.f32 %v2405, %v2410
  %v2412 = vadd.f32 %v2406, %v2410
  %vm2413 = vcmp.ge.f32.partialorder %v2411, 0.0
  %vm2414 = vcmp.ge.f32.partialorder %v2412, 0.0
  %v2415 = vmul.f32 %v2411, 0.01
  %v2416 = vmul.f32 %v2412, 0.01
  %v2417 = vsel %vm2413, %v2411, %v2415
  %v2418 = vsel %vm2414, %v2412, %v2416
  %v2419 = vld [vmem:[%s18] sm:$0xff]
  %v2420 = vld [vmem:[%s18 + $0x8] sm:$0xff]
  %v2421 = vld [vmem:[%s18 + $0x10] sm:$0xff]
  %v2422 = vld [vmem:[%s18 + $0x18] sm:$0xff]
  %v2423 = vld [vmem:[%s19] sm:$0x1]
  %v2425 = vlaneseq
  %v2426 = vshrl.u32 %v2425, 7
  %v2427 = vsub.s32 0, %v2426
  %v2428 = vrot.slane %v2423, %v2427
  %v2431 = vsel %vm95, %v2417, 0
  %v2434 = vsel %vm95, %v2418, 0
  %2436 = vmatprep.subr.mxu0 0.0
  %2437 = vmatpush1.msra.mxu0 %v2419
  %2438 = vmatprep.subr.mxu0 0.0
  %2439 = vmatpush1.msra.mxu0 %v2420
  %2440 = vmatprep.subr.mxu0 0.0
  %2441 = vmatpush1.msra.mxu0 %v2421
  %2442 = vmatprep.subr.mxu0 0.0
  %2443 = vmatpush1.msra.mxu0 %v2422
  %2444 = vmatprep.subr.mxu0 0.0
  %2445 = vmatpush1.msra.mxu0 0.0
  %2446 = vmatprep.subr.mxu0 0.0
  %2447 = vmatpush1.msra.mxu0 0.0
  %2448 = vmatprep.subr.mxu0 0.0
  %2449 = vmatpush1.msra.mxu0 0.0
  %2450 = vmatprep.subr.mxu0 0.0
  %2451 = vmatpush1.msra.mxu0 0.0
  %2452 = vmatprep.subr.mxu0 0.0
  %2453 = vmatpush1.msra.mxu0 0.0
  %2454 = vmatprep.subr.mxu0 0.0
  %2455 = vmatpush1.msra.mxu0 0.0
  %2456 = vmatprep.subr.mxu0 0.0
  %2457 = vmatpush1.msra.mxu0 0.0
  %2458 = vmatprep.subr.mxu0 0.0
  %2459 = vmatpush1.msra.mxu0 0.0
  %2460 = vmatprep.subr.mxu0 0.0
  %2461 = vmatpush1.msra.mxu0 0.0
  %2462 = vmatprep.subr.mxu0 0.0
  %2463 = vmatpush1.msra.mxu0 0.0
  %2464 = vmatprep.subr.mxu0 0.0
  %2465 = vmatpush1.msra.mxu0 0.0
  %2466 = vmatprep.subr.mxu0 0.0
  %2467 = vmatpush1.msra.mxu0 0.0
  %2468 = vmatprep.subr.mxu0 0.0
  %2469 = vmatpush1.msra.mxu0 0.0
  %2470 = vmatprep.subr.mxu0 0.0
  %2471 = vmatpush1.msra.mxu0 0.0
  %2472 = vmatprep.subr.mxu0 0.0
  %2473 = vmatpush1.msra.mxu0 0.0
  %2474 = vmatprep.subr.mxu0 0.0
  %2475 = vmatpush1.msra.mxu0 0.0
  %2476 = vmatprep.subr.mxu0 0.0
  %2477 = vmatpush1.msra.mxu0 0.0
  %2478 = vmatprep.subr.mxu0 0.0
  %2479 = vmatpush1.msra.mxu0 0.0
  %2480 = vmatprep.subr.mxu0 0.0
  %2481 = vmatpush1.msra.mxu0 0.0
  %2482 = vmatprep.subr.mxu0 0.0
  %2483 = vmatpush1.msra.mxu0 0.0
  %2484 = vmatprep.subr.mxu0 0.0
  %2485 = vmatpush1.msra.mxu0 0.0
  %2486 = vmatprep.subr.mxu0 0.0
  %2487 = vmatpush1.msra.mxu0 0.0
  %2488 = vmatprep.subr.mxu0 0.0
  %2489 = vmatpush1.msra.mxu0 0.0
  %2490 = vmatprep.subr.mxu0 0.0
  %2491 = vmatpush1.msra.mxu0 0.0
  %2492 = vmatprep.subr.mxu0 0.0
  %2493 = vmatpush1.msra.mxu0 0.0
  %2494 = vmatprep.subr.mxu0 0.0
  %2495 = vmatpush1.msra.mxu0 0.0
  %2496 = vmatprep.subr.mxu0 0.0
  %2497 = vmatpush1.msra.mxu0 0.0
  %2498 = vmatprep.subr.mxu0 0.0
  %2499 = vmatpush1.msra.mxu0 0.0
  %2500 = vmatprep.mubr.f32.mxu0 0.0
  %2501 = vmatmul.mubr.f32.gmra.mrb[0].mxu0 %v2431
  %v2502 = vpop.f32.mrb[0].mxu0
  %v2503 = vadd.f32 %v2428, %v2502
  %v2504 = vpop.f32.mrb[0].mxu0
  %2505 = vmatprep.mubr.f32.mxu0 0.0
  %2506 = vmatmul.mubr.f32.gmra.mrb[0].mxu0 %v2434
  %v2507 = vpop.f32.mrb[0].mxu0
  %v2508 = vadd.f32 %v2428, %v2507
  %v2509 = vpop.f32.mrb[0].mxu0
  %2510 = vdwg.mxu0
  %vm2511 = vcmask 105472
  %2512 = vst.msk [vmem:[%s20] sm:$0xff] %vm2511, %v2503
  %2513 = vst.msk [vmem:[%s20 + $0x8] sm:$0xff] %vm2511, %v2508
  // Predicated region
  $region82: #{autoencoder_forward.3} parent=0 // pred_check
    _
  $region83: #{autoencoder_forward.3} parent=0 // pred_check_branch
    %2515 = sbr.rel (0) target = $region85
  $region84: #{autoencoder_forward.3} parent=0 // pred_region
    _
  $region85: #{autoencoder_forward.3} parent=0 // pred_fallthru
    _
  // Predicated region
  $region86: #{autoencoder_forward.3} parent=0 // pred_check
    _
  $region87: #{autoencoder_forward.3} parent=0 // pred_check_branch
    %2517 = sbr.rel (0) target = $region89
  $region88: #{autoencoder_forward.3} parent=0 // pred_region
    _
  $region89: #{autoencoder_forward.3} parent=0 // pred_fallthru
    _

</llo_original>
